<compile_context>
chip_gen: v7x
topology: tpu7x:2x2x1
jax: 0.10.0
libtpu: 0.0.40
codegen_flags: <defaults>
</compile_context>

<pallas_src>
import functools

import jax
import jax.numpy as jnp
import numpy as np
from jax import lax
from jax.experimental import pallas as pl
from jax.experimental.pallas import tpu as pltpu


# ----------------------------- fused Pallas kernel ----------------------------

def _fused_tcn_kernel(*refs, shifts, down_slot):
    """Whole TCN + Linear for one batch block.

    refs = (x_ref,                                   (Nb, L, Cpad) f32
            w1_0, w2_0, ..., w1_{nl-1}, w2_{nl-1},   (Cpad, K_eff_l*Cpad) bf16 each
            b1_ref, b2_ref,                          (nl, 1, Cpad) f32
            wd_ref, bd_ref,                          (n_down, Cpad, Cpad) bf16 / f32
            wl_ref, bl_ref,                          (Cpad, OutPad) bf16 / (1, OutPad)
            out_ref)                                 (Nb, L, OutPad) f32
    shifts    : per-layer tuple of causal tap shifts (static), matching the column
                block order of that layer's packed weights.
    down_slot : per-layer index into wd/bd, or None when no 1x1 downsample.
    """
    nl = len(shifts)
    x_ref = refs[0]
    wconv = refs[1:1 + 2 * nl]
    b1_ref, b2_ref, wd_ref, bd_ref, wl_ref, bl_ref = refs[1 + 2 * nl:-1]
    out_ref = refs[-1]

    nb, seq_len, cpad = x_ref.shape
    m = nb * seq_len

    # Flatten batch x time so every conv / matmul sees M = Nb*L rows.
    x = x_ref[...].reshape(m, cpad).astype(jnp.float32)

    # Per-sequence time index of every flattened row (causal-pad mask support).
    t2d = lax.broadcasted_iota(jnp.int32, (seq_len, cpad), 0)
    t_idx = jnp.concatenate([t2d] * nb, axis=0) if nb > 1 else t2d

    def causal_conv(h, w_ref, bias, layer_shifts):
        # im2col over the kernel taps: LHS = [shift_s0(h) | shift_s1(h) | ...],
        # then ONE MXU matmul against the lane-dense transposed weight
        # (Cout, K_eff*Cin).  Taps with shift >= L were dropped at pack time.
        blocks = []
        for s in layer_shifts:
            if s == 0:
                blocks.append(h)
            else:
                # out[b*L + t] = h[b*L + t - s] for t >= s else 0 (causal zeros).
                # jnp.roll wraps across batch rows; the wrapped rows are exactly
                # the t < s rows, which the mask zeroes.  Everything stays in
                # vregs — no VMEM shift-buffer round trip.
                rolled = jnp.roll(h, s, axis=0)
                blocks.append(jnp.where(t_idx >= s, rolled, jnp.zeros_like(rolled)))
        lhs = blocks[0] if len(blocks) == 1 else jnp.concatenate(blocks, axis=-1)
        y = lax.dot_general(
            lhs.astype(jnp.bfloat16), w_ref[...],        # (M, Kc) . (Cout, Kc)^T
            (((1,), (1,)), ((), ())),
            preferred_element_type=jnp.float32)
        return y + bias

    for li in range(nl):                                 # layers unrolled (static)
        ls = shifts[li]
        # conv1 -> chomp -> relu   (dropout = identity at inference)
        h = jnp.maximum(causal_conv(x, wconv[2 * li], b1_ref[li], ls), 0.0)
        # conv2 -> chomp -> relu
        h = jnp.maximum(causal_conv(h, wconv[2 * li + 1], b2_ref[li], ls), 0.0)
        # residual path (1x1 conv only where channel counts differ)
        if down_slot[li] is None:
            res = x
        else:
            sl = down_slot[li]
            res = jnp.dot(x.astype(jnp.bfloat16), wd_ref[sl],
                          preferred_element_type=jnp.float32) + bd_ref[sl]
        x = jnp.maximum(h + res, 0.0)                    # relu(out + res)

    # Final Linear head.  Lane-padded (128-wide) output columns are exactly zero,
    # so the single HBM store is lane-dense.
    y = jnp.dot(x.astype(jnp.bfloat16), wl_ref[...],
                preferred_element_type=jnp.float32) + bl_ref[...]
    out_ref[...] = y.reshape(nb, seq_len, -1).astype(out_ref.dtype)


def autoregressive_tcn(x, packed, batch_block=None):
    """x: (N, L, input_size) -> (N, L, output_size).

    batch_block: rows per grid step.  Default = whole batch (best on single-TC
    v5e/v6e).  On v7x, pass cdiv(N, 2) so both TensorCores get a grid step
    (grid axis is marked "parallel").
    """
    n, seq_len, cin = x.shape
    cpad = packed["cpad"]
    out_pad = packed["wl"].shape[-1]
    shifts = packed["shifts"]

    if batch_block is None:
        batch_block = n
    assert n % batch_block == 0, "batch must divide evenly into batch blocks"
    if batch_block > 1:
        assert seq_len % 8 == 0, "merged-batch flattening assumes L % 8 == 0"

    # zero-pad channels to Cpad (tiny; the time axis is never padded in HBM)
    xp = jnp.pad(x.astype(jnp.float32), ((0, 0), (0, 0), (0, cpad - cin)))

    kernel = functools.partial(_fused_tcn_kernel,
                               shifts=shifts, down_slot=packed["down_slot"])

    weight_ops = list(packed["wconv"]) + [packed["b1"], packed["b2"],
                                          packed["wd"], packed["bd"],
                                          packed["wl"], packed["bl"]]
    # constant index maps: weights are DMA'd into VMEM once and stay resident
    weight_specs = [pl.BlockSpec(w.shape, lambda i, nd=w.ndim: (0,) * nd)
                    for w in weight_ops]

    out = pl.pallas_call(
        kernel,
        out_shape=jax.ShapeDtypeStruct((n, seq_len, out_pad), jnp.float32),
        grid=(n // batch_block,),
        in_specs=[pl.BlockSpec((batch_block, seq_len, cpad), lambda i: (i, 0, 0))]
                 + weight_specs,
        out_specs=pl.BlockSpec((batch_block, seq_len, out_pad),
                               lambda i: (i, 0, 0)),
        compiler_params=pltpu.CompilerParams(
            dimension_semantics=("parallel",),          # batch blocks across TCs (v7x)
            vmem_limit_bytes=32 * 1024 * 1024),         # explicit headroom for scaling
    )(xp, *weight_ops)

    return out[..., :packed["output_size"]]


# ------------------------- deterministic params --------------------------------

def make_params(key, input_channels, num_channels, kernel_size, output_size):
    """Effective (weight_norm-folded) conv weights ~ N(0, 0.01); small biases."""
    params = []
    for i, cout in enumerate(num_channels):
        cin = input_channels if i == 0 else num_channels[i - 1]
        key, k1, k2, k3, k4, k5, k6 = jax.random.split(key, 7)
        p = {
            "w1": 0.01 * jax.random.normal(k1, (kernel_size, cin, cout), jnp.float32),
            "b1": 0.01 * jax.random.uniform(k2, (cout,), jnp.float32, -1.0, 1.0),
            "w2": 0.01 * jax.random.normal(k3, (kernel_size, cout, cout), jnp.float32),
            "b2": 0.01 * jax.random.uniform(k4, (cout,), jnp.float32, -1.0, 1.0),
        }
        if cin != cout:
            p["w_down"] = 0.01 * jax.random.normal(k5, (1, cin, cout), jnp.float32)
            p["b_down"] = 0.01 * jax.random.uniform(k6, (cout,), jnp.float32, -1.0, 1.0)
        else:
            p["w_down"] = None
            p["b_down"] = None
        params.append(p)
    key, kl1, kl2 = jax.random.split(key, 3)
    lin_w = 0.1 * jax.random.normal(kl1, (num_channels[-1], output_size), jnp.float32)
    lin_b = 0.1 * jax.random.uniform(kl2, (output_size,), jnp.float32, -1.0, 1.0)
    return params, lin_w, lin_b


def _round_up(v, m):
    return ((v + m - 1) // m) * m


def pack_params(params, lin_w, lin_b, input_channels, seq_len):
    """Pack weights for the fused kernel.

    * channels zero-padded to a uniform Cpad,
    * per layer, the kernel taps whose causal shift >= seq_len are dropped and the
      remaining taps are stacked lane-dense & transposed: (Cout, K_eff*Cin) bf16,
    * final Linear columns lane-padded to 128 (bf16), biases stay f32.
    """
    nl = len(params)
    ksize = params[0]["w1"].shape[0]
    cmax = max([input_channels] + [p["w1"].shape[-1] for p in params])
    cpad = _round_up(cmax, 8)
    out_size = lin_w.shape[1]
    out_pad = _round_up(out_size, 128)   # lane-dense final HBM store

    def pad_w(w):  # (K, cin, cout) -> (K, cpad, cpad), extra rows/cols exactly zero
        _, ci, co = w.shape
        return jnp.pad(w, ((0, 0), (0, cpad - ci), (0, cpad - co)))

    def pad_b(b):  # (cout,) -> (1, cpad), extra entries exactly zero
        return jnp.pad(b, (0, cpad - b.shape[0])).reshape(1, cpad).astype(jnp.float32)

    wconv, shifts = [], []
    for li, p in enumerate(params):
        d = 2 ** li
        kept = [j for j in range(ksize) if (ksize - 1 - j) * d < seq_len]
        shifts.append(tuple((ksize - 1 - j) * d for j in kept))
        for name in ("w1", "w2"):
            wp = pad_w(p[name])                                   # (K, cpad, cpad)
            # lane-dense transposed im2col weight (Cout, K_eff*Cin); column block
            # order matches `shifts` above.
            blocks = [wp[j].T for j in kept]
            wconv.append(jnp.concatenate(blocks, axis=1).astype(jnp.bfloat16))

    b1 = jnp.stack([pad_b(p["b1"]) for p in params])
    b2 = jnp.stack([pad_b(p["b2"]) for p in params])

    down_slot, wd_list, bd_list = [], [], []
    for p in params:
        if p["w_down"] is None:
            down_slot.append(None)
        else:
            down_slot.append(len(wd_list))
            wd_list.append(pad_w(p["w_down"])[0])                 # (cpad, cpad)
            bd_list.append(pad_b(p["b_down"]))
    if wd_list:
        wd = jnp.stack(wd_list).astype(jnp.bfloat16)
        bd = jnp.stack(bd_list)
    else:  # dummy, never read
        wd = jnp.zeros((1, cpad, cpad), jnp.bfloat16)
        bd = jnp.zeros((1, 1, cpad), jnp.float32)

    wl = jnp.pad(lin_w, ((0, cpad - lin_w.shape[0]),
                         (0, out_pad - out_size))).astype(jnp.bfloat16)
    bl = jnp.pad(lin_b, (0, out_pad - out_size)).reshape(1, out_pad).astype(jnp.float32)

    return {
        "wconv": wconv, "b1": b1, "b2": b2, "wd": wd, "bd": bd,
        "wl": wl, "bl": bl,
        "shifts": tuple(shifts),
        "down_slot": tuple(down_slot),
        "output_size": out_size,
        "cpad": cpad,
    }


# ----------------------------- pure-JAX reference ------------------------------

def _ref_conv(x, w, b, dilation):
    k = w.shape[0]
    pad = (k - 1) * dilation
    y = lax.conv_general_dilated(
        x, w, window_strides=(1,), padding=[(pad, 0)],
        rhs_dilation=(dilation,), dimension_numbers=("NWC", "WIO", "NWC"))
    return y + b[None, None, :]


def autoregressive_tcn_reference(x, params, lin_w, lin_b):
    h = x
    for i, p in enumerate(params):
        d = 2 ** i
        c = jax.nn.relu(_ref_conv(h, p["w1"], p["b1"], d))
        c = jax.nn.relu(_ref_conv(c, p["w2"], p["b2"], d))
        res = h if p["w_down"] is None else _ref_conv(h, p["w_down"], p["b_down"], 1)
        h = jax.nn.relu(c + res)
    return h @ lin_w + lin_b[None, None, :]


# ---------------------------------- main ---------------------------------------

if __name__ == "__main__":
    # AutoRegressiveTCN(input_size=1, output_size=1, num_channels=[25]*8,
    #                   kernel_size=7, dropout=0.2)
    INPUT_SIZE = 1
    OUTPUT_SIZE = 1
    NUM_CHANNELS = [25] * 8
    KERNEL_SIZE = 7
    BATCH, SEQ = 2, 32
    # TODO(synk): dropout layers are treated as identity (inference semantics).

    key = jax.random.PRNGKey(0)
    kx, kp = jax.random.split(key)
    x = jax.random.normal(kx, (BATCH, SEQ, INPUT_SIZE), jnp.float32)  # (N, L, C_in)

    params, lin_w, lin_b = make_params(kp, INPUT_SIZE, NUM_CHANNELS,
                                       KERNEL_SIZE, OUTPUT_SIZE)
    packed = pack_params(params, lin_w, lin_b, INPUT_SIZE, SEQ)

    out = jax.block_until_ready(autoregressive_tcn(x, packed))
    assert out.shape == (BATCH, SEQ, OUTPUT_SIZE), out.shape

    ref = jax.block_until_ready(autoregressive_tcn_reference(x, params, lin_w, lin_b))
    # Tolerance loosened vs. pure-f32 because conv / downsample / linear weights are
    # stored bf16 (MXU native path); f32 reference, f32 accumulation in the kernel.
    np.testing.assert_allclose(np.asarray(out), np.asarray(ref), rtol=2e-2, atol=2e-3)

    print("KERNEL_OK")
</pallas_src>

<mosaic_0001>
module attributes {stable_mosaic.version = 11 : i64} {
  func.func @_fused_tcn_kernel(%arg0: i32, %arg1: memref<2x32x32xf32, #tpu.memory_space<vmem>>, %arg2: memref<32x224xbf16, #tpu.memory_space<vmem>>, %arg3: memref<32x224xbf16, #tpu.memory_space<vmem>>, %arg4: memref<32x224xbf16, #tpu.memory_space<vmem>>, %arg5: memref<32x224xbf16, #tpu.memory_space<vmem>>, %arg6: memref<32x224xbf16, #tpu.memory_space<vmem>>, %arg7: memref<32x224xbf16, #tpu.memory_space<vmem>>, %arg8: memref<32x128xbf16, #tpu.memory_space<vmem>>, %arg9: memref<32x128xbf16, #tpu.memory_space<vmem>>, %arg10: memref<32x64xbf16, #tpu.memory_space<vmem>>, %arg11: memref<32x64xbf16, #tpu.memory_space<vmem>>, %arg12: memref<32x32xbf16, #tpu.memory_space<vmem>>, %arg13: memref<32x32xbf16, #tpu.memory_space<vmem>>, %arg14: memref<32x32xbf16, #tpu.memory_space<vmem>>, %arg15: memref<32x32xbf16, #tpu.memory_space<vmem>>, %arg16: memref<32x32xbf16, #tpu.memory_space<vmem>>, %arg17: memref<32x32xbf16, #tpu.memory_space<vmem>>, %arg18: memref<8x1x32xf32, #tpu.memory_space<vmem>>, %arg19: memref<8x1x32xf32, #tpu.memory_space<vmem>>, %arg20: memref<1x32x32xbf16, #tpu.memory_space<vmem>>, %arg21: memref<1x1x32xf32, #tpu.memory_space<vmem>>, %arg22: memref<32x128xbf16, #tpu.memory_space<vmem>>, %arg23: memref<1x128xf32, #tpu.memory_space<vmem>>, %arg24: memref<2x32x128xf32, #tpu.memory_space<vmem>>) attributes {dimension_semantics = [#tpu.dimension_semantics<parallel>], iteration_bounds = array<i64: 1>, scalar_prefetch = 0 : i64, scratch_operands = 0 : i64, tpu.core_type = #tpu.core_type<tc>, window_params = [{transform_indices = @transform_0, window_bounds = array<i64: 2, 32, 32>}, {pipeline_mode = #tpu.pipeline_mode<synchronous>, transform_indices = @transform_1, window_bounds = array<i64: 32, 224>}, {pipeline_mode = #tpu.pipeline_mode<synchronous>, transform_indices = @transform_2, window_bounds = array<i64: 32, 224>}, {pipeline_mode = #tpu.pipeline_mode<synchronous>, transform_indices = @transform_3, window_bounds = array<i64: 32, 224>}, {pipeline_mode = #tpu.pipeline_mode<synchronous>, transform_indices = @transform_4, window_bounds = array<i64: 32, 224>}, {pipeline_mode = #tpu.pipeline_mode<synchronous>, transform_indices = @transform_5, window_bounds = array<i64: 32, 224>}, {pipeline_mode = #tpu.pipeline_mode<synchronous>, transform_indices = @transform_6, window_bounds = array<i64: 32, 224>}, {pipeline_mode = #tpu.pipeline_mode<synchronous>, transform_indices = @transform_7, window_bounds = array<i64: 32, 128>}, {pipeline_mode = #tpu.pipeline_mode<synchronous>, transform_indices = @transform_8, window_bounds = array<i64: 32, 128>}, {pipeline_mode = #tpu.pipeline_mode<synchronous>, transform_indices = @transform_9, window_bounds = array<i64: 32, 64>}, {pipeline_mode = #tpu.pipeline_mode<synchronous>, transform_indices = @transform_10, window_bounds = array<i64: 32, 64>}, {pipeline_mode = #tpu.pipeline_mode<synchronous>, transform_indices = @transform_11, window_bounds = array<i64: 32, 32>}, {pipeline_mode = #tpu.pipeline_mode<synchronous>, transform_indices = @transform_12, window_bounds = array<i64: 32, 32>}, {pipeline_mode = #tpu.pipeline_mode<synchronous>, transform_indices = @transform_13, window_bounds = array<i64: 32, 32>}, {pipeline_mode = #tpu.pipeline_mode<synchronous>, transform_indices = @transform_14, window_bounds = array<i64: 32, 32>}, {pipeline_mode = #tpu.pipeline_mode<synchronous>, transform_indices = @transform_15, window_bounds = array<i64: 32, 32>}, {pipeline_mode = #tpu.pipeline_mode<synchronous>, transform_indices = @transform_16, window_bounds = array<i64: 32, 32>}, {pipeline_mode = #tpu.pipeline_mode<synchronous>, transform_indices = @transform_17, window_bounds = array<i64: 8, 1, 32>}, {pipeline_mode = #tpu.pipeline_mode<synchronous>, transform_indices = @transform_18, window_bounds = array<i64: 8, 1, 32>}, {pipeline_mode = #tpu.pipeline_mode<synchronous>, transform_indices = @transform_19, window_bounds = array<i64: 1, 32, 32>}, {pipeline_mode = #tpu.pipeline_mode<synchronous>, transform_indices = @transform_20, window_bounds = array<i64: 1, 1, 32>}, {pipeline_mode = #tpu.pipeline_mode<synchronous>, transform_indices = @transform_21, window_bounds = array<i64: 32, 128>}, {pipeline_mode = #tpu.pipeline_mode<synchronous>, transform_indices = @transform_22, window_bounds = array<i64: 1, 128>}, {transform_indices = @transform_23, window_bounds = array<i64: 2, 32, 128>}]} {
    %c0 = arith.constant 0 : index
    %c0_0 = arith.constant 0 : index
    %c0_1 = arith.constant 0 : index
    %0 = vector.load %arg1[%c0, %c0_0, %c0_1] : memref<2x32x32xf32, #tpu.memory_space<vmem>>, vector<2x32x32xf32>
    %1 = vector.shape_cast %0 : vector<2x32x32xf32> to vector<64x32xf32>
    %2 = tpu.iota {dimensions = array<i32: 0>} : vector<32x32xi32>
    %3 = tpu.concatenate %2, %2 in 0 : vector<32x32xi32>, vector<32x32xi32> -> vector<64x32xi32>
    %c0_2 = arith.constant 0 : index
    %c0_3 = arith.constant 0 : index
    %c0_4 = arith.constant 0 : index
    %4 = vector.load %arg18[%c0_2, %c0_3, %c0_4] : memref<8x1x32xf32, #tpu.memory_space<vmem>>, vector<1x1x32xf32>
    %5 = vector.shape_cast %4 : vector<1x1x32xf32> to vector<1x32xf32>
    %6 = vector.extract_strided_slice %1 {offsets = [58, 0], sizes = [6, 32], strides = [1, 1]} : vector<64x32xf32> to vector<6x32xf32>
    %7 = vector.extract_strided_slice %1 {offsets = [0, 0], sizes = [58, 32], strides = [1, 1]} : vector<64x32xf32> to vector<58x32xf32>
    %8 = tpu.concatenate %6, %7 in 0 : vector<6x32xf32>, vector<58x32xf32> -> vector<64x32xf32>
    %c6_i32 = arith.constant 6 : i32
    %9 = vector.broadcast %c6_i32 : i32 to vector<64x32xi32>
    %10 = arith.cmpi sge, %3, %9 : vector<64x32xi32>
    %cst = arith.constant 0.000000e+00 : f32
    %11 = vector.broadcast %cst : f32 to vector<64x32xf32>
    %12 = arith.select %10, %8, %11 : vector<64x32xi1>, vector<64x32xf32>
    %13 = vector.extract_strided_slice %1 {offsets = [59, 0], sizes = [5, 32], strides = [1, 1]} : vector<64x32xf32> to vector<5x32xf32>
    %14 = vector.extract_strided_slice %1 {offsets = [0, 0], sizes = [59, 32], strides = [1, 1]} : vector<64x32xf32> to vector<59x32xf32>
    %15 = tpu.concatenate %13, %14 in 0 : vector<5x32xf32>, vector<59x32xf32> -> vector<64x32xf32>
    %c5_i32 = arith.constant 5 : i32
    %16 = vector.broadcast %c5_i32 : i32 to vector<64x32xi32>
    %17 = arith.cmpi sge, %3, %16 : vector<64x32xi32>
    %cst_5 = arith.constant 0.000000e+00 : f32
    %18 = vector.broadcast %cst_5 : f32 to vector<64x32xf32>
    %19 = arith.select %17, %15, %18 : vector<64x32xi1>, vector<64x32xf32>
    %20 = vector.extract_strided_slice %1 {offsets = [60, 0], sizes = [4, 32], strides = [1, 1]} : vector<64x32xf32> to vector<4x32xf32>
    %21 = vector.extract_strided_slice %1 {offsets = [0, 0], sizes = [60, 32], strides = [1, 1]} : vector<64x32xf32> to vector<60x32xf32>
    %22 = tpu.concatenate %20, %21 in 0 : vector<4x32xf32>, vector<60x32xf32> -> vector<64x32xf32>
    %c4_i32 = arith.constant 4 : i32
    %23 = vector.broadcast %c4_i32 : i32 to vector<64x32xi32>
    %24 = arith.cmpi sge, %3, %23 : vector<64x32xi32>
    %cst_6 = arith.constant 0.000000e+00 : f32
    %25 = vector.broadcast %cst_6 : f32 to vector<64x32xf32>
    %26 = arith.select %24, %22, %25 : vector<64x32xi1>, vector<64x32xf32>
    %27 = vector.extract_strided_slice %1 {offsets = [61, 0], sizes = [3, 32], strides = [1, 1]} : vector<64x32xf32> to vector<3x32xf32>
    %28 = vector.extract_strided_slice %1 {offsets = [0, 0], sizes = [61, 32], strides = [1, 1]} : vector<64x32xf32> to vector<61x32xf32>
    %29 = tpu.concatenate %27, %28 in 0 : vector<3x32xf32>, vector<61x32xf32> -> vector<64x32xf32>
    %c3_i32 = arith.constant 3 : i32
    %30 = vector.broadcast %c3_i32 : i32 to vector<64x32xi32>
    %31 = arith.cmpi sge, %3, %30 : vector<64x32xi32>
    %cst_7 = arith.constant 0.000000e+00 : f32
    %32 = vector.broadcast %cst_7 : f32 to vector<64x32xf32>
    %33 = arith.select %31, %29, %32 : vector<64x32xi1>, vector<64x32xf32>
    %34 = vector.extract_strided_slice %1 {offsets = [62, 0], sizes = [2, 32], strides = [1, 1]} : vector<64x32xf32> to vector<2x32xf32>
    %35 = vector.extract_strided_slice %1 {offsets = [0, 0], sizes = [62, 32], strides = [1, 1]} : vector<64x32xf32> to vector<62x32xf32>
    %36 = tpu.concatenate %34, %35 in 0 : vector<2x32xf32>, vector<62x32xf32> -> vector<64x32xf32>
    %c2_i32 = arith.constant 2 : i32
    %37 = vector.broadcast %c2_i32 : i32 to vector<64x32xi32>
    %38 = arith.cmpi sge, %3, %37 : vector<64x32xi32>
    %cst_8 = arith.constant 0.000000e+00 : f32
    %39 = vector.broadcast %cst_8 : f32 to vector<64x32xf32>
    %40 = arith.select %38, %36, %39 : vector<64x32xi1>, vector<64x32xf32>
    %41 = vector.extract_strided_slice %1 {offsets = [63, 0], sizes = [1, 32], strides = [1, 1]} : vector<64x32xf32> to vector<1x32xf32>
    %42 = vector.extract_strided_slice %1 {offsets = [0, 0], sizes = [63, 32], strides = [1, 1]} : vector<64x32xf32> to vector<63x32xf32>
    %43 = tpu.concatenate %41, %42 in 0 : vector<1x32xf32>, vector<63x32xf32> -> vector<64x32xf32>
    %c1_i32 = arith.constant 1 : i32
    %44 = vector.broadcast %c1_i32 : i32 to vector<64x32xi32>
    %45 = arith.cmpi sge, %3, %44 : vector<64x32xi32>
    %cst_9 = arith.constant 0.000000e+00 : f32
    %46 = vector.broadcast %cst_9 : f32 to vector<64x32xf32>
    %47 = arith.select %45, %43, %46 : vector<64x32xi1>, vector<64x32xf32>
    %48 = tpu.concatenate %12, %19, %26, %33, %40, %47, %1 in 1 : vector<64x32xf32>, vector<64x32xf32>, vector<64x32xf32>, vector<64x32xf32>, vector<64x32xf32>, vector<64x32xf32>, vector<64x32xf32> -> vector<64x224xf32>
    %49 = arith.truncf %48 : vector<64x224xf32> to vector<64x224xbf16>
    %c0_10 = arith.constant 0 : index
    %c0_11 = arith.constant 0 : index
    %50 = vector.load %arg2[%c0_10, %c0_11] : memref<32x224xbf16, #tpu.memory_space<vmem>>, vector<32x224xbf16>
    %cst_12 = arith.constant dense<0.000000e+00> : vector<64x32xf32>
    %51 = tpu.matmul %49, %50, %cst_12 {dimension_numbers = #tpu.dot_dimension_numbers<[1], [1], [0], [0], [0, 0, 1, 0], [], []>} : vector<64x224xbf16>, vector<32x224xbf16>, vector<64x32xf32> -> vector<64x32xf32>
    %52 = vector.broadcast %5 : vector<1x32xf32> to vector<64x32xf32>
    %53 = arith.addf %51, %52 : vector<64x32xf32>
    %cst_13 = arith.constant 0.000000e+00 : f32
    %54 = vector.broadcast %cst_13 : f32 to vector<64x32xf32>
    %55 = arith.maximumf %53, %54 : vector<64x32xf32>
    %c0_14 = arith.constant 0 : index
    %c0_15 = arith.constant 0 : index
    %c0_16 = arith.constant 0 : index
    %56 = vector.load %arg19[%c0_14, %c0_15, %c0_16] : memref<8x1x32xf32, #tpu.memory_space<vmem>>, vector<1x1x32xf32>
    %57 = vector.shape_cast %56 : vector<1x1x32xf32> to vector<1x32xf32>
    %58 = vector.extract_strided_slice %55 {offsets = [58, 0], sizes = [6, 32], strides = [1, 1]} : vector<64x32xf32> to vector<6x32xf32>
    %59 = vector.extract_strided_slice %55 {offsets = [0, 0], sizes = [58, 32], strides = [1, 1]} : vector<64x32xf32> to vector<58x32xf32>
    %60 = tpu.concatenate %58, %59 in 0 : vector<6x32xf32>, vector<58x32xf32> -> vector<64x32xf32>
    %c6_i32_17 = arith.constant 6 : i32
    %61 = vector.broadcast %c6_i32_17 : i32 to vector<64x32xi32>
    %62 = arith.cmpi sge, %3, %61 : vector<64x32xi32>
    %cst_18 = arith.constant 0.000000e+00 : f32
    %63 = vector.broadcast %cst_18 : f32 to vector<64x32xf32>
    %64 = arith.select %62, %60, %63 : vector<64x32xi1>, vector<64x32xf32>
    %65 = vector.extract_strided_slice %55 {offsets = [59, 0], sizes = [5, 32], strides = [1, 1]} : vector<64x32xf32> to vector<5x32xf32>
    %66 = vector.extract_strided_slice %55 {offsets = [0, 0], sizes = [59, 32], strides = [1, 1]} : vector<64x32xf32> to vector<59x32xf32>
    %67 = tpu.concatenate %65, %66 in 0 : vector<5x32xf32>, vector<59x32xf32> -> vector<64x32xf32>
    %c5_i32_19 = arith.constant 5 : i32
    %68 = vector.broadcast %c5_i32_19 : i32 to vector<64x32xi32>
    %69 = arith.cmpi sge, %3, %68 : vector<64x32xi32>
    %cst_20 = arith.constant 0.000000e+00 : f32
    %70 = vector.broadcast %cst_20 : f32 to vector<64x32xf32>
    %71 = arith.select %69, %67, %70 : vector<64x32xi1>, vector<64x32xf32>
    %72 = vector.extract_strided_slice %55 {offsets = [60, 0], sizes = [4, 32], strides = [1, 1]} : vector<64x32xf32> to vector<4x32xf32>
    %73 = vector.extract_strided_slice %55 {offsets = [0, 0], sizes = [60, 32], strides = [1, 1]} : vector<64x32xf32> to vector<60x32xf32>
    %74 = tpu.concatenate %72, %73 in 0 : vector<4x32xf32>, vector<60x32xf32> -> vector<64x32xf32>
    %c4_i32_21 = arith.constant 4 : i32
    %75 = vector.broadcast %c4_i32_21 : i32 to vector<64x32xi32>
    %76 = arith.cmpi sge, %3, %75 : vector<64x32xi32>
    %cst_22 = arith.constant 0.000000e+00 : f32
    %77 = vector.broadcast %cst_22 : f32 to vector<64x32xf32>
    %78 = arith.select %76, %74, %77 : vector<64x32xi1>, vector<64x32xf32>
    %79 = vector.extract_strided_slice %55 {offsets = [61, 0], sizes = [3, 32], strides = [1, 1]} : vector<64x32xf32> to vector<3x32xf32>
    %80 = vector.extract_strided_slice %55 {offsets = [0, 0], sizes = [61, 32], strides = [1, 1]} : vector<64x32xf32> to vector<61x32xf32>
    %81 = tpu.concatenate %79, %80 in 0 : vector<3x32xf32>, vector<61x32xf32> -> vector<64x32xf32>
    %c3_i32_23 = arith.constant 3 : i32
    %82 = vector.broadcast %c3_i32_23 : i32 to vector<64x32xi32>
    %83 = arith.cmpi sge, %3, %82 : vector<64x32xi32>
    %cst_24 = arith.constant 0.000000e+00 : f32
    %84 = vector.broadcast %cst_24 : f32 to vector<64x32xf32>
    %85 = arith.select %83, %81, %84 : vector<64x32xi1>, vector<64x32xf32>
    %86 = vector.extract_strided_slice %55 {offsets = [62, 0], sizes = [2, 32], strides = [1, 1]} : vector<64x32xf32> to vector<2x32xf32>
    %87 = vector.extract_strided_slice %55 {offsets = [0, 0], sizes = [62, 32], strides = [1, 1]} : vector<64x32xf32> to vector<62x32xf32>
    %88 = tpu.concatenate %86, %87 in 0 : vector<2x32xf32>, vector<62x32xf32> -> vector<64x32xf32>
    %c2_i32_25 = arith.constant 2 : i32
    %89 = vector.broadcast %c2_i32_25 : i32 to vector<64x32xi32>
    %90 = arith.cmpi sge, %3, %89 : vector<64x32xi32>
    %cst_26 = arith.constant 0.000000e+00 : f32
    %91 = vector.broadcast %cst_26 : f32 to vector<64x32xf32>
    %92 = arith.select %90, %88, %91 : vector<64x32xi1>, vector<64x32xf32>
    %93 = vector.extract_strided_slice %55 {offsets = [63, 0], sizes = [1, 32], strides = [1, 1]} : vector<64x32xf32> to vector<1x32xf32>
    %94 = vector.extract_strided_slice %55 {offsets = [0, 0], sizes = [63, 32], strides = [1, 1]} : vector<64x32xf32> to vector<63x32xf32>
    %95 = tpu.concatenate %93, %94 in 0 : vector<1x32xf32>, vector<63x32xf32> -> vector<64x32xf32>
    %c1_i32_27 = arith.constant 1 : i32
    %96 = vector.broadcast %c1_i32_27 : i32 to vector<64x32xi32>
    %97 = arith.cmpi sge, %3, %96 : vector<64x32xi32>
    %cst_28 = arith.constant 0.000000e+00 : f32
    %98 = vector.broadcast %cst_28 : f32 to vector<64x32xf32>
    %99 = arith.select %97, %95, %98 : vector<64x32xi1>, vector<64x32xf32>
    %100 = tpu.concatenate %64, %71, %78, %85, %92, %99, %55 in 1 : vector<64x32xf32>, vector<64x32xf32>, vector<64x32xf32>, vector<64x32xf32>, vector<64x32xf32>, vector<64x32xf32>, vector<64x32xf32> -> vector<64x224xf32>
    %101 = arith.truncf %100 : vector<64x224xf32> to vector<64x224xbf16>
    %c0_29 = arith.constant 0 : index
    %c0_30 = arith.constant 0 : index
    %102 = vector.load %arg3[%c0_29, %c0_30] : memref<32x224xbf16, #tpu.memory_space<vmem>>, vector<32x224xbf16>
    %cst_31 = arith.constant dense<0.000000e+00> : vector<64x32xf32>
    %103 = tpu.matmul %101, %102, %cst_31 {dimension_numbers = #tpu.dot_dimension_numbers<[1], [1], [0], [0], [0, 0, 1, 0], [], []>} : vector<64x224xbf16>, vector<32x224xbf16>, vector<64x32xf32> -> vector<64x32xf32>
    %104 = vector.broadcast %57 : vector<1x32xf32> to vector<64x32xf32>
    %105 = arith.addf %103, %104 : vector<64x32xf32>
    %cst_32 = arith.constant 0.000000e+00 : f32
    %106 = vector.broadcast %cst_32 : f32 to vector<64x32xf32>
    %107 = arith.maximumf %105, %106 : vector<64x32xf32>
    %108 = arith.truncf %1 : vector<64x32xf32> to vector<64x32xbf16>
    %c0_33 = arith.constant 0 : index
    %c0_34 = arith.constant 0 : index
    %c0_35 = arith.constant 0 : index
    %109 = vector.load %arg20[%c0_33, %c0_34, %c0_35] : memref<1x32x32xbf16, #tpu.memory_space<vmem>>, vector<1x32x32xbf16>
    %110 = vector.shape_cast %109 : vector<1x32x32xbf16> to vector<32x32xbf16>
    %cst_36 = arith.constant dense<0.000000e+00> : vector<64x32xf32>
    %111 = tpu.matmul %108, %110, %cst_36 {dimension_numbers = #tpu.dot_dimension_numbers<[1], [0], [0], [1], [0, 0, 1, 1], [], []>} : vector<64x32xbf16>, vector<32x32xbf16>, vector<64x32xf32> -> vector<64x32xf32>
    %c0_37 = arith.constant 0 : index
    %c0_38 = arith.constant 0 : index
    %c0_39 = arith.constant 0 : index
    %112 = vector.load %arg21[%c0_37, %c0_38, %c0_39] : memref<1x1x32xf32, #tpu.memory_space<vmem>>, vector<1x1x32xf32>
    %113 = vector.shape_cast %112 : vector<1x1x32xf32> to vector<1x32xf32>
    %114 = vector.broadcast %113 : vector<1x32xf32> to vector<64x32xf32>
    %115 = arith.addf %111, %114 : vector<64x32xf32>
    %116 = arith.addf %107, %115 : vector<64x32xf32>
    %cst_40 = arith.constant 0.000000e+00 : f32
    %117 = vector.broadcast %cst_40 : f32 to vector<64x32xf32>
    %118 = arith.maximumf %116, %117 : vector<64x32xf32>
    %c1 = arith.constant 1 : index
    %c0_41 = arith.constant 0 : index
    %c0_42 = arith.constant 0 : index
    %119 = vector.load %arg18[%c1, %c0_41, %c0_42] : memref<8x1x32xf32, #tpu.memory_space<vmem>>, vector<1x1x32xf32>
    %120 = vector.shape_cast %119 : vector<1x1x32xf32> to vector<1x32xf32>
    %121 = vector.extract_strided_slice %118 {offsets = [52, 0], sizes = [12, 32], strides = [1, 1]} : vector<64x32xf32> to vector<12x32xf32>
    %122 = vector.extract_strided_slice %118 {offsets = [0, 0], sizes = [52, 32], strides = [1, 1]} : vector<64x32xf32> to vector<52x32xf32>
    %123 = tpu.concatenate %121, %122 in 0 : vector<12x32xf32>, vector<52x32xf32> -> vector<64x32xf32>
    %c12_i32 = arith.constant 12 : i32
    %124 = vector.broadcast %c12_i32 : i32 to vector<64x32xi32>
    %125 = arith.cmpi sge, %3, %124 : vector<64x32xi32>
    %cst_43 = arith.constant 0.000000e+00 : f32
    %126 = vector.broadcast %cst_43 : f32 to vector<64x32xf32>
    %127 = arith.select %125, %123, %126 : vector<64x32xi1>, vector<64x32xf32>
    %128 = vector.extract_strided_slice %118 {offsets = [54, 0], sizes = [10, 32], strides = [1, 1]} : vector<64x32xf32> to vector<10x32xf32>
    %129 = vector.extract_strided_slice %118 {offsets = [0, 0], sizes = [54, 32], strides = [1, 1]} : vector<64x32xf32> to vector<54x32xf32>
    %130 = tpu.concatenate %128, %129 in 0 : vector<10x32xf32>, vector<54x32xf32> -> vector<64x32xf32>
    %c10_i32 = arith.constant 10 : i32
    %131 = vector.broadcast %c10_i32 : i32 to vector<64x32xi32>
    %132 = arith.cmpi sge, %3, %131 : vector<64x32xi32>
    %cst_44 = arith.constant 0.000000e+00 : f32
    %133 = vector.broadcast %cst_44 : f32 to vector<64x32xf32>
    %134 = arith.select %132, %130, %133 : vector<64x32xi1>, vector<64x32xf32>
    %135 = vector.extract_strided_slice %118 {offsets = [56, 0], sizes = [8, 32], strides = [1, 1]} : vector<64x32xf32> to vector<8x32xf32>
    %136 = vector.extract_strided_slice %118 {offsets = [0, 0], sizes = [56, 32], strides = [1, 1]} : vector<64x32xf32> to vector<56x32xf32>
    %137 = tpu.concatenate %135, %136 in 0 : vector<8x32xf32>, vector<56x32xf32> -> vector<64x32xf32>
    %c8_i32 = arith.constant 8 : i32
    %138 = vector.broadcast %c8_i32 : i32 to vector<64x32xi32>
    %139 = arith.cmpi sge, %3, %138 : vector<64x32xi32>
    %cst_45 = arith.constant 0.000000e+00 : f32
    %140 = vector.broadcast %cst_45 : f32 to vector<64x32xf32>
    %141 = arith.select %139, %137, %140 : vector<64x32xi1>, vector<64x32xf32>
    %142 = vector.extract_strided_slice %118 {offsets = [58, 0], sizes = [6, 32], strides = [1, 1]} : vector<64x32xf32> to vector<6x32xf32>
    %143 = vector.extract_strided_slice %118 {offsets = [0, 0], sizes = [58, 32], strides = [1, 1]} : vector<64x32xf32> to vector<58x32xf32>
    %144 = tpu.concatenate %142, %143 in 0 : vector<6x32xf32>, vector<58x32xf32> -> vector<64x32xf32>
    %c6_i32_46 = arith.constant 6 : i32
    %145 = vector.broadcast %c6_i32_46 : i32 to vector<64x32xi32>
    %146 = arith.cmpi sge, %3, %145 : vector<64x32xi32>
    %cst_47 = arith.constant 0.000000e+00 : f32
    %147 = vector.broadcast %cst_47 : f32 to vector<64x32xf32>
    %148 = arith.select %146, %144, %147 : vector<64x32xi1>, vector<64x32xf32>
    %149 = vector.extract_strided_slice %118 {offsets = [60, 0], sizes = [4, 32], strides = [1, 1]} : vector<64x32xf32> to vector<4x32xf32>
    %150 = vector.extract_strided_slice %118 {offsets = [0, 0], sizes = [60, 32], strides = [1, 1]} : vector<64x32xf32> to vector<60x32xf32>
    %151 = tpu.concatenate %149, %150 in 0 : vector<4x32xf32>, vector<60x32xf32> -> vector<64x32xf32>
    %c4_i32_48 = arith.constant 4 : i32
    %152 = vector.broadcast %c4_i32_48 : i32 to vector<64x32xi32>
    %153 = arith.cmpi sge, %3, %152 : vector<64x32xi32>
    %cst_49 = arith.constant 0.000000e+00 : f32
    %154 = vector.broadcast %cst_49 : f32 to vector<64x32xf32>
    %155 = arith.select %153, %151, %154 : vector<64x32xi1>, vector<64x32xf32>
    %156 = vector.extract_strided_slice %118 {offsets = [62, 0], sizes = [2, 32], strides = [1, 1]} : vector<64x32xf32> to vector<2x32xf32>
    %157 = vector.extract_strided_slice %118 {offsets = [0, 0], sizes = [62, 32], strides = [1, 1]} : vector<64x32xf32> to vector<62x32xf32>
    %158 = tpu.concatenate %156, %157 in 0 : vector<2x32xf32>, vector<62x32xf32> -> vector<64x32xf32>
    %c2_i32_50 = arith.constant 2 : i32
    %159 = vector.broadcast %c2_i32_50 : i32 to vector<64x32xi32>
    %160 = arith.cmpi sge, %3, %159 : vector<64x32xi32>
    %cst_51 = arith.constant 0.000000e+00 : f32
    %161 = vector.broadcast %cst_51 : f32 to vector<64x32xf32>
    %162 = arith.select %160, %158, %161 : vector<64x32xi1>, vector<64x32xf32>
    %163 = tpu.concatenate %127, %134, %141, %148, %155, %162, %118 in 1 : vector<64x32xf32>, vector<64x32xf32>, vector<64x32xf32>, vector<64x32xf32>, vector<64x32xf32>, vector<64x32xf32>, vector<64x32xf32> -> vector<64x224xf32>
    %164 = arith.truncf %163 : vector<64x224xf32> to vector<64x224xbf16>
    %c0_52 = arith.constant 0 : index
    %c0_53 = arith.constant 0 : index
    %165 = vector.load %arg4[%c0_52, %c0_53] : memref<32x224xbf16, #tpu.memory_space<vmem>>, vector<32x224xbf16>
    %cst_54 = arith.constant dense<0.000000e+00> : vector<64x32xf32>
    %166 = tpu.matmul %164, %165, %cst_54 {dimension_numbers = #tpu.dot_dimension_numbers<[1], [1], [0], [0], [0, 0, 1, 0], [], []>} : vector<64x224xbf16>, vector<32x224xbf16>, vector<64x32xf32> -> vector<64x32xf32>
    %167 = vector.broadcast %120 : vector<1x32xf32> to vector<64x32xf32>
    %168 = arith.addf %166, %167 : vector<64x32xf32>
    %cst_55 = arith.constant 0.000000e+00 : f32
    %169 = vector.broadcast %cst_55 : f32 to vector<64x32xf32>
    %170 = arith.maximumf %168, %169 : vector<64x32xf32>
    %c1_56 = arith.constant 1 : index
    %c0_57 = arith.constant 0 : index
    %c0_58 = arith.constant 0 : index
    %171 = vector.load %arg19[%c1_56, %c0_57, %c0_58] : memref<8x1x32xf32, #tpu.memory_space<vmem>>, vector<1x1x32xf32>
    %172 = vector.shape_cast %171 : vector<1x1x32xf32> to vector<1x32xf32>
    %173 = vector.extract_strided_slice %170 {offsets = [52, 0], sizes = [12, 32], strides = [1, 1]} : vector<64x32xf32> to vector<12x32xf32>
    %174 = vector.extract_strided_slice %170 {offsets = [0, 0], sizes = [52, 32], strides = [1, 1]} : vector<64x32xf32> to vector<52x32xf32>
    %175 = tpu.concatenate %173, %174 in 0 : vector<12x32xf32>, vector<52x32xf32> -> vector<64x32xf32>
    %c12_i32_59 = arith.constant 12 : i32
    %176 = vector.broadcast %c12_i32_59 : i32 to vector<64x32xi32>
    %177 = arith.cmpi sge, %3, %176 : vector<64x32xi32>
    %cst_60 = arith.constant 0.000000e+00 : f32
    %178 = vector.broadcast %cst_60 : f32 to vector<64x32xf32>
    %179 = arith.select %177, %175, %178 : vector<64x32xi1>, vector<64x32xf32>
    %180 = vector.extract_strided_slice %170 {offsets = [54, 0], sizes = [10, 32], strides = [1, 1]} : vector<64x32xf32> to vector<10x32xf32>
    %181 = vector.extract_strided_slice %170 {offsets = [0, 0], sizes = [54, 32], strides = [1, 1]} : vector<64x32xf32> to vector<54x32xf32>
    %182 = tpu.concatenate %180, %181 in 0 : vector<10x32xf32>, vector<54x32xf32> -> vector<64x32xf32>
    %c10_i32_61 = arith.constant 10 : i32
    %183 = vector.broadcast %c10_i32_61 : i32 to vector<64x32xi32>
    %184 = arith.cmpi sge, %3, %183 : vector<64x32xi32>
    %cst_62 = arith.constant 0.000000e+00 : f32
    %185 = vector.broadcast %cst_62 : f32 to vector<64x32xf32>
    %186 = arith.select %184, %182, %185 : vector<64x32xi1>, vector<64x32xf32>
    %187 = vector.extract_strided_slice %170 {offsets = [56, 0], sizes = [8, 32], strides = [1, 1]} : vector<64x32xf32> to vector<8x32xf32>
    %188 = vector.extract_strided_slice %170 {offsets = [0, 0], sizes = [56, 32], strides = [1, 1]} : vector<64x32xf32> to vector<56x32xf32>
    %189 = tpu.concatenate %187, %188 in 0 : vector<8x32xf32>, vector<56x32xf32> -> vector<64x32xf32>
    %c8_i32_63 = arith.constant 8 : i32
    %190 = vector.broadcast %c8_i32_63 : i32 to vector<64x32xi32>
    %191 = arith.cmpi sge, %3, %190 : vector<64x32xi32>
    %cst_64 = arith.constant 0.000000e+00 : f32
    %192 = vector.broadcast %cst_64 : f32 to vector<64x32xf32>
    %193 = arith.select %191, %189, %192 : vector<64x32xi1>, vector<64x32xf32>
    %194 = vector.extract_strided_slice %170 {offsets = [58, 0], sizes = [6, 32], strides = [1, 1]} : vector<64x32xf32> to vector<6x32xf32>
    %195 = vector.extract_strided_slice %170 {offsets = [0, 0], sizes = [58, 32], strides = [1, 1]} : vector<64x32xf32> to vector<58x32xf32>
    %196 = tpu.concatenate %194, %195 in 0 : vector<6x32xf32>, vector<58x32xf32> -> vector<64x32xf32>
    %c6_i32_65 = arith.constant 6 : i32
    %197 = vector.broadcast %c6_i32_65 : i32 to vector<64x32xi32>
    %198 = arith.cmpi sge, %3, %197 : vector<64x32xi32>
    %cst_66 = arith.constant 0.000000e+00 : f32
    %199 = vector.broadcast %cst_66 : f32 to vector<64x32xf32>
    %200 = arith.select %198, %196, %199 : vector<64x32xi1>, vector<64x32xf32>
    %201 = vector.extract_strided_slice %170 {offsets = [60, 0], sizes = [4, 32], strides = [1, 1]} : vector<64x32xf32> to vector<4x32xf32>
    %202 = vector.extract_strided_slice %170 {offsets = [0, 0], sizes = [60, 32], strides = [1, 1]} : vector<64x32xf32> to vector<60x32xf32>
    %203 = tpu.concatenate %201, %202 in 0 : vector<4x32xf32>, vector<60x32xf32> -> vector<64x32xf32>
    %c4_i32_67 = arith.constant 4 : i32
    %204 = vector.broadcast %c4_i32_67 : i32 to vector<64x32xi32>
    %205 = arith.cmpi sge, %3, %204 : vector<64x32xi32>
    %cst_68 = arith.constant 0.000000e+00 : f32
    %206 = vector.broadcast %cst_68 : f32 to vector<64x32xf32>
    %207 = arith.select %205, %203, %206 : vector<64x32xi1>, vector<64x32xf32>
    %208 = vector.extract_strided_slice %170 {offsets = [62, 0], sizes = [2, 32], strides = [1, 1]} : vector<64x32xf32> to vector<2x32xf32>
    %209 = vector.extract_strided_slice %170 {offsets = [0, 0], sizes = [62, 32], strides = [1, 1]} : vector<64x32xf32> to vector<62x32xf32>
    %210 = tpu.concatenate %208, %209 in 0 : vector<2x32xf32>, vector<62x32xf32> -> vector<64x32xf32>
    %c2_i32_69 = arith.constant 2 : i32
    %211 = vector.broadcast %c2_i32_69 : i32 to vector<64x32xi32>
    %212 = arith.cmpi sge, %3, %211 : vector<64x32xi32>
    %cst_70 = arith.constant 0.000000e+00 : f32
    %213 = vector.broadcast %cst_70 : f32 to vector<64x32xf32>
    %214 = arith.select %212, %210, %213 : vector<64x32xi1>, vector<64x32xf32>
    %215 = tpu.concatenate %179, %186, %193, %200, %207, %214, %170 in 1 : vector<64x32xf32>, vector<64x32xf32>, vector<64x32xf32>, vector<64x32xf32>, vector<64x32xf32>, vector<64x32xf32>, vector<64x32xf32> -> vector<64x224xf32>
    %216 = arith.truncf %215 : vector<64x224xf32> to vector<64x224xbf16>
    %c0_71 = arith.constant 0 : index
    %c0_72 = arith.constant 0 : index
    %217 = vector.load %arg5[%c0_71, %c0_72] : memref<32x224xbf16, #tpu.memory_space<vmem>>, vector<32x224xbf16>
    %cst_73 = arith.constant dense<0.000000e+00> : vector<64x32xf32>
    %218 = tpu.matmul %216, %217, %cst_73 {dimension_numbers = #tpu.dot_dimension_numbers<[1], [1], [0], [0], [0, 0, 1, 0], [], []>} : vector<64x224xbf16>, vector<32x224xbf16>, vector<64x32xf32> -> vector<64x32xf32>
    %219 = vector.broadcast %172 : vector<1x32xf32> to vector<64x32xf32>
    %220 = arith.addf %218, %219 : vector<64x32xf32>
    %cst_74 = arith.constant 0.000000e+00 : f32
    %221 = vector.broadcast %cst_74 : f32 to vector<64x32xf32>
    %222 = arith.maximumf %220, %221 : vector<64x32xf32>
    %223 = arith.addf %222, %118 : vector<64x32xf32>
    %cst_75 = arith.constant 0.000000e+00 : f32
    %224 = vector.broadcast %cst_75 : f32 to vector<64x32xf32>
    %225 = arith.maximumf %223, %224 : vector<64x32xf32>
    %c2 = arith.constant 2 : index
    %c0_76 = arith.constant 0 : index
    %c0_77 = arith.constant 0 : index
    %226 = vector.load %arg18[%c2, %c0_76, %c0_77] : memref<8x1x32xf32, #tpu.memory_space<vmem>>, vector<1x1x32xf32>
    %227 = vector.shape_cast %226 : vector<1x1x32xf32> to vector<1x32xf32>
    %228 = vector.extract_strided_slice %225 {offsets = [40, 0], sizes = [24, 32], strides = [1, 1]} : vector<64x32xf32> to vector<24x32xf32>
    %229 = vector.extract_strided_slice %225 {offsets = [0, 0], sizes = [40, 32], strides = [1, 1]} : vector<64x32xf32> to vector<40x32xf32>
    %230 = tpu.concatenate %228, %229 in 0 : vector<24x32xf32>, vector<40x32xf32> -> vector<64x32xf32>
    %c24_i32 = arith.constant 24 : i32
    %231 = vector.broadcast %c24_i32 : i32 to vector<64x32xi32>
    %232 = arith.cmpi sge, %3, %231 : vector<64x32xi32>
    %cst_78 = arith.constant 0.000000e+00 : f32
    %233 = vector.broadcast %cst_78 : f32 to vector<64x32xf32>
    %234 = arith.select %232, %230, %233 : vector<64x32xi1>, vector<64x32xf32>
    %235 = vector.extract_strided_slice %225 {offsets = [44, 0], sizes = [20, 32], strides = [1, 1]} : vector<64x32xf32> to vector<20x32xf32>
    %236 = vector.extract_strided_slice %225 {offsets = [0, 0], sizes = [44, 32], strides = [1, 1]} : vector<64x32xf32> to vector<44x32xf32>
    %237 = tpu.concatenate %235, %236 in 0 : vector<20x32xf32>, vector<44x32xf32> -> vector<64x32xf32>
    %c20_i32 = arith.constant 20 : i32
    %238 = vector.broadcast %c20_i32 : i32 to vector<64x32xi32>
    %239 = arith.cmpi sge, %3, %238 : vector<64x32xi32>
    %cst_79 = arith.constant 0.000000e+00 : f32
    %240 = vector.broadcast %cst_79 : f32 to vector<64x32xf32>
    %241 = arith.select %239, %237, %240 : vector<64x32xi1>, vector<64x32xf32>
    %242 = vector.extract_strided_slice %225 {offsets = [48, 0], sizes = [16, 32], strides = [1, 1]} : vector<64x32xf32> to vector<16x32xf32>
    %243 = vector.extract_strided_slice %225 {offsets = [0, 0], sizes = [48, 32], strides = [1, 1]} : vector<64x32xf32> to vector<48x32xf32>
    %244 = tpu.concatenate %242, %243 in 0 : vector<16x32xf32>, vector<48x32xf32> -> vector<64x32xf32>
    %c16_i32 = arith.constant 16 : i32
    %245 = vector.broadcast %c16_i32 : i32 to vector<64x32xi32>
    %246 = arith.cmpi sge, %3, %245 : vector<64x32xi32>
    %cst_80 = arith.constant 0.000000e+00 : f32
    %247 = vector.broadcast %cst_80 : f32 to vector<64x32xf32>
    %248 = arith.select %246, %244, %247 : vector<64x32xi1>, vector<64x32xf32>
    %249 = vector.extract_strided_slice %225 {offsets = [52, 0], sizes = [12, 32], strides = [1, 1]} : vector<64x32xf32> to vector<12x32xf32>
    %250 = vector.extract_strided_slice %225 {offsets = [0, 0], sizes = [52, 32], strides = [1, 1]} : vector<64x32xf32> to vector<52x32xf32>
    %251 = tpu.concatenate %249, %250 in 0 : vector<12x32xf32>, vector<52x32xf32> -> vector<64x32xf32>
    %c12_i32_81 = arith.constant 12 : i32
    %252 = vector.broadcast %c12_i32_81 : i32 to vector<64x32xi32>
    %253 = arith.cmpi sge, %3, %252 : vector<64x32xi32>
    %cst_82 = arith.constant 0.000000e+00 : f32
    %254 = vector.broadcast %cst_82 : f32 to vector<64x32xf32>
    %255 = arith.select %253, %251, %254 : vector<64x32xi1>, vector<64x32xf32>
    %256 = vector.extract_strided_slice %225 {offsets = [56, 0], sizes = [8, 32], strides = [1, 1]} : vector<64x32xf32> to vector<8x32xf32>
    %257 = vector.extract_strided_slice %225 {offsets = [0, 0], sizes = [56, 32], strides = [1, 1]} : vector<64x32xf32> to vector<56x32xf32>
    %258 = tpu.concatenate %256, %257 in 0 : vector<8x32xf32>, vector<56x32xf32> -> vector<64x32xf32>
    %c8_i32_83 = arith.constant 8 : i32
    %259 = vector.broadcast %c8_i32_83 : i32 to vector<64x32xi32>
    %260 = arith.cmpi sge, %3, %259 : vector<64x32xi32>
    %cst_84 = arith.constant 0.000000e+00 : f32
    %261 = vector.broadcast %cst_84 : f32 to vector<64x32xf32>
    %262 = arith.select %260, %258, %261 : vector<64x32xi1>, vector<64x32xf32>
    %263 = vector.extract_strided_slice %225 {offsets = [60, 0], sizes = [4, 32], strides = [1, 1]} : vector<64x32xf32> to vector<4x32xf32>
    %264 = vector.extract_strided_slice %225 {offsets = [0, 0], sizes = [60, 32], strides = [1, 1]} : vector<64x32xf32> to vector<60x32xf32>
    %265 = tpu.concatenate %263, %264 in 0 : vector<4x32xf32>, vector<60x32xf32> -> vector<64x32xf32>
    %c4_i32_85 = arith.constant 4 : i32
    %266 = vector.broadcast %c4_i32_85 : i32 to vector<64x32xi32>
    %267 = arith.cmpi sge, %3, %266 : vector<64x32xi32>
    %cst_86 = arith.constant 0.000000e+00 : f32
    %268 = vector.broadcast %cst_86 : f32 to vector<64x32xf32>
    %269 = arith.select %267, %265, %268 : vector<64x32xi1>, vector<64x32xf32>
    %270 = tpu.concatenate %234, %241, %248, %255, %262, %269, %225 in 1 : vector<64x32xf32>, vector<64x32xf32>, vector<64x32xf32>, vector<64x32xf32>, vector<64x32xf32>, vector<64x32xf32>, vector<64x32xf32> -> vector<64x224xf32>
    %271 = arith.truncf %270 : vector<64x224xf32> to vector<64x224xbf16>
    %c0_87 = arith.constant 0 : index
    %c0_88 = arith.constant 0 : index
    %272 = vector.load %arg6[%c0_87, %c0_88] : memref<32x224xbf16, #tpu.memory_space<vmem>>, vector<32x224xbf16>
    %cst_89 = arith.constant dense<0.000000e+00> : vector<64x32xf32>
    %273 = tpu.matmul %271, %272, %cst_89 {dimension_numbers = #tpu.dot_dimension_numbers<[1], [1], [0], [0], [0, 0, 1, 0], [], []>} : vector<64x224xbf16>, vector<32x224xbf16>, vector<64x32xf32> -> vector<64x32xf32>
    %274 = vector.broadcast %227 : vector<1x32xf32> to vector<64x32xf32>
    %275 = arith.addf %273, %274 : vector<64x32xf32>
    %cst_90 = arith.constant 0.000000e+00 : f32
    %276 = vector.broadcast %cst_90 : f32 to vector<64x32xf32>
    %277 = arith.maximumf %275, %276 : vector<64x32xf32>
    %c2_91 = arith.constant 2 : index
    %c0_92 = arith.constant 0 : index
    %c0_93 = arith.constant 0 : index
    %278 = vector.load %arg19[%c2_91, %c0_92, %c0_93] : memref<8x1x32xf32, #tpu.memory_space<vmem>>, vector<1x1x32xf32>
    %279 = vector.shape_cast %278 : vector<1x1x32xf32> to vector<1x32xf32>
    %280 = vector.extract_strided_slice %277 {offsets = [40, 0], sizes = [24, 32], strides = [1, 1]} : vector<64x32xf32> to vector<24x32xf32>
    %281 = vector.extract_strided_slice %277 {offsets = [0, 0], sizes = [40, 32], strides = [1, 1]} : vector<64x32xf32> to vector<40x32xf32>
    %282 = tpu.concatenate %280, %281 in 0 : vector<24x32xf32>, vector<40x32xf32> -> vector<64x32xf32>
    %c24_i32_94 = arith.constant 24 : i32
    %283 = vector.broadcast %c24_i32_94 : i32 to vector<64x32xi32>
    %284 = arith.cmpi sge, %3, %283 : vector<64x32xi32>
    %cst_95 = arith.constant 0.000000e+00 : f32
    %285 = vector.broadcast %cst_95 : f32 to vector<64x32xf32>
    %286 = arith.select %284, %282, %285 : vector<64x32xi1>, vector<64x32xf32>
    %287 = vector.extract_strided_slice %277 {offsets = [44, 0], sizes = [20, 32], strides = [1, 1]} : vector<64x32xf32> to vector<20x32xf32>
    %288 = vector.extract_strided_slice %277 {offsets = [0, 0], sizes = [44, 32], strides = [1, 1]} : vector<64x32xf32> to vector<44x32xf32>
    %289 = tpu.concatenate %287, %288 in 0 : vector<20x32xf32>, vector<44x32xf32> -> vector<64x32xf32>
    %c20_i32_96 = arith.constant 20 : i32
    %290 = vector.broadcast %c20_i32_96 : i32 to vector<64x32xi32>
    %291 = arith.cmpi sge, %3, %290 : vector<64x32xi32>
    %cst_97 = arith.constant 0.000000e+00 : f32
    %292 = vector.broadcast %cst_97 : f32 to vector<64x32xf32>
    %293 = arith.select %291, %289, %292 : vector<64x32xi1>, vector<64x32xf32>
    %294 = vector.extract_strided_slice %277 {offsets = [48, 0], sizes = [16, 32], strides = [1, 1]} : vector<64x32xf32> to vector<16x32xf32>
    %295 = vector.extract_strided_slice %277 {offsets = [0, 0], sizes = [48, 32], strides = [1, 1]} : vector<64x32xf32> to vector<48x32xf32>
    %296 = tpu.concatenate %294, %295 in 0 : vector<16x32xf32>, vector<48x32xf32> -> vector<64x32xf32>
    %c16_i32_98 = arith.constant 16 : i32
    %297 = vector.broadcast %c16_i32_98 : i32 to vector<64x32xi32>
    %298 = arith.cmpi sge, %3, %297 : vector<64x32xi32>
    %cst_99 = arith.constant 0.000000e+00 : f32
    %299 = vector.broadcast %cst_99 : f32 to vector<64x32xf32>
    %300 = arith.select %298, %296, %299 : vector<64x32xi1>, vector<64x32xf32>
    %301 = vector.extract_strided_slice %277 {offsets = [52, 0], sizes = [12, 32], strides = [1, 1]} : vector<64x32xf32> to vector<12x32xf32>
    %302 = vector.extract_strided_slice %277 {offsets = [0, 0], sizes = [52, 32], strides = [1, 1]} : vector<64x32xf32> to vector<52x32xf32>
    %303 = tpu.concatenate %301, %302 in 0 : vector<12x32xf32>, vector<52x32xf32> -> vector<64x32xf32>
    %c12_i32_100 = arith.constant 12 : i32
    %304 = vector.broadcast %c12_i32_100 : i32 to vector<64x32xi32>
    %305 = arith.cmpi sge, %3, %304 : vector<64x32xi32>
    %cst_101 = arith.constant 0.000000e+00 : f32
    %306 = vector.broadcast %cst_101 : f32 to vector<64x32xf32>
    %307 = arith.select %305, %303, %306 : vector<64x32xi1>, vector<64x32xf32>
    %308 = vector.extract_strided_slice %277 {offsets = [56, 0], sizes = [8, 32], strides = [1, 1]} : vector<64x32xf32> to vector<8x32xf32>
    %309 = vector.extract_strided_slice %277 {offsets = [0, 0], sizes = [56, 32], strides = [1, 1]} : vector<64x32xf32> to vector<56x32xf32>
    %310 = tpu.concatenate %308, %309 in 0 : vector<8x32xf32>, vector<56x32xf32> -> vector<64x32xf32>
    %c8_i32_102 = arith.constant 8 : i32
    %311 = vector.broadcast %c8_i32_102 : i32 to vector<64x32xi32>
    %312 = arith.cmpi sge, %3, %311 : vector<64x32xi32>
    %cst_103 = arith.constant 0.000000e+00 : f32
    %313 = vector.broadcast %cst_103 : f32 to vector<64x32xf32>
    %314 = arith.select %312, %310, %313 : vector<64x32xi1>, vector<64x32xf32>
    %315 = vector.extract_strided_slice %277 {offsets = [60, 0], sizes = [4, 32], strides = [1, 1]} : vector<64x32xf32> to vector<4x32xf32>
    %316 = vector.extract_strided_slice %277 {offsets = [0, 0], sizes = [60, 32], strides = [1, 1]} : vector<64x32xf32> to vector<60x32xf32>
    %317 = tpu.concatenate %315, %316 in 0 : vector<4x32xf32>, vector<60x32xf32> -> vector<64x32xf32>
    %c4_i32_104 = arith.constant 4 : i32
    %318 = vector.broadcast %c4_i32_104 : i32 to vector<64x32xi32>
    %319 = arith.cmpi sge, %3, %318 : vector<64x32xi32>
    %cst_105 = arith.constant 0.000000e+00 : f32
    %320 = vector.broadcast %cst_105 : f32 to vector<64x32xf32>
    %321 = arith.select %319, %317, %320 : vector<64x32xi1>, vector<64x32xf32>
    %322 = tpu.concatenate %286, %293, %300, %307, %314, %321, %277 in 1 : vector<64x32xf32>, vector<64x32xf32>, vector<64x32xf32>, vector<64x32xf32>, vector<64x32xf32>, vector<64x32xf32>, vector<64x32xf32> -> vector<64x224xf32>
    %323 = arith.truncf %322 : vector<64x224xf32> to vector<64x224xbf16>
    %c0_106 = arith.constant 0 : index
    %c0_107 = arith.constant 0 : index
    %324 = vector.load %arg7[%c0_106, %c0_107] : memref<32x224xbf16, #tpu.memory_space<vmem>>, vector<32x224xbf16>
    %cst_108 = arith.constant dense<0.000000e+00> : vector<64x32xf32>
    %325 = tpu.matmul %323, %324, %cst_108 {dimension_numbers = #tpu.dot_dimension_numbers<[1], [1], [0], [0], [0, 0, 1, 0], [], []>} : vector<64x224xbf16>, vector<32x224xbf16>, vector<64x32xf32> -> vector<64x32xf32>
    %326 = vector.broadcast %279 : vector<1x32xf32> to vector<64x32xf32>
    %327 = arith.addf %325, %326 : vector<64x32xf32>
    %cst_109 = arith.constant 0.000000e+00 : f32
    %328 = vector.broadcast %cst_109 : f32 to vector<64x32xf32>
    %329 = arith.maximumf %327, %328 : vector<64x32xf32>
    %330 = arith.addf %329, %225 : vector<64x32xf32>
    %cst_110 = arith.constant 0.000000e+00 : f32
    %331 = vector.broadcast %cst_110 : f32 to vector<64x32xf32>
    %332 = arith.maximumf %330, %331 : vector<64x32xf32>
    %c3 = arith.constant 3 : index
    %c0_111 = arith.constant 0 : index
    %c0_112 = arith.constant 0 : index
    %333 = vector.load %arg18[%c3, %c0_111, %c0_112] : memref<8x1x32xf32, #tpu.memory_space<vmem>>, vector<1x1x32xf32>
    %334 = vector.shape_cast %333 : vector<1x1x32xf32> to vector<1x32xf32>
    %335 = vector.extract_strided_slice %332 {offsets = [40, 0], sizes = [24, 32], strides = [1, 1]} : vector<64x32xf32> to vector<24x32xf32>
    %336 = vector.extract_strided_slice %332 {offsets = [0, 0], sizes = [40, 32], strides = [1, 1]} : vector<64x32xf32> to vector<40x32xf32>
    %337 = tpu.concatenate %335, %336 in 0 : vector<24x32xf32>, vector<40x32xf32> -> vector<64x32xf32>
    %c24_i32_113 = arith.constant 24 : i32
    %338 = vector.broadcast %c24_i32_113 : i32 to vector<64x32xi32>
    %339 = arith.cmpi sge, %3, %338 : vector<64x32xi32>
    %cst_114 = arith.constant 0.000000e+00 : f32
    %340 = vector.broadcast %cst_114 : f32 to vector<64x32xf32>
    %341 = arith.select %339, %337, %340 : vector<64x32xi1>, vector<64x32xf32>
    %342 = vector.extract_strided_slice %332 {offsets = [48, 0], sizes = [16, 32], strides = [1, 1]} : vector<64x32xf32> to vector<16x32xf32>
    %343 = vector.extract_strided_slice %332 {offsets = [0, 0], sizes = [48, 32], strides = [1, 1]} : vector<64x32xf32> to vector<48x32xf32>
    %344 = tpu.concatenate %342, %343 in 0 : vector<16x32xf32>, vector<48x32xf32> -> vector<64x32xf32>
    %c16_i32_115 = arith.constant 16 : i32
    %345 = vector.broadcast %c16_i32_115 : i32 to vector<64x32xi32>
    %346 = arith.cmpi sge, %3, %345 : vector<64x32xi32>
    %cst_116 = arith.constant 0.000000e+00 : f32
    %347 = vector.broadcast %cst_116 : f32 to vector<64x32xf32>
    %348 = arith.select %346, %344, %347 : vector<64x32xi1>, vector<64x32xf32>
    %349 = vector.extract_strided_slice %332 {offsets = [56, 0], sizes = [8, 32], strides = [1, 1]} : vector<64x32xf32> to vector<8x32xf32>
    %350 = vector.extract_strided_slice %332 {offsets = [0, 0], sizes = [56, 32], strides = [1, 1]} : vector<64x32xf32> to vector<56x32xf32>
    %351 = tpu.concatenate %349, %350 in 0 : vector<8x32xf32>, vector<56x32xf32> -> vector<64x32xf32>
    %c8_i32_117 = arith.constant 8 : i32
    %352 = vector.broadcast %c8_i32_117 : i32 to vector<64x32xi32>
    %353 = arith.cmpi sge, %3, %352 : vector<64x32xi32>
    %cst_118 = arith.constant 0.000000e+00 : f32
    %354 = vector.broadcast %cst_118 : f32 to vector<64x32xf32>
    %355 = arith.select %353, %351, %354 : vector<64x32xi1>, vector<64x32xf32>
    %356 = tpu.concatenate %341, %348, %355, %332 in 1 : vector<64x32xf32>, vector<64x32xf32>, vector<64x32xf32>, vector<64x32xf32> -> vector<64x128xf32>
    %357 = arith.truncf %356 : vector<64x128xf32> to vector<64x128xbf16>
    %c0_119 = arith.constant 0 : index
    %c0_120 = arith.constant 0 : index
    %358 = vector.load %arg8[%c0_119, %c0_120] : memref<32x128xbf16, #tpu.memory_space<vmem>>, vector<32x128xbf16>
    %cst_121 = arith.constant dense<0.000000e+00> : vector<64x32xf32>
    %359 = tpu.matmul %357, %358, %cst_121 {dimension_numbers = #tpu.dot_dimension_numbers<[1], [1], [0], [0], [0, 0, 1, 0], [], []>} : vector<64x128xbf16>, vector<32x128xbf16>, vector<64x32xf32> -> vector<64x32xf32>
    %360 = vector.broadcast %334 : vector<1x32xf32> to vector<64x32xf32>
    %361 = arith.addf %359, %360 : vector<64x32xf32>
    %cst_122 = arith.constant 0.000000e+00 : f32
    %362 = vector.broadcast %cst_122 : f32 to vector<64x32xf32>
    %363 = arith.maximumf %361, %362 : vector<64x32xf32>
    %c3_123 = arith.constant 3 : index
    %c0_124 = arith.constant 0 : index
    %c0_125 = arith.constant 0 : index
    %364 = vector.load %arg19[%c3_123, %c0_124, %c0_125] : memref<8x1x32xf32, #tpu.memory_space<vmem>>, vector<1x1x32xf32>
    %365 = vector.shape_cast %364 : vector<1x1x32xf32> to vector<1x32xf32>
    %366 = vector.extract_strided_slice %363 {offsets = [40, 0], sizes = [24, 32], strides = [1, 1]} : vector<64x32xf32> to vector<24x32xf32>
    %367 = vector.extract_strided_slice %363 {offsets = [0, 0], sizes = [40, 32], strides = [1, 1]} : vector<64x32xf32> to vector<40x32xf32>
    %368 = tpu.concatenate %366, %367 in 0 : vector<24x32xf32>, vector<40x32xf32> -> vector<64x32xf32>
    %c24_i32_126 = arith.constant 24 : i32
    %369 = vector.broadcast %c24_i32_126 : i32 to vector<64x32xi32>
    %370 = arith.cmpi sge, %3, %369 : vector<64x32xi32>
    %cst_127 = arith.constant 0.000000e+00 : f32
    %371 = vector.broadcast %cst_127 : f32 to vector<64x32xf32>
    %372 = arith.select %370, %368, %371 : vector<64x32xi1>, vector<64x32xf32>
    %373 = vector.extract_strided_slice %363 {offsets = [48, 0], sizes = [16, 32], strides = [1, 1]} : vector<64x32xf32> to vector<16x32xf32>
    %374 = vector.extract_strided_slice %363 {offsets = [0, 0], sizes = [48, 32], strides = [1, 1]} : vector<64x32xf32> to vector<48x32xf32>
    %375 = tpu.concatenate %373, %374 in 0 : vector<16x32xf32>, vector<48x32xf32> -> vector<64x32xf32>
    %c16_i32_128 = arith.constant 16 : i32
    %376 = vector.broadcast %c16_i32_128 : i32 to vector<64x32xi32>
    %377 = arith.cmpi sge, %3, %376 : vector<64x32xi32>
    %cst_129 = arith.constant 0.000000e+00 : f32
    %378 = vector.broadcast %cst_129 : f32 to vector<64x32xf32>
    %379 = arith.select %377, %375, %378 : vector<64x32xi1>, vector<64x32xf32>
    %380 = vector.extract_strided_slice %363 {offsets = [56, 0], sizes = [8, 32], strides = [1, 1]} : vector<64x32xf32> to vector<8x32xf32>
    %381 = vector.extract_strided_slice %363 {offsets = [0, 0], sizes = [56, 32], strides = [1, 1]} : vector<64x32xf32> to vector<56x32xf32>
    %382 = tpu.concatenate %380, %381 in 0 : vector<8x32xf32>, vector<56x32xf32> -> vector<64x32xf32>
    %c8_i32_130 = arith.constant 8 : i32
    %383 = vector.broadcast %c8_i32_130 : i32 to vector<64x32xi32>
    %384 = arith.cmpi sge, %3, %383 : vector<64x32xi32>
    %cst_131 = arith.constant 0.000000e+00 : f32
    %385 = vector.broadcast %cst_131 : f32 to vector<64x32xf32>
    %386 = arith.select %384, %382, %385 : vector<64x32xi1>, vector<64x32xf32>
    %387 = tpu.concatenate %372, %379, %386, %363 in 1 : vector<64x32xf32>, vector<64x32xf32>, vector<64x32xf32>, vector<64x32xf32> -> vector<64x128xf32>
    %388 = arith.truncf %387 : vector<64x128xf32> to vector<64x128xbf16>
    %c0_132 = arith.constant 0 : index
    %c0_133 = arith.constant 0 : index
    %389 = vector.load %arg9[%c0_132, %c0_133] : memref<32x128xbf16, #tpu.memory_space<vmem>>, vector<32x128xbf16>
    %cst_134 = arith.constant dense<0.000000e+00> : vector<64x32xf32>
    %390 = tpu.matmul %388, %389, %cst_134 {dimension_numbers = #tpu.dot_dimension_numbers<[1], [1], [0], [0], [0, 0, 1, 0], [], []>} : vector<64x128xbf16>, vector<32x128xbf16>, vector<64x32xf32> -> vector<64x32xf32>
    %391 = vector.broadcast %365 : vector<1x32xf32> to vector<64x32xf32>
    %392 = arith.addf %390, %391 : vector<64x32xf32>
    %cst_135 = arith.constant 0.000000e+00 : f32
    %393 = vector.broadcast %cst_135 : f32 to vector<64x32xf32>
    %394 = arith.maximumf %392, %393 : vector<64x32xf32>
    %395 = arith.addf %394, %332 : vector<64x32xf32>
    %cst_136 = arith.constant 0.000000e+00 : f32
    %396 = vector.broadcast %cst_136 : f32 to vector<64x32xf32>
    %397 = arith.maximumf %395, %396 : vector<64x32xf32>
    %c4 = arith.constant 4 : index
    %c0_137 = arith.constant 0 : index
    %c0_138 = arith.constant 0 : index
    %398 = vector.load %arg18[%c4, %c0_137, %c0_138] : memref<8x1x32xf32, #tpu.memory_space<vmem>>, vector<1x1x32xf32>
    %399 = vector.shape_cast %398 : vector<1x1x32xf32> to vector<1x32xf32>
    %400 = vector.extract_strided_slice %397 {offsets = [48, 0], sizes = [16, 32], strides = [1, 1]} : vector<64x32xf32> to vector<16x32xf32>
    %401 = vector.extract_strided_slice %397 {offsets = [0, 0], sizes = [48, 32], strides = [1, 1]} : vector<64x32xf32> to vector<48x32xf32>
    %402 = tpu.concatenate %400, %401 in 0 : vector<16x32xf32>, vector<48x32xf32> -> vector<64x32xf32>
    %c16_i32_139 = arith.constant 16 : i32
    %403 = vector.broadcast %c16_i32_139 : i32 to vector<64x32xi32>
    %404 = arith.cmpi sge, %3, %403 : vector<64x32xi32>
    %cst_140 = arith.constant 0.000000e+00 : f32
    %405 = vector.broadcast %cst_140 : f32 to vector<64x32xf32>
    %406 = arith.select %404, %402, %405 : vector<64x32xi1>, vector<64x32xf32>
    %407 = tpu.concatenate %406, %397 in 1 : vector<64x32xf32>, vector<64x32xf32> -> vector<64x64xf32>
    %408 = arith.truncf %407 : vector<64x64xf32> to vector<64x64xbf16>
    %c0_141 = arith.constant 0 : index
    %c0_142 = arith.constant 0 : index
    %409 = vector.load %arg10[%c0_141, %c0_142] : memref<32x64xbf16, #tpu.memory_space<vmem>>, vector<32x64xbf16>
    %cst_143 = arith.constant dense<0.000000e+00> : vector<64x32xf32>
    %410 = tpu.matmul %408, %409, %cst_143 {dimension_numbers = #tpu.dot_dimension_numbers<[1], [1], [0], [0], [0, 0, 1, 0], [], []>} : vector<64x64xbf16>, vector<32x64xbf16>, vector<64x32xf32> -> vector<64x32xf32>
    %411 = vector.broadcast %399 : vector<1x32xf32> to vector<64x32xf32>
    %412 = arith.addf %410, %411 : vector<64x32xf32>
    %cst_144 = arith.constant 0.000000e+00 : f32
    %413 = vector.broadcast %cst_144 : f32 to vector<64x32xf32>
    %414 = arith.maximumf %412, %413 : vector<64x32xf32>
    %c4_145 = arith.constant 4 : index
    %c0_146 = arith.constant 0 : index
    %c0_147 = arith.constant 0 : index
    %415 = vector.load %arg19[%c4_145, %c0_146, %c0_147] : memref<8x1x32xf32, #tpu.memory_space<vmem>>, vector<1x1x32xf32>
    %416 = vector.shape_cast %415 : vector<1x1x32xf32> to vector<1x32xf32>
    %417 = vector.extract_strided_slice %414 {offsets = [48, 0], sizes = [16, 32], strides = [1, 1]} : vector<64x32xf32> to vector<16x32xf32>
    %418 = vector.extract_strided_slice %414 {offsets = [0, 0], sizes = [48, 32], strides = [1, 1]} : vector<64x32xf32> to vector<48x32xf32>
    %419 = tpu.concatenate %417, %418 in 0 : vector<16x32xf32>, vector<48x32xf32> -> vector<64x32xf32>
    %c16_i32_148 = arith.constant 16 : i32
    %420 = vector.broadcast %c16_i32_148 : i32 to vector<64x32xi32>
    %421 = arith.cmpi sge, %3, %420 : vector<64x32xi32>
    %cst_149 = arith.constant 0.000000e+00 : f32
    %422 = vector.broadcast %cst_149 : f32 to vector<64x32xf32>
    %423 = arith.select %421, %419, %422 : vector<64x32xi1>, vector<64x32xf32>
    %424 = tpu.concatenate %423, %414 in 1 : vector<64x32xf32>, vector<64x32xf32> -> vector<64x64xf32>
    %425 = arith.truncf %424 : vector<64x64xf32> to vector<64x64xbf16>
    %c0_150 = arith.constant 0 : index
    %c0_151 = arith.constant 0 : index
    %426 = vector.load %arg11[%c0_150, %c0_151] : memref<32x64xbf16, #tpu.memory_space<vmem>>, vector<32x64xbf16>
    %cst_152 = arith.constant dense<0.000000e+00> : vector<64x32xf32>
    %427 = tpu.matmul %425, %426, %cst_152 {dimension_numbers = #tpu.dot_dimension_numbers<[1], [1], [0], [0], [0, 0, 1, 0], [], []>} : vector<64x64xbf16>, vector<32x64xbf16>, vector<64x32xf32> -> vector<64x32xf32>
    %428 = vector.broadcast %416 : vector<1x32xf32> to vector<64x32xf32>
    %429 = arith.addf %427, %428 : vector<64x32xf32>
    %cst_153 = arith.constant 0.000000e+00 : f32
    %430 = vector.broadcast %cst_153 : f32 to vector<64x32xf32>
    %431 = arith.maximumf %429, %430 : vector<64x32xf32>
    %432 = arith.addf %431, %397 : vector<64x32xf32>
    %cst_154 = arith.constant 0.000000e+00 : f32
    %433 = vector.broadcast %cst_154 : f32 to vector<64x32xf32>
    %434 = arith.maximumf %432, %433 : vector<64x32xf32>
    %c5 = arith.constant 5 : index
    %c0_155 = arith.constant 0 : index
    %c0_156 = arith.constant 0 : index
    %435 = vector.load %arg18[%c5, %c0_155, %c0_156] : memref<8x1x32xf32, #tpu.memory_space<vmem>>, vector<1x1x32xf32>
    %436 = vector.shape_cast %435 : vector<1x1x32xf32> to vector<1x32xf32>
    %437 = arith.truncf %434 : vector<64x32xf32> to vector<64x32xbf16>
    %c0_157 = arith.constant 0 : index
    %c0_158 = arith.constant 0 : index
    %438 = vector.load %arg12[%c0_157, %c0_158] : memref<32x32xbf16, #tpu.memory_space<vmem>>, vector<32x32xbf16>
    %cst_159 = arith.constant dense<0.000000e+00> : vector<64x32xf32>
    %439 = tpu.matmul %437, %438, %cst_159 {dimension_numbers = #tpu.dot_dimension_numbers<[1], [1], [0], [0], [0, 0, 1, 0], [], []>} : vector<64x32xbf16>, vector<32x32xbf16>, vector<64x32xf32> -> vector<64x32xf32>
    %440 = vector.broadcast %436 : vector<1x32xf32> to vector<64x32xf32>
    %441 = arith.addf %439, %440 : vector<64x32xf32>
    %cst_160 = arith.constant 0.000000e+00 : f32
    %442 = vector.broadcast %cst_160 : f32 to vector<64x32xf32>
    %443 = arith.maximumf %441, %442 : vector<64x32xf32>
    %c5_161 = arith.constant 5 : index
    %c0_162 = arith.constant 0 : index
    %c0_163 = arith.constant 0 : index
    %444 = vector.load %arg19[%c5_161, %c0_162, %c0_163] : memref<8x1x32xf32, #tpu.memory_space<vmem>>, vector<1x1x32xf32>
    %445 = vector.shape_cast %444 : vector<1x1x32xf32> to vector<1x32xf32>
    %446 = arith.truncf %443 : vector<64x32xf32> to vector<64x32xbf16>
    %c0_164 = arith.constant 0 : index
    %c0_165 = arith.constant 0 : index
    %447 = vector.load %arg13[%c0_164, %c0_165] : memref<32x32xbf16, #tpu.memory_space<vmem>>, vector<32x32xbf16>
    %cst_166 = arith.constant dense<0.000000e+00> : vector<64x32xf32>
    %448 = tpu.matmul %446, %447, %cst_166 {dimension_numbers = #tpu.dot_dimension_numbers<[1], [1], [0], [0], [0, 0, 1, 0], [], []>} : vector<64x32xbf16>, vector<32x32xbf16>, vector<64x32xf32> -> vector<64x32xf32>
    %449 = vector.broadcast %445 : vector<1x32xf32> to vector<64x32xf32>
    %450 = arith.addf %448, %449 : vector<64x32xf32>
    %cst_167 = arith.constant 0.000000e+00 : f32
    %451 = vector.broadcast %cst_167 : f32 to vector<64x32xf32>
    %452 = arith.maximumf %450, %451 : vector<64x32xf32>
    %453 = arith.addf %452, %434 : vector<64x32xf32>
    %cst_168 = arith.constant 0.000000e+00 : f32
    %454 = vector.broadcast %cst_168 : f32 to vector<64x32xf32>
    %455 = arith.maximumf %453, %454 : vector<64x32xf32>
    %c6 = arith.constant 6 : index
    %c0_169 = arith.constant 0 : index
    %c0_170 = arith.constant 0 : index
    %456 = vector.load %arg18[%c6, %c0_169, %c0_170] : memref<8x1x32xf32, #tpu.memory_space<vmem>>, vector<1x1x32xf32>
    %457 = vector.shape_cast %456 : vector<1x1x32xf32> to vector<1x32xf32>
    %458 = arith.truncf %455 : vector<64x32xf32> to vector<64x32xbf16>
    %c0_171 = arith.constant 0 : index
    %c0_172 = arith.constant 0 : index
    %459 = vector.load %arg14[%c0_171, %c0_172] : memref<32x32xbf16, #tpu.memory_space<vmem>>, vector<32x32xbf16>
    %cst_173 = arith.constant dense<0.000000e+00> : vector<64x32xf32>
    %460 = tpu.matmul %458, %459, %cst_173 {dimension_numbers = #tpu.dot_dimension_numbers<[1], [1], [0], [0], [0, 0, 1, 0], [], []>} : vector<64x32xbf16>, vector<32x32xbf16>, vector<64x32xf32> -> vector<64x32xf32>
    %461 = vector.broadcast %457 : vector<1x32xf32> to vector<64x32xf32>
    %462 = arith.addf %460, %461 : vector<64x32xf32>
    %cst_174 = arith.constant 0.000000e+00 : f32
    %463 = vector.broadcast %cst_174 : f32 to vector<64x32xf32>
    %464 = arith.maximumf %462, %463 : vector<64x32xf32>
    %c6_175 = arith.constant 6 : index
    %c0_176 = arith.constant 0 : index
    %c0_177 = arith.constant 0 : index
    %465 = vector.load %arg19[%c6_175, %c0_176, %c0_177] : memref<8x1x32xf32, #tpu.memory_space<vmem>>, vector<1x1x32xf32>
    %466 = vector.shape_cast %465 : vector<1x1x32xf32> to vector<1x32xf32>
    %467 = arith.truncf %464 : vector<64x32xf32> to vector<64x32xbf16>
    %c0_178 = arith.constant 0 : index
    %c0_179 = arith.constant 0 : index
    %468 = vector.load %arg15[%c0_178, %c0_179] : memref<32x32xbf16, #tpu.memory_space<vmem>>, vector<32x32xbf16>
    %cst_180 = arith.constant dense<0.000000e+00> : vector<64x32xf32>
    %469 = tpu.matmul %467, %468, %cst_180 {dimension_numbers = #tpu.dot_dimension_numbers<[1], [1], [0], [0], [0, 0, 1, 0], [], []>} : vector<64x32xbf16>, vector<32x32xbf16>, vector<64x32xf32> -> vector<64x32xf32>
    %470 = vector.broadcast %466 : vector<1x32xf32> to vector<64x32xf32>
    %471 = arith.addf %469, %470 : vector<64x32xf32>
    %cst_181 = arith.constant 0.000000e+00 : f32
    %472 = vector.broadcast %cst_181 : f32 to vector<64x32xf32>
    %473 = arith.maximumf %471, %472 : vector<64x32xf32>
    %474 = arith.addf %473, %455 : vector<64x32xf32>
    %cst_182 = arith.constant 0.000000e+00 : f32
    %475 = vector.broadcast %cst_182 : f32 to vector<64x32xf32>
    %476 = arith.maximumf %474, %475 : vector<64x32xf32>
    %c7 = arith.constant 7 : index
    %c0_183 = arith.constant 0 : index
    %c0_184 = arith.constant 0 : index
    %477 = vector.load %arg18[%c7, %c0_183, %c0_184] : memref<8x1x32xf32, #tpu.memory_space<vmem>>, vector<1x1x32xf32>
    %478 = vector.shape_cast %477 : vector<1x1x32xf32> to vector<1x32xf32>
    %479 = arith.truncf %476 : vector<64x32xf32> to vector<64x32xbf16>
    %c0_185 = arith.constant 0 : index
    %c0_186 = arith.constant 0 : index
    %480 = vector.load %arg16[%c0_185, %c0_186] : memref<32x32xbf16, #tpu.memory_space<vmem>>, vector<32x32xbf16>
    %cst_187 = arith.constant dense<0.000000e+00> : vector<64x32xf32>
    %481 = tpu.matmul %479, %480, %cst_187 {dimension_numbers = #tpu.dot_dimension_numbers<[1], [1], [0], [0], [0, 0, 1, 0], [], []>} : vector<64x32xbf16>, vector<32x32xbf16>, vector<64x32xf32> -> vector<64x32xf32>
    %482 = vector.broadcast %478 : vector<1x32xf32> to vector<64x32xf32>
    %483 = arith.addf %481, %482 : vector<64x32xf32>
    %cst_188 = arith.constant 0.000000e+00 : f32
    %484 = vector.broadcast %cst_188 : f32 to vector<64x32xf32>
    %485 = arith.maximumf %483, %484 : vector<64x32xf32>
    %c7_189 = arith.constant 7 : index
    %c0_190 = arith.constant 0 : index
    %c0_191 = arith.constant 0 : index
    %486 = vector.load %arg19[%c7_189, %c0_190, %c0_191] : memref<8x1x32xf32, #tpu.memory_space<vmem>>, vector<1x1x32xf32>
    %487 = vector.shape_cast %486 : vector<1x1x32xf32> to vector<1x32xf32>
    %488 = arith.truncf %485 : vector<64x32xf32> to vector<64x32xbf16>
    %c0_192 = arith.constant 0 : index
    %c0_193 = arith.constant 0 : index
    %489 = vector.load %arg17[%c0_192, %c0_193] : memref<32x32xbf16, #tpu.memory_space<vmem>>, vector<32x32xbf16>
    %cst_194 = arith.constant dense<0.000000e+00> : vector<64x32xf32>
    %490 = tpu.matmul %488, %489, %cst_194 {dimension_numbers = #tpu.dot_dimension_numbers<[1], [1], [0], [0], [0, 0, 1, 0], [], []>} : vector<64x32xbf16>, vector<32x32xbf16>, vector<64x32xf32> -> vector<64x32xf32>
    %491 = vector.broadcast %487 : vector<1x32xf32> to vector<64x32xf32>
    %492 = arith.addf %490, %491 : vector<64x32xf32>
    %cst_195 = arith.constant 0.000000e+00 : f32
    %493 = vector.broadcast %cst_195 : f32 to vector<64x32xf32>
    %494 = arith.maximumf %492, %493 : vector<64x32xf32>
    %495 = arith.addf %494, %476 : vector<64x32xf32>
    %cst_196 = arith.constant 0.000000e+00 : f32
    %496 = vector.broadcast %cst_196 : f32 to vector<64x32xf32>
    %497 = arith.maximumf %495, %496 : vector<64x32xf32>
    %498 = arith.truncf %497 : vector<64x32xf32> to vector<64x32xbf16>
    %c0_197 = arith.constant 0 : index
    %c0_198 = arith.constant 0 : index
    %499 = vector.load %arg22[%c0_197, %c0_198] : memref<32x128xbf16, #tpu.memory_space<vmem>>, vector<32x128xbf16>
    %cst_199 = arith.constant dense<0.000000e+00> : vector<64x128xf32>
    %500 = tpu.matmul %498, %499, %cst_199 {dimension_numbers = #tpu.dot_dimension_numbers<[1], [0], [0], [1], [0, 0, 1, 1], [], []>} : vector<64x32xbf16>, vector<32x128xbf16>, vector<64x128xf32> -> vector<64x128xf32>
    %c0_200 = arith.constant 0 : index
    %c0_201 = arith.constant 0 : index
    %501 = vector.load %arg23[%c0_200, %c0_201] : memref<1x128xf32, #tpu.memory_space<vmem>>, vector<1x128xf32>
    %502 = vector.broadcast %501 : vector<1x128xf32> to vector<64x128xf32>
    %503 = arith.addf %500, %502 : vector<64x128xf32>
    %504 = vector.shape_cast %503 : vector<64x128xf32> to vector<2x32x128xf32>
    %c0_202 = arith.constant 0 : index
    %c0_203 = arith.constant 0 : index
    %c0_204 = arith.constant 0 : index
    %505 = vector.load %arg24[%c0_202, %c0_203, %c0_204] : memref<2x32x128xf32, #tpu.memory_space<vmem>>, vector<2x32x128xf32>
    tpu.vector_store %arg24[%c0_202, %c0_203, %c0_204], %504 {strides = array<i32>} : memref<2x32x128xf32, #tpu.memory_space<vmem>>, vector<2x32x128xf32>,
    return
  }
  func.func @transform_0(%arg0: i32) -> (i32, i32, i32) {
    %c0_i32 = arith.constant 0 : i32
    %c0_i32_0 = arith.constant 0 : i32
    %c0_i32_1 = arith.constant 0 : i32
    return %arg0, %c0_i32, %c0_i32_0 : i32, i32, i32
  }
  func.func @transform_1(%arg0: i32) -> (i32, i32) {
    %c0_i32 = arith.constant 0 : i32
    %c0_i32_0 = arith.constant 0 : i32
    %c0_i32_1 = arith.constant 0 : i32
    return %c0_i32, %c0_i32_0 : i32, i32
  }
  func.func @transform_2(%arg0: i32) -> (i32, i32) {
    %c0_i32 = arith.constant 0 : i32
    %c0_i32_0 = arith.constant 0 : i32
    %c0_i32_1 = arith.constant 0 : i32
    return %c0_i32, %c0_i32_0 : i32, i32
  }
  func.func @transform_3(%arg0: i32) -> (i32, i32) {
    %c0_i32 = arith.constant 0 : i32
    %c0_i32_0 = arith.constant 0 : i32
    %c0_i32_1 = arith.constant 0 : i32
    return %c0_i32, %c0_i32_0 : i32, i32
  }
  func.func @transform_4(%arg0: i32) -> (i32, i32) {
    %c0_i32 = arith.constant 0 : i32
    %c0_i32_0 = arith.constant 0 : i32
    %c0_i32_1 = arith.constant 0 : i32
    return %c0_i32, %c0_i32_0 : i32, i32
  }
  func.func @transform_5(%arg0: i32) -> (i32, i32) {
    %c0_i32 = arith.constant 0 : i32
    %c0_i32_0 = arith.constant 0 : i32
    %c0_i32_1 = arith.constant 0 : i32
    return %c0_i32, %c0_i32_0 : i32, i32
  }
  func.func @transform_6(%arg0: i32) -> (i32, i32) {
    %c0_i32 = arith.constant 0 : i32
    %c0_i32_0 = arith.constant 0 : i32
    %c0_i32_1 = arith.constant 0 : i32
    return %c0_i32, %c0_i32_0 : i32, i32
  }
  func.func @transform_7(%arg0: i32) -> (i32, i32) {
    %c0_i32 = arith.constant 0 : i32
    %c0_i32_0 = arith.constant 0 : i32
    %c0_i32_1 = arith.constant 0 : i32
    return %c0_i32, %c0_i32_0 : i32, i32
  }
  func.func @transform_8(%arg0: i32) -> (i32, i32) {
    %c0_i32 = arith.constant 0 : i32
    %c0_i32_0 = arith.constant 0 : i32
    %c0_i32_1 = arith.constant 0 : i32
    return %c0_i32, %c0_i32_0 : i32, i32
  }
  func.func @transform_9(%arg0: i32) -> (i32, i32) {
    %c0_i32 = arith.constant 0 : i32
    %c0_i32_0 = arith.constant 0 : i32
    %c0_i32_1 = arith.constant 0 : i32
    return %c0_i32, %c0_i32_0 : i32, i32
  }
  func.func @transform_10(%arg0: i32) -> (i32, i32) {
    %c0_i32 = arith.constant 0 : i32
    %c0_i32_0 = arith.constant 0 : i32
    %c0_i32_1 = arith.constant 0 : i32
    return %c0_i32, %c0_i32_0 : i32, i32
  }
  func.func @transform_11(%arg0: i32) -> (i32, i32) {
    %c0_i32 = arith.constant 0 : i32
    %c0_i32_0 = arith.constant 0 : i32
    %c0_i32_1 = arith.constant 0 : i32
    return %c0_i32, %c0_i32_0 : i32, i32
  }
  func.func @transform_12(%arg0: i32) -> (i32, i32) {
    %c0_i32 = arith.constant 0 : i32
    %c0_i32_0 = arith.constant 0 : i32
    %c0_i32_1 = arith.constant 0 : i32
    return %c0_i32, %c0_i32_0 : i32, i32
  }
  func.func @transform_13(%arg0: i32) -> (i32, i32) {
    %c0_i32 = arith.constant 0 : i32
    %c0_i32_0 = arith.constant 0 : i32
    %c0_i32_1 = arith.constant 0 : i32
    return %c0_i32, %c0_i32_0 : i32, i32
  }
  func.func @transform_14(%arg0: i32) -> (i32, i32) {
    %c0_i32 = arith.constant 0 : i32
    %c0_i32_0 = arith.constant 0 : i32
    %c0_i32_1 = arith.constant 0 : i32
    return %c0_i32, %c0_i32_0 : i32, i32
  }
  func.func @transform_15(%arg0: i32) -> (i32, i32) {
    %c0_i32 = arith.constant 0 : i32
    %c0_i32_0 = arith.constant 0 : i32
    %c0_i32_1 = arith.constant 0 : i32
    return %c0_i32, %c0_i32_0 : i32, i32
  }
  func.func @transform_16(%arg0: i32) -> (i32, i32) {
    %c0_i32 = arith.constant 0 : i32
    %c0_i32_0 = arith.constant 0 : i32
    %c0_i32_1 = arith.constant 0 : i32
    return %c0_i32, %c0_i32_0 : i32, i32
  }
  func.func @transform_17(%arg0: i32) -> (i32, i32, i32) {
    %c0_i32 = arith.constant 0 : i32
    %c0_i32_0 = arith.constant 0 : i32
    %c0_i32_1 = arith.constant 0 : i32
    %c0_i32_2 = arith.constant 0 : i32
    return %c0_i32, %c0_i32_0, %c0_i32_1 : i32, i32, i32
  }
  func.func @transform_18(%arg0: i32) -> (i32, i32, i32) {
    %c0_i32 = arith.constant 0 : i32
    %c0_i32_0 = arith.constant 0 : i32
    %c0_i32_1 = arith.constant 0 : i32
    %c0_i32_2 = arith.constant 0 : i32
    return %c0_i32, %c0_i32_0, %c0_i32_1 : i32, i32, i32
  }
  func.func @transform_19(%arg0: i32) -> (i32, i32, i32) {
    %c0_i32 = arith.constant 0 : i32
    %c0_i32_0 = arith.constant 0 : i32
    %c0_i32_1 = arith.constant 0 : i32
    %c0_i32_2 = arith.constant 0 : i32
    return %c0_i32, %c0_i32_0, %c0_i32_1 : i32, i32, i32
  }
  func.func @transform_20(%arg0: i32) -> (i32, i32, i32) {
    %c0_i32 = arith.constant 0 : i32
    %c0_i32_0 = arith.constant 0 : i32
    %c0_i32_1 = arith.constant 0 : i32
    %c0_i32_2 = arith.constant 0 : i32
    return %c0_i32, %c0_i32_0, %c0_i32_1 : i32, i32, i32
  }
  func.func @transform_21(%arg0: i32) -> (i32, i32) {
    %c0_i32 = arith.constant 0 : i32
    %c0_i32_0 = arith.constant 0 : i32
    %c0_i32_1 = arith.constant 0 : i32
    return %c0_i32, %c0_i32_0 : i32, i32
  }
  func.func @transform_22(%arg0: i32) -> (i32, i32) {
    %c0_i32 = arith.constant 0 : i32
    %c0_i32_0 = arith.constant 0 : i32
    %c0_i32_1 = arith.constant 0 : i32
    return %c0_i32, %c0_i32_0 : i32, i32
  }
  func.func @transform_23(%arg0: i32) -> (i32, i32, i32) {
    %c0_i32 = arith.constant 0 : i32
    %c0_i32_0 = arith.constant 0 : i32
    %c0_i32_1 = arith.constant 0 : i32
    return %arg0, %c0_i32, %c0_i32_0 : i32, i32, i32
  }
}

</mosaic_0001>

<llo_original>
// kernel: tpu_custom_call.1
$region0: #{tpu_custom_call.1}
  #allocation0 [shape = 'u32[]', space=smem, size = 0x4, offset = 0x4, fixed_abs, tag = 'smem constant byte address 0x4 - core index']
  #allocation1 [shape = 'u32[144,128]{1,0:T(1,128)}', space=vmem, size = 0x12000, scoped, tag = 'internal scratch']
  %s0 = inlined_call_operand.hbm [shape: f32[2,32,32], index: 0, kind: input, shape index: {}]
  %s1 = inlined_call_operand.hbm [shape: bf16[32,224], index: 1, kind: input, shape index: {}]
  %s2 = inlined_call_operand.hbm [shape: bf16[32,224], index: 2, kind: input, shape index: {}]
  %s3 = inlined_call_operand.hbm [shape: bf16[32,224], index: 3, kind: input, shape index: {}]
  %s4 = inlined_call_operand.hbm [shape: bf16[32,224], index: 4, kind: input, shape index: {}]
  %s5 = inlined_call_operand.hbm [shape: bf16[32,224], index: 5, kind: input, shape index: {}]
  %s6 = inlined_call_operand.hbm [shape: bf16[32,224], index: 6, kind: input, shape index: {}]
  %s7 = inlined_call_operand.vmem [shape: bf16[32,128], index: 7, kind: input, shape index: {}]
  %s8 = inlined_call_operand.hbm [shape: bf16[32,128], index: 8, kind: input, shape index: {}]
  %s9 = inlined_call_operand.vmem [shape: bf16[32,64], index: 9, kind: input, shape index: {}]
  %s10 = inlined_call_operand.hbm [shape: bf16[32,64], index: 10, kind: input, shape index: {}]
  %s11 = inlined_call_operand.hbm [shape: bf16[32,32], index: 11, kind: input, shape index: {}]
  %s12 = inlined_call_operand.hbm [shape: bf16[32,32], index: 12, kind: input, shape index: {}]
  %s13 = inlined_call_operand.vmem [shape: bf16[32,32], index: 13, kind: input, shape index: {}]
  %s14 = inlined_call_operand.hbm [shape: bf16[32,32], index: 14, kind: input, shape index: {}]
  %s15 = inlined_call_operand.hbm [shape: bf16[32,32], index: 15, kind: input, shape index: {}]
  %s16 = inlined_call_operand.hbm [shape: bf16[32,32], index: 16, kind: input, shape index: {}]
  %s17 = inlined_call_operand.hbm [shape: f32[8,1,32], index: 17, kind: input, shape index: {}]
  %s18 = inlined_call_operand.hbm [shape: f32[8,1,32], index: 18, kind: input, shape index: {}]
  %s19 = inlined_call_operand.vmem [shape: bf16[1,32,32], index: 19, kind: input, shape index: {}]
  %s20 = inlined_call_operand.vmem [shape: f32[1,1,32], index: 20, kind: input, shape index: {}]
  %s21 = inlined_call_operand.hbm [shape: bf16[32,128], index: 21, kind: input, shape index: {}]
  %s22 = inlined_call_operand.vmem [shape: f32[1,128], index: 22, kind: input, shape index: {}]
  %s23 = inlined_call_operand.hbm [shape: f32[2,32,128], index: 23, kind: output, shape index: {}]
  %s24 = sld [smem:[#allocation0]]
  $region170: #{tpu_custom_call.1} parent=0
    _
  %s26 = ssub.s32 1, %s24
  %s27 = scalar_select 0, %s26, %s24
  $region1: #{tpu_custom_call.1} parent=0
    #allocation2 [shape = 'u8[32768]{0}', space=vmem, size = 0x8000, scoped, tag = 'input window, operand 0, single buffered']
    #allocation3 [shape = 's32[1]{0}', space=sflag, size = 0x4, scoped, tag = 'scoped memory for tpu_custom_call.1']
    #allocation4 [shape = 's32[1]{0}', space=sflag, size = 0x4, scoped, tag = 'scoped memory for tpu_custom_call.1']
    #allocation5 [shape = 'u8[16384]{0}', space=vmem, size = 0x4000, scoped, tag = 'input window, operand 1, single buffered']
    #allocation6 [shape = 's32[1]{0}', space=sflag, size = 0x4, scoped, tag = 'scoped memory for tpu_custom_call.1']
    #allocation7 [shape = 'u8[16384]{0}', space=vmem, size = 0x4000, scoped, tag = 'input window, operand 2, single buffered']
    #allocation8 [shape = 'u8[16384]{0}', space=vmem, size = 0x4000, scoped, tag = 'input window, operand 3, single buffered']
    #allocation9 [shape = 's32[1]{0}', space=sflag, size = 0x4, scoped, tag = 'scoped memory for tpu_custom_call.1']
    #allocation10 [shape = 'u8[16384]{0}', space=vmem, size = 0x4000, scoped, tag = 'input window, operand 4, single buffered']
    #allocation11 [shape = 'u8[16384]{0}', space=vmem, size = 0x4000, scoped, tag = 'input window, operand 5, single buffered']
    #allocation12 [shape = 's32[1]{0}', space=sflag, size = 0x4, scoped, tag = 'scoped memory for tpu_custom_call.1']
    #allocation13 [shape = 'u8[16384]{0}', space=vmem, size = 0x4000, scoped, tag = 'input window, operand 6, single buffered']
    #allocation14 [shape = 'u8[8192]{0}', space=vmem, size = 0x2000, scoped, tag = 'input window, operand 8, single buffered']
    #allocation15 [shape = 's32[1]{0}', space=sflag, size = 0x4, scoped, tag = 'scoped memory for tpu_custom_call.1']
    #allocation16 [shape = 'u8[8192]{0}', space=vmem, size = 0x2000, scoped, tag = 'input window, operand 10, single buffered']
    #allocation17 [shape = 'u8[8192]{0}', space=vmem, size = 0x2000, scoped, tag = 'input window, operand 11, single buffered']
    #allocation18 [shape = 's32[1]{0}', space=sflag, size = 0x4, scoped, tag = 'scoped memory for tpu_custom_call.1']
    #allocation19 [shape = 'u8[8192]{0}', space=vmem, size = 0x2000, scoped, tag = 'input window, operand 12, single buffered']
    #allocation20 [shape = 'u8[8192]{0}', space=vmem, size = 0x2000, scoped, tag = 'input window, operand 14, single buffered']
    #allocation21 [shape = 's32[1]{0}', space=sflag, size = 0x4, scoped, tag = 'scoped memory for tpu_custom_call.1']
    #allocation22 [shape = 'u8[8192]{0}', space=vmem, size = 0x2000, scoped, tag = 'input window, operand 15, single buffered']
    #allocation23 [shape = 'u8[8192]{0}', space=vmem, size = 0x2000, scoped, tag = 'input window, operand 16, single buffered']
    #allocation24 [shape = 's32[1]{0}', space=sflag, size = 0x4, scoped, tag = 'scoped memory for tpu_custom_call.1']
    #allocation25 [shape = 'u8[4096]{0}', space=vmem, size = 0x1000, scoped, tag = 'input window, operand 17, single buffered']
    #allocation26 [shape = 'u8[4096]{0}', space=vmem, size = 0x1000, scoped, tag = 'input window, operand 18, single buffered']
    #allocation27 [shape = 's32[1]{0}', space=sflag, size = 0x4, scoped, tag = 'scoped memory for tpu_custom_call.1']
    #allocation28 [shape = 'u8[8192]{0}', space=vmem, size = 0x2000, scoped, tag = 'input window, operand 21, single buffered']
    #allocation29 [shape = 'u8[32768]{0}', space=vmem, size = 0x8000, scoped, tag = 'output window, operand 0, single buffered']
    %28 = vsyncpa [#allocation3], 0
    %29 = vsyncpa [#allocation6], 0
    %30 = vsyncpa [#allocation9], 0
    %31 = vsyncpa [#allocation12], 0
    %32 = vsyncpa [#allocation15], 0
    %33 = vsyncpa [#allocation18], 0
    %34 = vsyncpa [#allocation21], 0
    %35 = vsyncpa [#allocation24], 0
    %36 = vsyncpa [#allocation27], 0
    %37 = vsyncpa [#allocation4], 0
    // Predicated region
    $region2: #{tpu_custom_call.1} parent=1 // pred_check
      _
    $region3: #{tpu_custom_call.1} parent=1 // pred_check_branch
      %39 = sbr.rel (0) target = $region5
    $region4: #{tpu_custom_call.1} parent=1 // pred_region
      %s41 = ssub.s32 1024, 1024
      %42 = vsyncadd [#allocation3], %s41
      %s43 = sshll.u32 [#allocation2], 4
      %s44 = int_to_ptr.vmem [resolvable:$true] %s43
      %49 = dma.hbm_to_vmem [thread:$0]  %s0, 1024, %s44, [#allocation3], 128, 128, 8
    $region5: #{tpu_custom_call.1} parent=1 // pred_fallthru
      _
    // Predicated region
    $region6: #{tpu_custom_call.1} parent=1 // pred_check
      _
    $region7: #{tpu_custom_call.1} parent=1 // pred_check_branch
      %51 = sbr.rel (0) target = $region9
    $region8: #{tpu_custom_call.1} parent=1 // pred_region
      %s53 = ssub.s32 512, 512
      %54 = vsyncadd [#allocation6], %s53
      %s55 = sshll.u32 [#allocation5], 4
      %s56 = int_to_ptr.vmem [resolvable:$true] %s55
      %61 = dma.hbm_to_vmem [thread:$0]  %s1, 512, %s56, [#allocation6], 128, 128, 8
    $region9: #{tpu_custom_call.1} parent=1 // pred_fallthru
      _
    // Predicated region
    $region10: #{tpu_custom_call.1} parent=1 // pred_check
      _
    $region11: #{tpu_custom_call.1} parent=1 // pred_check_branch
      %63 = sbr.rel (0) target = $region13
    $region12: #{tpu_custom_call.1} parent=1 // pred_region
      %s65 = ssub.s32 512, 512
      %66 = vsyncadd [#allocation6], %s65
      %s67 = sshll.u32 [#allocation7], 4
      %s68 = int_to_ptr.vmem [resolvable:$true] %s67
      %73 = dma.hbm_to_vmem [thread:$0]  %s2, 512, %s68, [#allocation6], 128, 128, 8
    $region13: #{tpu_custom_call.1} parent=1 // pred_fallthru
      _
    // Predicated region
    $region14: #{tpu_custom_call.1} parent=1 // pred_check
      _
    $region15: #{tpu_custom_call.1} parent=1 // pred_check_branch
      %75 = sbr.rel (0) target = $region17
    $region16: #{tpu_custom_call.1} parent=1 // pred_region
      %s77 = ssub.s32 512, 512
      %78 = vsyncadd [#allocation9], %s77
      %s79 = sshll.u32 [#allocation8], 4
      %s80 = int_to_ptr.vmem [resolvable:$true] %s79
      %85 = dma.hbm_to_vmem [thread:$0]  %s3, 512, %s80, [#allocation9], 128, 128, 8
    $region17: #{tpu_custom_call.1} parent=1 // pred_fallthru
      _
    // Predicated region
    $region18: #{tpu_custom_call.1} parent=1 // pred_check
      _
    $region19: #{tpu_custom_call.1} parent=1 // pred_check_branch
      %87 = sbr.rel (0) target = $region21
    $region20: #{tpu_custom_call.1} parent=1 // pred_region
      %s89 = ssub.s32 512, 512
      %90 = vsyncadd [#allocation9], %s89
      %s91 = sshll.u32 [#allocation10], 4
      %s92 = int_to_ptr.vmem [resolvable:$true] %s91
      %97 = dma.hbm_to_vmem [thread:$0]  %s4, 512, %s92, [#allocation9], 128, 128, 8
    $region21: #{tpu_custom_call.1} parent=1 // pred_fallthru
      _
    // Predicated region
    $region22: #{tpu_custom_call.1} parent=1 // pred_check
      _
    $region23: #{tpu_custom_call.1} parent=1 // pred_check_branch
      %99 = sbr.rel (0) target = $region25
    $region24: #{tpu_custom_call.1} parent=1 // pred_region
      %s101 = ssub.s32 512, 512
      %102 = vsyncadd [#allocation12], %s101
      %s103 = sshll.u32 [#allocation11], 4
      %s104 = int_to_ptr.vmem [resolvable:$true] %s103
      %109 = dma.hbm_to_vmem [thread:$0]  %s5, 512, %s104, [#allocation12], 128, 128, 8
    $region25: #{tpu_custom_call.1} parent=1 // pred_fallthru
      _
    // Predicated region
    $region26: #{tpu_custom_call.1} parent=1 // pred_check
      _
    $region27: #{tpu_custom_call.1} parent=1 // pred_check_branch
      %111 = sbr.rel (0) target = $region29
    $region28: #{tpu_custom_call.1} parent=1 // pred_region
      %s113 = ssub.s32 512, 512
      %114 = vsyncadd [#allocation12], %s113
      %s115 = sshll.u32 [#allocation13], 4
      %s116 = int_to_ptr.vmem [resolvable:$true] %s115
      %121 = dma.hbm_to_vmem [thread:$0]  %s6, 512, %s116, [#allocation12], 128, 128, 8
    $region29: #{tpu_custom_call.1} parent=1 // pred_fallthru
      _
    // Predicated region
    $region30: #{tpu_custom_call.1} parent=1 // pred_check
      _
    $region31: #{tpu_custom_call.1} parent=1 // pred_check_branch
      %123 = sbr.rel (0) target = $region33
    $region32: #{tpu_custom_call.1} parent=1 // pred_region
      _
    $region33: #{tpu_custom_call.1} parent=1 // pred_fallthru
      _
    // Predicated region
    $region34: #{tpu_custom_call.1} parent=1 // pred_check
      _
    $region35: #{tpu_custom_call.1} parent=1 // pred_check_branch
      %125 = sbr.rel (0) target = $region37
    $region36: #{tpu_custom_call.1} parent=1 // pred_region
      %s127 = ssub.s32 256, 256
      %128 = vsyncadd [#allocation15], %s127
      %s129 = sshll.u32 [#allocation14], 4
      %s130 = int_to_ptr.vmem [resolvable:$true] %s129
      %135 = dma.hbm_to_vmem [thread:$0]  %s8, 256, %s130, [#allocation15], 64, 64, 4
    $region37: #{tpu_custom_call.1} parent=1 // pred_fallthru
      _
    // Predicated region
    $region38: #{tpu_custom_call.1} parent=1 // pred_check
      _
    $region39: #{tpu_custom_call.1} parent=1 // pred_check_branch
      %137 = sbr.rel (0) target = $region41
    $region40: #{tpu_custom_call.1} parent=1 // pred_region
      _
    $region41: #{tpu_custom_call.1} parent=1 // pred_fallthru
      _
    // Predicated region
    $region42: #{tpu_custom_call.1} parent=1 // pred_check
      _
    $region43: #{tpu_custom_call.1} parent=1 // pred_check_branch
      %139 = sbr.rel (0) target = $region45
    $region44: #{tpu_custom_call.1} parent=1 // pred_region
      %s141 = ssub.s32 256, 256
      %142 = vsyncadd [#allocation15], %s141
      %s143 = sshll.u32 [#allocation16], 4
      %s144 = int_to_ptr.vmem [resolvable:$true] %s143
      %149 = dma.hbm_to_vmem [thread:$0]  %s10, 256, %s144, [#allocation15], 64, 64, 4
    $region45: #{tpu_custom_call.1} parent=1 // pred_fallthru
      _
    // Predicated region
    $region46: #{tpu_custom_call.1} parent=1 // pred_check
      _
    $region47: #{tpu_custom_call.1} parent=1 // pred_check_branch
      %151 = sbr.rel (0) target = $region49
    $region48: #{tpu_custom_call.1} parent=1 // pred_region
      %s153 = ssub.s32 256, 256
      %154 = vsyncadd [#allocation18], %s153
      %s155 = sshll.u32 [#allocation17], 4
      %s156 = int_to_ptr.vmem [resolvable:$true] %s155
      %161 = dma.hbm_to_vmem [thread:$0]  %s11, 256, %s156, [#allocation18], 64, 64, 4
    $region49: #{tpu_custom_call.1} parent=1 // pred_fallthru
      _
    // Predicated region
    $region50: #{tpu_custom_call.1} parent=1 // pred_check
      _
    $region51: #{tpu_custom_call.1} parent=1 // pred_check_branch
      %163 = sbr.rel (0) target = $region53
    $region52: #{tpu_custom_call.1} parent=1 // pred_region
      %s165 = ssub.s32 256, 256
      %166 = vsyncadd [#allocation18], %s165
      %s167 = sshll.u32 [#allocation19], 4
      %s168 = int_to_ptr.vmem [resolvable:$true] %s167
      %173 = dma.hbm_to_vmem [thread:$0]  %s12, 256, %s168, [#allocation18], 64, 64, 4
    $region53: #{tpu_custom_call.1} parent=1 // pred_fallthru
      _
    // Predicated region
    $region54: #{tpu_custom_call.1} parent=1 // pred_check
      _
    $region55: #{tpu_custom_call.1} parent=1 // pred_check_branch
      %175 = sbr.rel (0) target = $region57
    $region56: #{tpu_custom_call.1} parent=1 // pred_region
      _
    $region57: #{tpu_custom_call.1} parent=1 // pred_fallthru
      _
    // Predicated region
    $region58: #{tpu_custom_call.1} parent=1 // pred_check
      _
    $region59: #{tpu_custom_call.1} parent=1 // pred_check_branch
      %177 = sbr.rel (0) target = $region61
    $region60: #{tpu_custom_call.1} parent=1 // pred_region
      %s179 = ssub.s32 256, 256
      %180 = vsyncadd [#allocation21], %s179
      %s181 = sshll.u32 [#allocation20], 4
      %s182 = int_to_ptr.vmem [resolvable:$true] %s181
      %187 = dma.hbm_to_vmem [thread:$0]  %s14, 256, %s182, [#allocation21], 64, 64, 4
    $region61: #{tpu_custom_call.1} parent=1 // pred_fallthru
      _
    // Predicated region
    $region62: #{tpu_custom_call.1} parent=1 // pred_check
      _
    $region63: #{tpu_custom_call.1} parent=1 // pred_check_branch
      %189 = sbr.rel (0) target = $region65
    $region64: #{tpu_custom_call.1} parent=1 // pred_region
      %s191 = ssub.s32 256, 256
      %192 = vsyncadd [#allocation21], %s191
      %s193 = sshll.u32 [#allocation22], 4
      %s194 = int_to_ptr.vmem [resolvable:$true] %s193
      %199 = dma.hbm_to_vmem [thread:$0]  %s15, 256, %s194, [#allocation21], 64, 64, 4
    $region65: #{tpu_custom_call.1} parent=1 // pred_fallthru
      _
    // Predicated region
    $region66: #{tpu_custom_call.1} parent=1 // pred_check
      _
    $region67: #{tpu_custom_call.1} parent=1 // pred_check_branch
      %201 = sbr.rel (0) target = $region69
    $region68: #{tpu_custom_call.1} parent=1 // pred_region
      %s203 = ssub.s32 256, 256
      %204 = vsyncadd [#allocation24], %s203
      %s205 = sshll.u32 [#allocation23], 4
      %s206 = int_to_ptr.vmem [resolvable:$true] %s205
      %211 = dma.hbm_to_vmem [thread:$0]  %s16, 256, %s206, [#allocation24], 64, 64, 4
    $region69: #{tpu_custom_call.1} parent=1 // pred_fallthru
      _
    // Predicated region
    $region70: #{tpu_custom_call.1} parent=1 // pred_check
      _
    $region71: #{tpu_custom_call.1} parent=1 // pred_check_branch
      %213 = sbr.rel (0) target = $region73
    $region72: #{tpu_custom_call.1} parent=1 // pred_region
      %s215 = ssub.s32 128, 128
      %216 = vsyncadd [#allocation24], %s215
      %s217 = sshll.u32 [#allocation25], 4
      %s218 = int_to_ptr.vmem [resolvable:$true] %s217
      %223 = dma.hbm_to_vmem [thread:$0]  %s17, 128, %s218, [#allocation24], 16, 16, 1
    $region73: #{tpu_custom_call.1} parent=1 // pred_fallthru
      _
    // Predicated region
    $region74: #{tpu_custom_call.1} parent=1 // pred_check
      _
    $region75: #{tpu_custom_call.1} parent=1 // pred_check_branch
      %225 = sbr.rel (0) target = $region77
    $region76: #{tpu_custom_call.1} parent=1 // pred_region
      %s227 = ssub.s32 128, 128
      %228 = vsyncadd [#allocation27], %s227
      %s229 = sshll.u32 [#allocation26], 4
      %s230 = int_to_ptr.vmem [resolvable:$true] %s229
      %235 = dma.hbm_to_vmem [thread:$0]  %s18, 128, %s230, [#allocation27], 16, 16, 1
    $region77: #{tpu_custom_call.1} parent=1 // pred_fallthru
      _
    // Predicated region
    $region78: #{tpu_custom_call.1} parent=1 // pred_check
      _
    $region79: #{tpu_custom_call.1} parent=1 // pred_check_branch
      %237 = sbr.rel (0) target = $region81
    $region80: #{tpu_custom_call.1} parent=1 // pred_region
      _
    $region81: #{tpu_custom_call.1} parent=1 // pred_fallthru
      _
    // Predicated region
    $region82: #{tpu_custom_call.1} parent=1 // pred_check
      _
    $region83: #{tpu_custom_call.1} parent=1 // pred_check_branch
      %239 = sbr.rel (0) target = $region85
    $region84: #{tpu_custom_call.1} parent=1 // pred_region
      _
    $region85: #{tpu_custom_call.1} parent=1 // pred_fallthru
      _
    // Predicated region
    $region86: #{tpu_custom_call.1} parent=1 // pred_check
      _
    $region87: #{tpu_custom_call.1} parent=1 // pred_check_branch
      %241 = sbr.rel (0) target = $region89
    $region88: #{tpu_custom_call.1} parent=1 // pred_region
      %s243 = ssub.s32 256, 256
      %244 = vsyncadd [#allocation27], %s243
      %s245 = sshll.u32 [#allocation28], 4
      %s246 = int_to_ptr.vmem [resolvable:$true] %s245
      %251 = dma.hbm_to_vmem [thread:$0]  %s21, 256, %s246, [#allocation27], 64, 64, 4
    $region89: #{tpu_custom_call.1} parent=1 // pred_fallthru
      _
    // Predicated region
    $region90: #{tpu_custom_call.1} parent=1 // pred_check
      _
    $region91: #{tpu_custom_call.1} parent=1 // pred_check_branch
      %253 = sbr.rel (0) target = $region93
    $region92: #{tpu_custom_call.1} parent=1 // pred_region
      _
    $region93: #{tpu_custom_call.1} parent=1 // pred_fallthru
      _
    // Predicated region
    $region94: #{tpu_custom_call.1} parent=1 // pred_check
      _
    $region95: #{tpu_custom_call.1} parent=1 // pred_check_branch
      %255 = sbr.rel (0) target = $region97
    $region96: #{tpu_custom_call.1} parent=1 // pred_region
      %256 = dma.done [#allocation3], 1024
    $region97: #{tpu_custom_call.1} parent=1 // pred_fallthru
      _
    // Predicated region
    $region98: #{tpu_custom_call.1} parent=1 // pred_check
      _
    $region99: #{tpu_custom_call.1} parent=1 // pred_check_branch
      %258 = sbr.rel (0) target = $region101
    $region100: #{tpu_custom_call.1} parent=1 // pred_region
      %259 = dma.done [#allocation6], 512
    $region101: #{tpu_custom_call.1} parent=1 // pred_fallthru
      _
    // Predicated region
    $region102: #{tpu_custom_call.1} parent=1 // pred_check
      _
    $region103: #{tpu_custom_call.1} parent=1 // pred_check_branch
      %261 = sbr.rel (0) target = $region105
    $region104: #{tpu_custom_call.1} parent=1 // pred_region
      %262 = dma.done [#allocation6], 512
    $region105: #{tpu_custom_call.1} parent=1 // pred_fallthru
      _
    // Predicated region
    $region106: #{tpu_custom_call.1} parent=1 // pred_check
      _
    $region107: #{tpu_custom_call.1} parent=1 // pred_check_branch
      %264 = sbr.rel (0) target = $region109
    $region108: #{tpu_custom_call.1} parent=1 // pred_region
      %265 = dma.done [#allocation9], 512
    $region109: #{tpu_custom_call.1} parent=1 // pred_fallthru
      _
    // Predicated region
    $region110: #{tpu_custom_call.1} parent=1 // pred_check
      _
    $region111: #{tpu_custom_call.1} parent=1 // pred_check_branch
      %267 = sbr.rel (0) target = $region113
    $region112: #{tpu_custom_call.1} parent=1 // pred_region
      %268 = dma.done [#allocation9], 512
    $region113: #{tpu_custom_call.1} parent=1 // pred_fallthru
      _
    // Predicated region
    $region114: #{tpu_custom_call.1} parent=1 // pred_check
      _
    $region115: #{tpu_custom_call.1} parent=1 // pred_check_branch
      %270 = sbr.rel (0) target = $region117
    $region116: #{tpu_custom_call.1} parent=1 // pred_region
      %271 = dma.done [#allocation12], 512
    $region117: #{tpu_custom_call.1} parent=1 // pred_fallthru
      _
    // Predicated region
    $region118: #{tpu_custom_call.1} parent=1 // pred_check
      _
    $region119: #{tpu_custom_call.1} parent=1 // pred_check_branch
      %273 = sbr.rel (0) target = $region121
    $region120: #{tpu_custom_call.1} parent=1 // pred_region
      %274 = dma.done [#allocation12], 512
    $region121: #{tpu_custom_call.1} parent=1 // pred_fallthru
      _
    // Predicated region
    $region122: #{tpu_custom_call.1} parent=1 // pred_check
      _
    $region123: #{tpu_custom_call.1} parent=1 // pred_check_branch
      %276 = sbr.rel (0) target = $region125
    $region124: #{tpu_custom_call.1} parent=1 // pred_region
      %277 = dma.done [#allocation15], 256
    $region125: #{tpu_custom_call.1} parent=1 // pred_fallthru
      _
    // Predicated region
    $region126: #{tpu_custom_call.1} parent=1 // pred_check
      _
    $region127: #{tpu_custom_call.1} parent=1 // pred_check_branch
      %279 = sbr.rel (0) target = $region129
    $region128: #{tpu_custom_call.1} parent=1 // pred_region
      %280 = dma.done [#allocation15], 256
    $region129: #{tpu_custom_call.1} parent=1 // pred_fallthru
      _
    // Predicated region
    $region130: #{tpu_custom_call.1} parent=1 // pred_check
      _
    $region131: #{tpu_custom_call.1} parent=1 // pred_check_branch
      %282 = sbr.rel (0) target = $region133
    $region132: #{tpu_custom_call.1} parent=1 // pred_region
      %283 = dma.done [#allocation18], 256
    $region133: #{tpu_custom_call.1} parent=1 // pred_fallthru
      _
    // Predicated region
    $region134: #{tpu_custom_call.1} parent=1 // pred_check
      _
    $region135: #{tpu_custom_call.1} parent=1 // pred_check_branch
      %285 = sbr.rel (0) target = $region137
    $region136: #{tpu_custom_call.1} parent=1 // pred_region
      %286 = dma.done [#allocation18], 256
    $region137: #{tpu_custom_call.1} parent=1 // pred_fallthru
      _
    // Predicated region
    $region138: #{tpu_custom_call.1} parent=1 // pred_check
      _
    $region139: #{tpu_custom_call.1} parent=1 // pred_check_branch
      %288 = sbr.rel (0) target = $region141
    $region140: #{tpu_custom_call.1} parent=1 // pred_region
      %289 = dma.done [#allocation21], 256
    $region141: #{tpu_custom_call.1} parent=1 // pred_fallthru
      _
    // Predicated region
    $region142: #{tpu_custom_call.1} parent=1 // pred_check
      _
    $region143: #{tpu_custom_call.1} parent=1 // pred_check_branch
      %291 = sbr.rel (0) target = $region145
    $region144: #{tpu_custom_call.1} parent=1 // pred_region
      %292 = dma.done [#allocation21], 256
    $region145: #{tpu_custom_call.1} parent=1 // pred_fallthru
      _
    // Predicated region
    $region146: #{tpu_custom_call.1} parent=1 // pred_check
      _
    $region147: #{tpu_custom_call.1} parent=1 // pred_check_branch
      %294 = sbr.rel (0) target = $region149
    $region148: #{tpu_custom_call.1} parent=1 // pred_region
      %295 = dma.done [#allocation24], 256
    $region149: #{tpu_custom_call.1} parent=1 // pred_fallthru
      _
    // Predicated region
    $region150: #{tpu_custom_call.1} parent=1 // pred_check
      _
    $region151: #{tpu_custom_call.1} parent=1 // pred_check_branch
      %297 = sbr.rel (0) target = $region153
    $region152: #{tpu_custom_call.1} parent=1 // pred_region
      %298 = dma.done [#allocation24], 128
    $region153: #{tpu_custom_call.1} parent=1 // pred_fallthru
      _
    // Predicated region
    $region154: #{tpu_custom_call.1} parent=1 // pred_check
      _
    $region155: #{tpu_custom_call.1} parent=1 // pred_check_branch
      %300 = sbr.rel (0) target = $region157
    $region156: #{tpu_custom_call.1} parent=1 // pred_region
      %301 = dma.done [#allocation27], 128
    $region157: #{tpu_custom_call.1} parent=1 // pred_fallthru
      _
    // Predicated region
    $region158: #{tpu_custom_call.1} parent=1 // pred_check
      _
    $region159: #{tpu_custom_call.1} parent=1 // pred_check_branch
      %303 = sbr.rel (0) target = $region161
    $region160: #{tpu_custom_call.1} parent=1 // pred_region
      %304 = dma.done [#allocation27], 256
    $region161: #{tpu_custom_call.1} parent=1 // pred_fallthru
      _
    %v306 = vld [vmem:[#allocation2] sm:$0xff]
    %v307 = vld [vmem:[#allocation2 + $0x8] sm:$0xff]
    %v308 = vld [vmem:[#allocation2 + $0x10] sm:$0xff]
    %v309 = vld [vmem:[#allocation2 + $0x18] sm:$0xff]
    %v310 = vld [vmem:[#allocation2 + $0x20] sm:$0xff]
    %v311 = vld [vmem:[#allocation2 + $0x28] sm:$0xff]
    %v312 = vld [vmem:[#allocation2 + $0x30] sm:$0xff]
    %v313 = vld [vmem:[#allocation2 + $0x38] sm:$0xff]
    %v314 = vlaneseq
    %v315 = vshrl.u32 %v314, 7
    %v316 = vadd.s32 %v315, 8
    %v317 = vadd.s32 %v315, 16
    %v318 = vadd.s32 %v315, 24
    %v319 = vld [vmem:[#allocation25] sm:$0x1]
    %v321 = vrot.slane %v313, 2
    %vm330 = vcmask 1045504
    %v331 = vrot.slane %v306, 2
    %v332 = vrot.slane %v307, 2
    %v333 = vsel %vm330, %v331, %v332
    %v334 = vrot.slane %v308, 2
    %v335 = vsel %vm330, %v332, %v334
    %v336 = vrot.slane %v309, 2
    %v337 = vsel %vm330, %v334, %v336
    %v338 = vrot.slane %v310, 2
    %v339 = vsel %vm330, %v336, %v338
    %v340 = vrot.slane %v311, 2
    %v341 = vsel %vm330, %v338, %v340
    %v342 = vrot.slane %v312, 2
    %v343 = vsel %vm330, %v340, %v342
    %v344 = vsel %vm330, %v342, %v321
    %v353 = vsel %vm330, %v321, %v331
    %vm354 = vcmp.ge.s32.totalorder %v315, 6
    %vm355 = vcmp.ge.s32.totalorder %v316, 6
    %vm356 = vcmp.ge.s32.totalorder %v317, 6
    %vm357 = vcmp.ge.s32.totalorder %v318, 6
    %v358 = vsel %vm354, %v353, 0.0
    %v359 = vsel %vm355, %v333, 0.0
    %v360 = vsel %vm356, %v335, 0.0
    %v361 = vsel %vm357, %v337, 0.0
    %v362 = vsel %vm354, %v339, 0.0
    %v363 = vsel %vm355, %v341, 0.0
    %v364 = vsel %vm356, %v343, 0.0
    %v365 = vsel %vm357, %v344, 0.0
    %v366 = vrot.slane %v313, 3
    %vm368 = vcmask 1044480
    %v369 = vrot.slane %v306, 3
    %v370 = vrot.slane %v307, 3
    %v371 = vsel %vm368, %v369, %v370
    %v372 = vrot.slane %v308, 3
    %v373 = vsel %vm368, %v370, %v372
    %v374 = vrot.slane %v309, 3
    %v375 = vsel %vm368, %v372, %v374
    %v376 = vrot.slane %v310, 3
    %v377 = vsel %vm368, %v374, %v376
    %v378 = vrot.slane %v311, 3
    %v379 = vsel %vm368, %v376, %v378
    %v380 = vrot.slane %v312, 3
    %v381 = vsel %vm368, %v378, %v380
    %v382 = vsel %vm368, %v380, %v366
    %v391 = vsel %vm368, %v366, %v369
    %vm392 = vcmp.ge.s32.totalorder %v315, 5
    %vm393 = vcmp.ge.s32.totalorder %v316, 5
    %vm394 = vcmp.ge.s32.totalorder %v317, 5
    %vm395 = vcmp.ge.s32.totalorder %v318, 5
    %v396 = vsel %vm392, %v391, 0.0
    %v397 = vsel %vm393, %v371, 0.0
    %v398 = vsel %vm394, %v373, 0.0
    %v399 = vsel %vm395, %v375, 0.0
    %v400 = vsel %vm392, %v377, 0.0
    %v401 = vsel %vm393, %v379, 0.0
    %v402 = vsel %vm394, %v381, 0.0
    %v403 = vsel %vm395, %v382, 0.0
    %v404 = vrot.slane %v313, 4
    %vm406 = vcmask 1043456
    %v407 = vrot.slane %v306, 4
    %v408 = vrot.slane %v307, 4
    %v409 = vsel %vm406, %v407, %v408
    %v410 = vrot.slane %v308, 4
    %v411 = vsel %vm406, %v408, %v410
    %v412 = vrot.slane %v309, 4
    %v413 = vsel %vm406, %v410, %v412
    %v414 = vrot.slane %v310, 4
    %v415 = vsel %vm406, %v412, %v414
    %v416 = vrot.slane %v311, 4
    %v417 = vsel %vm406, %v414, %v416
    %v418 = vrot.slane %v312, 4
    %v419 = vsel %vm406, %v416, %v418
    %v420 = vsel %vm406, %v418, %v404
    %v429 = vsel %vm406, %v404, %v407
    %vm430 = vcmp.ge.s32.totalorder %v315, 4
    %vm431 = vcmp.ge.s32.totalorder %v316, 4
    %vm432 = vcmp.ge.s32.totalorder %v317, 4
    %vm433 = vcmp.ge.s32.totalorder %v318, 4
    %v434 = vsel %vm430, %v429, 0.0
    %v435 = vsel %vm431, %v409, 0.0
    %v436 = vsel %vm432, %v411, 0.0
    %v437 = vsel %vm433, %v413, 0.0
    %v438 = vsel %vm430, %v415, 0.0
    %v439 = vsel %vm431, %v417, 0.0
    %v440 = vsel %vm432, %v419, 0.0
    %v441 = vsel %vm433, %v420, 0.0
    %v442 = vrot.slane %v313, 5
    %vm444 = vcmask 1042432
    %v445 = vrot.slane %v306, 5
    %v446 = vrot.slane %v307, 5
    %v447 = vsel %vm444, %v445, %v446
    %v448 = vrot.slane %v308, 5
    %v449 = vsel %vm444, %v446, %v448
    %v450 = vrot.slane %v309, 5
    %v451 = vsel %vm444, %v448, %v450
    %v452 = vrot.slane %v310, 5
    %v453 = vsel %vm444, %v450, %v452
    %v454 = vrot.slane %v311, 5
    %v455 = vsel %vm444, %v452, %v454
    %v456 = vrot.slane %v312, 5
    %v457 = vsel %vm444, %v454, %v456
    %v458 = vsel %vm444, %v456, %v442
    %v467 = vsel %vm444, %v442, %v445
    %vm468 = vcmp.ge.s32.totalorder %v315, 3
    %vm469 = vcmp.ge.s32.totalorder %v316, 3
    %vm470 = vcmp.ge.s32.totalorder %v317, 3
    %vm471 = vcmp.ge.s32.totalorder %v318, 3
    %v472 = vsel %vm468, %v467, 0.0
    %v473 = vsel %vm469, %v447, 0.0
    %v474 = vsel %vm470, %v449, 0.0
    %v475 = vsel %vm471, %v451, 0.0
    %v476 = vsel %vm468, %v453, 0.0
    %v477 = vsel %vm469, %v455, 0.0
    %v478 = vsel %vm470, %v457, 0.0
    %v479 = vsel %vm471, %v458, 0.0
    %v480 = vrot.slane %v313, 6
    %vm482 = vcmask 1041408
    %v483 = vrot.slane %v306, 6
    %v484 = vrot.slane %v307, 6
    %v485 = vsel %vm482, %v483, %v484
    %v486 = vrot.slane %v308, 6
    %v487 = vsel %vm482, %v484, %v486
    %v488 = vrot.slane %v309, 6
    %v489 = vsel %vm482, %v486, %v488
    %v490 = vrot.slane %v310, 6
    %v491 = vsel %vm482, %v488, %v490
    %v492 = vrot.slane %v311, 6
    %v493 = vsel %vm482, %v490, %v492
    %v494 = vrot.slane %v312, 6
    %v495 = vsel %vm482, %v492, %v494
    %v496 = vsel %vm482, %v494, %v480
    %v505 = vsel %vm482, %v480, %v483
    %vm506 = vcmp.ge.s32.totalorder %v315, 2
    %vm507 = vcmp.ge.s32.totalorder %v316, 2
    %vm508 = vcmp.ge.s32.totalorder %v317, 2
    %vm509 = vcmp.ge.s32.totalorder %v318, 2
    %v510 = vsel %vm506, %v505, 0.0
    %v511 = vsel %vm507, %v485, 0.0
    %v512 = vsel %vm508, %v487, 0.0
    %v513 = vsel %vm509, %v489, 0.0
    %v514 = vsel %vm506, %v491, 0.0
    %v515 = vsel %vm507, %v493, 0.0
    %v516 = vsel %vm508, %v495, 0.0
    %v517 = vsel %vm509, %v496, 0.0
    %v518 = vrot.slane %v313, 7
    %vm520 = vcmask 1040384
    %v521 = vrot.slane %v306, 7
    %v522 = vrot.slane %v307, 7
    %v523 = vsel %vm520, %v521, %v522
    %v524 = vrot.slane %v308, 7
    %v525 = vsel %vm520, %v522, %v524
    %v526 = vrot.slane %v309, 7
    %v527 = vsel %vm520, %v524, %v526
    %v528 = vrot.slane %v310, 7
    %v529 = vsel %vm520, %v526, %v528
    %v530 = vrot.slane %v311, 7
    %v531 = vsel %vm520, %v528, %v530
    %v532 = vrot.slane %v312, 7
    %v533 = vsel %vm520, %v530, %v532
    %v534 = vsel %vm520, %v532, %v518
    %v543 = vsel %vm520, %v518, %v521
    %vm544 = vcmp.ge.s32.totalorder %v315, 1
    %vm545 = vcmp.ge.s32.totalorder %v316, 1
    %vm546 = vcmp.ge.s32.totalorder %v317, 1
    %vm547 = vcmp.ge.s32.totalorder %v318, 1
    %v548 = vsel %vm544, %v543, 0.0
    %v549 = vsel %vm545, %v523, 0.0
    %v550 = vsel %vm546, %v525, 0.0
    %v551 = vsel %vm547, %v527, 0.0
    %v552 = vsel %vm544, %v529, 0.0
    %v553 = vsel %vm545, %v531, 0.0
    %v554 = vsel %vm546, %v533, 0.0
    %v555 = vsel %vm547, %v534, 0.0
    %564 = vrot.lane.b32.xlu0 %v396, 32
    %v565 = vpop.permute.xlu0 %564
    %566 = vrot.lane.b32.xlu0 %v397, 32
    %v567 = vpop.permute.xlu0 %566
    %568 = vrot.lane.b32.xlu0 %v398, 32
    %v569 = vpop.permute.xlu0 %568
    %570 = vrot.lane.b32.xlu0 %v399, 32
    %v571 = vpop.permute.xlu0 %570
    %572 = vrot.lane.b32.xlu0 %v400, 32
    %v573 = vpop.permute.xlu0 %572
    %574 = vrot.lane.b32.xlu0 %v401, 32
    %v575 = vpop.permute.xlu0 %574
    %576 = vrot.lane.b32.xlu0 %v402, 32
    %v577 = vpop.permute.xlu0 %576
    %578 = vrot.lane.b32.xlu0 %v403, 32
    %v579 = vpop.permute.xlu0 %578
    %596 = vrot.lane.b32.xlu0 %v434, 64
    %v597 = vpop.permute.xlu0 %596
    %598 = vrot.lane.b32.xlu0 %v435, 64
    %v599 = vpop.permute.xlu0 %598
    %600 = vrot.lane.b32.xlu0 %v436, 64
    %v601 = vpop.permute.xlu0 %600
    %602 = vrot.lane.b32.xlu0 %v437, 64
    %v603 = vpop.permute.xlu0 %602
    %604 = vrot.lane.b32.xlu0 %v438, 64
    %v605 = vpop.permute.xlu0 %604
    %606 = vrot.lane.b32.xlu0 %v439, 64
    %v607 = vpop.permute.xlu0 %606
    %608 = vrot.lane.b32.xlu0 %v440, 64
    %v609 = vpop.permute.xlu0 %608
    %610 = vrot.lane.b32.xlu0 %v441, 64
    %v611 = vpop.permute.xlu0 %610
    %628 = vrot.lane.b32.xlu0 %v472, 96
    %v629 = vpop.permute.xlu0 %628
    %630 = vrot.lane.b32.xlu0 %v473, 96
    %v631 = vpop.permute.xlu0 %630
    %632 = vrot.lane.b32.xlu0 %v474, 96
    %v633 = vpop.permute.xlu0 %632
    %634 = vrot.lane.b32.xlu0 %v475, 96
    %v635 = vpop.permute.xlu0 %634
    %636 = vrot.lane.b32.xlu0 %v476, 96
    %v637 = vpop.permute.xlu0 %636
    %638 = vrot.lane.b32.xlu0 %v477, 96
    %v639 = vpop.permute.xlu0 %638
    %640 = vrot.lane.b32.xlu0 %v478, 96
    %v641 = vpop.permute.xlu0 %640
    %642 = vrot.lane.b32.xlu0 %v479, 96
    %v643 = vpop.permute.xlu0 %642
    %660 = vrot.lane.b32.xlu0 %v548, 32
    %v661 = vpop.permute.xlu0 %660
    %662 = vrot.lane.b32.xlu0 %v549, 32
    %v663 = vpop.permute.xlu0 %662
    %664 = vrot.lane.b32.xlu0 %v550, 32
    %v665 = vpop.permute.xlu0 %664
    %666 = vrot.lane.b32.xlu0 %v551, 32
    %v667 = vpop.permute.xlu0 %666
    %668 = vrot.lane.b32.xlu0 %v552, 32
    %v669 = vpop.permute.xlu0 %668
    %670 = vrot.lane.b32.xlu0 %v553, 32
    %v671 = vpop.permute.xlu0 %670
    %672 = vrot.lane.b32.xlu0 %v554, 32
    %v673 = vpop.permute.xlu0 %672
    %674 = vrot.lane.b32.xlu0 %v555, 32
    %v675 = vpop.permute.xlu0 %674
    %684 = vrot.lane.b32.xlu0 %v306, 64
    %v685 = vpop.permute.xlu0 %684
    %686 = vrot.lane.b32.xlu0 %v307, 64
    %v687 = vpop.permute.xlu0 %686
    %688 = vrot.lane.b32.xlu0 %v308, 64
    %v689 = vpop.permute.xlu0 %688
    %690 = vrot.lane.b32.xlu0 %v309, 64
    %v691 = vpop.permute.xlu0 %690
    %692 = vrot.lane.b32.xlu0 %v310, 64
    %v693 = vpop.permute.xlu0 %692
    %694 = vrot.lane.b32.xlu0 %v311, 64
    %v695 = vpop.permute.xlu0 %694
    %696 = vrot.lane.b32.xlu0 %v312, 64
    %v697 = vpop.permute.xlu0 %696
    %698 = vrot.lane.b32.xlu0 %v313, 64
    %v699 = vpop.permute.xlu0 %698
    %vm708 = vcmask 261120
    %v709 = vsel %vm708, %v358, %v565
    %v710 = vsel %vm708, %v359, %v567
    %v711 = vsel %vm708, %v360, %v569
    %v712 = vsel %vm708, %v361, %v571
    %v713 = vsel %vm708, %v362, %v573
    %v714 = vsel %vm708, %v363, %v575
    %v715 = vsel %vm708, %v364, %v577
    %v716 = vsel %vm708, %v365, %v579
    %vm717 = vcmask 523264
    %v718 = vsel %vm717, %v709, %v597
    %v719 = vsel %vm717, %v710, %v599
    %v720 = vsel %vm717, %v711, %v601
    %v721 = vsel %vm717, %v712, %v603
    %v722 = vsel %vm717, %v713, %v605
    %v723 = vsel %vm717, %v714, %v607
    %v724 = vsel %vm717, %v715, %v609
    %v725 = vsel %vm717, %v716, %v611
    %vm726 = vcmask 785408
    %v727 = vsel %vm726, %v718, %v629
    %v728 = vsel %vm726, %v719, %v631
    %v729 = vsel %vm726, %v720, %v633
    %v730 = vsel %vm726, %v721, %v635
    %v731 = vsel %vm726, %v722, %v637
    %v732 = vsel %vm726, %v723, %v639
    %v733 = vsel %vm726, %v724, %v641
    %v734 = vsel %vm726, %v725, %v643
    %v735 = vsel %vm708, %v510, %v661
    %v736 = vsel %vm708, %v511, %v663
    %v737 = vsel %vm708, %v512, %v665
    %v738 = vsel %vm708, %v513, %v667
    %v739 = vsel %vm708, %v514, %v669
    %v740 = vsel %vm708, %v515, %v671
    %v741 = vsel %vm708, %v516, %v673
    %v742 = vsel %vm708, %v517, %v675
    %v743 = vsel %vm717, %v735, %v685
    %v744 = vsel %vm717, %v736, %v687
    %v745 = vsel %vm717, %v737, %v689
    %v746 = vsel %vm717, %v738, %v691
    %v747 = vsel %vm717, %v739, %v693
    %v748 = vsel %vm717, %v740, %v695
    %v749 = vsel %vm717, %v741, %v697
    %v750 = vsel %vm717, %v742, %v699
    %v751 = vpack.c.bf16 %v728, %v727
    %v752 = vpack.c.bf16 %v744, %v743
    %v753 = vpack.c.bf16 %v730, %v729
    %v754 = vpack.c.bf16 %v746, %v745
    %v755 = vpack.c.bf16 %v732, %v731
    %v756 = vpack.c.bf16 %v748, %v747
    %v757 = vpack.c.bf16 %v734, %v733
    %v758 = vpack.c.bf16 %v750, %v749
    %v759 = vld [vmem:[#allocation5] sm:$0xff]
    %v760 = vld [vmem:[#allocation5 + $0x8] sm:$0xff]
    %v761 = vld [vmem:[#allocation5 + $0x10] sm:$0xff]
    %v762 = vld [vmem:[#allocation5 + $0x18] sm:$0xff]
    %v764 = vlaneseq
    %v765 = vshrl.u32 %v764, 7
    %v766 = vsub.s32 0, %v765
    %v767 = vrot.slane %v319, %v766
    %v773 = vunpack.c.l.b16 %v759
    %v774 = vunpack.c.h.b16 %v759
    %v775 = vunpack.c.l.b16 %v760
    %v776 = vunpack.c.h.b16 %v760
    %v777 = vunpack.c.l.b16 %v761
    %v778 = vunpack.c.h.b16 %v761
    %v779 = vunpack.c.l.b16 %v762
    %v780 = vunpack.c.h.b16 %v762
    %v781 = vpack.c.b16 %v775, %v773
    %v782 = vpack.c.b16 %v776, %v774
    %v783 = vpack.c.b16 %v779, %v777
    %v784 = vpack.c.b16 %v780, %v778
    %v788 = vsel %vm726, %v752, 0
    %v791 = vsel %vm726, %v754, 0
    %v794 = vsel %vm726, %v756, 0
    %v797 = vsel %vm726, %v758, 0
    %v800 = vsel %vm726, %v782, 0
    %v803 = vsel %vm726, %v784, 0
    %805 = vmatprep.subr.bf16.mxu0 %v800
    %806 = vmatpush1.bf16.xpose.msra.mxu0 %v781
    %807 = vmatprep.subr.bf16.mxu0 %v803
    %808 = vmatpush1.bf16.xpose.msra.mxu0 %v783
    %809 = vmatprep.subr.bf16.mxu0 0
    %810 = vmatpush1.bf16.xpose.msra.mxu0 0
    %811 = vmatprep.subr.bf16.mxu0 0
    %812 = vmatpush1.bf16.xpose.msra.mxu0 0
    %813 = vmatprep.subr.bf16.mxu0 0
    %814 = vmatpush1.bf16.xpose.msra.mxu0 0
    %815 = vmatprep.subr.bf16.mxu0 0
    %816 = vmatpush1.bf16.xpose.msra.mxu0 0
    %817 = vmatprep.subr.bf16.mxu0 0
    %818 = vmatpush1.bf16.xpose.msra.mxu0 0
    %819 = vmatprep.subr.bf16.mxu0 0
    %820 = vmatpush1.bf16.xpose.msra.mxu0 0
    %821 = vmatprep.subr.bf16.mxu0 0
    %822 = vmatpush1.bf16.xpose.msra.mxu0 0
    %823 = vmatprep.subr.bf16.mxu0 0
    %824 = vmatpush1.bf16.xpose.msra.mxu0 0
    %825 = vmatprep.subr.bf16.mxu0 0
    %826 = vmatpush1.bf16.xpose.msra.mxu0 0
    %827 = vmatprep.subr.bf16.mxu0 0
    %828 = vmatpush1.bf16.xpose.msra.mxu0 0
    %829 = vmatprep.subr.bf16.mxu0 0
    %830 = vmatpush1.bf16.xpose.msra.mxu0 0
    %831 = vmatprep.subr.bf16.mxu0 0
    %832 = vmatpush1.bf16.xpose.msra.mxu0 0
    %833 = vmatprep.subr.bf16.mxu0 0
    %834 = vmatpush1.bf16.xpose.msra.mxu0 0
    %835 = vmatprep.subr.bf16.mxu0 0
    %836 = vmatpush1.bf16.xpose.msra.mxu0 0
    %837 = vmatprep.mubr.bf16.mxu0 %v788
    %838 = vmatmul.mubr.bf16.gmra.mrb[0].mxu0 %v751
    %v839 = vpop.f32.mrb[0].mxu0
    %v840 = vadd.f32 %v767, %v839
    %v841 = vpop.f32.mrb[0].mxu0
    %v842 = vpop.f32.mrb[0].mxu0
    %v843 = vadd.f32 %v767, %v842
    %v844 = vpop.f32.mrb[0].mxu0
    %845 = vmatprep.mubr.bf16.mxu0 %v791
    %846 = vmatmul.mubr.bf16.gmra.mrb[0].mxu0 %v753
    %v847 = vpop.f32.mrb[0].mxu0
    %v848 = vadd.f32 %v767, %v847
    %v849 = vpop.f32.mrb[0].mxu0
    %v850 = vpop.f32.mrb[0].mxu0
    %v851 = vadd.f32 %v767, %v850
    %v852 = vpop.f32.mrb[0].mxu0
    %853 = vmatprep.mubr.bf16.mxu0 %v794
    %854 = vmatmul.mubr.bf16.gmra.mrb[0].mxu0 %v755
    %v855 = vpop.f32.mrb[0].mxu0
    %v856 = vadd.f32 %v767, %v855
    %v857 = vpop.f32.mrb[0].mxu0
    %v858 = vpop.f32.mrb[0].mxu0
    %v859 = vadd.f32 %v767, %v858
    %v860 = vpop.f32.mrb[0].mxu0
    %861 = vmatprep.mubr.bf16.mxu0 %v797
    %862 = vmatmul.mubr.bf16.gmra.mrb[0].mxu0 %v757
    %v863 = vpop.f32.mrb[0].mxu0
    %v864 = vadd.f32 %v767, %v863
    %v865 = vpop.f32.mrb[0].mxu0
    %v866 = vpop.f32.mrb[0].mxu0
    %v867 = vadd.f32 %v767, %v866
    %v868 = vpop.f32.mrb[0].mxu0
    %869 = vdwg.mxu0
    %v870 = vmax.f32 %v840, 0.0
    %v871 = vmax.f32 %v843, 0.0
    %v872 = vmax.f32 %v848, 0.0
    %v873 = vmax.f32 %v851, 0.0
    %v874 = vmax.f32 %v856, 0.0
    %v875 = vmax.f32 %v859, 0.0
    %v876 = vmax.f32 %v864, 0.0
    %v877 = vmax.f32 %v867, 0.0
    %v878 = vld [vmem:[#allocation26] sm:$0x1]
    %v880 = vrot.slane %v877, 2
    %v889 = vrot.slane %v870, 2
    %v890 = vrot.slane %v871, 2
    %v891 = vsel %vm330, %v889, %v890
    %v892 = vrot.slane %v872, 2
    %v893 = vsel %vm330, %v890, %v892
    %v894 = vrot.slane %v873, 2
    %v895 = vsel %vm330, %v892, %v894
    %v896 = vrot.slane %v874, 2
    %v897 = vsel %vm330, %v894, %v896
    %v898 = vrot.slane %v875, 2
    %v899 = vsel %vm330, %v896, %v898
    %v900 = vrot.slane %v876, 2
    %v901 = vsel %vm330, %v898, %v900
    %v902 = vsel %vm330, %v900, %v880
    %v911 = vsel %vm330, %v880, %v889
    %v912 = vsel %vm354, %v911, 0.0
    %v913 = vsel %vm355, %v891, 0.0
    %v914 = vsel %vm356, %v893, 0.0
    %v915 = vsel %vm357, %v895, 0.0
    %v916 = vsel %vm354, %v897, 0.0
    %v917 = vsel %vm355, %v899, 0.0
    %v918 = vsel %vm356, %v901, 0.0
    %v919 = vsel %vm357, %v902, 0.0
    %v920 = vrot.slane %v877, 3
    %v922 = vrot.slane %v870, 3
    %v923 = vrot.slane %v871, 3
    %v924 = vsel %vm368, %v922, %v923
    %v925 = vrot.slane %v872, 3
    %v926 = vsel %vm368, %v923, %v925
    %v927 = vrot.slane %v873, 3
    %v928 = vsel %vm368, %v925, %v927
    %v929 = vrot.slane %v874, 3
    %v930 = vsel %vm368, %v927, %v929
    %v931 = vrot.slane %v875, 3
    %v932 = vsel %vm368, %v929, %v931
    %v933 = vrot.slane %v876, 3
    %v934 = vsel %vm368, %v931, %v933
    %v935 = vsel %vm368, %v933, %v920
    %v944 = vsel %vm368, %v920, %v922
    %v945 = vsel %vm392, %v944, 0.0
    %v946 = vsel %vm393, %v924, 0.0
    %v947 = vsel %vm394, %v926, 0.0
    %v948 = vsel %vm395, %v928, 0.0
    %v949 = vsel %vm392, %v930, 0.0
    %v950 = vsel %vm393, %v932, 0.0
    %v951 = vsel %vm394, %v934, 0.0
    %v952 = vsel %vm395, %v935, 0.0
    %v953 = vrot.slane %v877, 4
    %v955 = vrot.slane %v870, 4
    %v956 = vrot.slane %v871, 4
    %v957 = vsel %vm406, %v955, %v956
    %v958 = vrot.slane %v872, 4
    %v959 = vsel %vm406, %v956, %v958
    %v960 = vrot.slane %v873, 4
    %v961 = vsel %vm406, %v958, %v960
    %v962 = vrot.slane %v874, 4
    %v963 = vsel %vm406, %v960, %v962
    %v964 = vrot.slane %v875, 4
    %v965 = vsel %vm406, %v962, %v964
    %v966 = vrot.slane %v876, 4
    %v967 = vsel %vm406, %v964, %v966
    %v968 = vsel %vm406, %v966, %v953
    %v977 = vsel %vm406, %v953, %v955
    %v978 = vsel %vm430, %v977, 0.0
    %v979 = vsel %vm431, %v957, 0.0
    %v980 = vsel %vm432, %v959, 0.0
    %v981 = vsel %vm433, %v961, 0.0
    %v982 = vsel %vm430, %v963, 0.0
    %v983 = vsel %vm431, %v965, 0.0
    %v984 = vsel %vm432, %v967, 0.0
    %v985 = vsel %vm433, %v968, 0.0
    %v986 = vrot.slane %v877, 5
    %v988 = vrot.slane %v870, 5
    %v989 = vrot.slane %v871, 5
    %v990 = vsel %vm444, %v988, %v989
    %v991 = vrot.slane %v872, 5
    %v992 = vsel %vm444, %v989, %v991
    %v993 = vrot.slane %v873, 5
    %v994 = vsel %vm444, %v991, %v993
    %v995 = vrot.slane %v874, 5
    %v996 = vsel %vm444, %v993, %v995
    %v997 = vrot.slane %v875, 5
    %v998 = vsel %vm444, %v995, %v997
    %v999 = vrot.slane %v876, 5
    %v1000 = vsel %vm444, %v997, %v999
    %v1001 = vsel %vm444, %v999, %v986
    %v1010 = vsel %vm444, %v986, %v988
    %v1011 = vsel %vm468, %v1010, 0.0
    %v1012 = vsel %vm469, %v990, 0.0
    %v1013 = vsel %vm470, %v992, 0.0
    %v1014 = vsel %vm471, %v994, 0.0
    %v1015 = vsel %vm468, %v996, 0.0
    %v1016 = vsel %vm469, %v998, 0.0
    %v1017 = vsel %vm470, %v1000, 0.0
    %v1018 = vsel %vm471, %v1001, 0.0
    %v1019 = vrot.slane %v877, 6
    %v1021 = vrot.slane %v870, 6
    %v1022 = vrot.slane %v871, 6
    %v1023 = vsel %vm482, %v1021, %v1022
    %v1024 = vrot.slane %v872, 6
    %v1025 = vsel %vm482, %v1022, %v1024
    %v1026 = vrot.slane %v873, 6
    %v1027 = vsel %vm482, %v1024, %v1026
    %v1028 = vrot.slane %v874, 6
    %v1029 = vsel %vm482, %v1026, %v1028
    %v1030 = vrot.slane %v875, 6
    %v1031 = vsel %vm482, %v1028, %v1030
    %v1032 = vrot.slane %v876, 6
    %v1033 = vsel %vm482, %v1030, %v1032
    %v1034 = vsel %vm482, %v1032, %v1019
    %v1043 = vsel %vm482, %v1019, %v1021
    %v1044 = vsel %vm506, %v1043, 0.0
    %v1045 = vsel %vm507, %v1023, 0.0
    %v1046 = vsel %vm508, %v1025, 0.0
    %v1047 = vsel %vm509, %v1027, 0.0
    %v1048 = vsel %vm506, %v1029, 0.0
    %v1049 = vsel %vm507, %v1031, 0.0
    %v1050 = vsel %vm508, %v1033, 0.0
    %v1051 = vsel %vm509, %v1034, 0.0
    %v1052 = vrot.slane %v877, 7
    %v1054 = vrot.slane %v870, 7
    %v1055 = vrot.slane %v871, 7
    %v1056 = vsel %vm520, %v1054, %v1055
    %v1057 = vrot.slane %v872, 7
    %v1058 = vsel %vm520, %v1055, %v1057
    %v1059 = vrot.slane %v873, 7
    %v1060 = vsel %vm520, %v1057, %v1059
    %v1061 = vrot.slane %v874, 7
    %v1062 = vsel %vm520, %v1059, %v1061
    %v1063 = vrot.slane %v875, 7
    %v1064 = vsel %vm520, %v1061, %v1063
    %v1065 = vrot.slane %v876, 7
    %v1066 = vsel %vm520, %v1063, %v1065
    %v1067 = vsel %vm520, %v1065, %v1052
    %v1076 = vsel %vm520, %v1052, %v1054
    %v1077 = vsel %vm544, %v1076, 0.0
    %v1078 = vsel %vm545, %v1056, 0.0
    %v1079 = vsel %vm546, %v1058, 0.0
    %v1080 = vsel %vm547, %v1060, 0.0
    %v1081 = vsel %vm544, %v1062, 0.0
    %v1082 = vsel %vm545, %v1064, 0.0
    %v1083 = vsel %vm546, %v1066, 0.0
    %v1084 = vsel %vm547, %v1067, 0.0
    %1093 = vrot.lane.b32.xlu0 %v945, 32
    %v1094 = vpop.permute.xlu0 %1093
    %1095 = vrot.lane.b32.xlu0 %v946, 32
    %v1096 = vpop.permute.xlu0 %1095
    %1097 = vrot.lane.b32.xlu0 %v947, 32
    %v1098 = vpop.permute.xlu0 %1097
    %1099 = vrot.lane.b32.xlu0 %v948, 32
    %v1100 = vpop.permute.xlu0 %1099
    %1101 = vrot.lane.b32.xlu0 %v949, 32
    %v1102 = vpop.permute.xlu0 %1101
    %1103 = vrot.lane.b32.xlu0 %v950, 32
    %v1104 = vpop.permute.xlu0 %1103
    %1105 = vrot.lane.b32.xlu0 %v951, 32
    %v1106 = vpop.permute.xlu0 %1105
    %1107 = vrot.lane.b32.xlu0 %v952, 32
    %v1108 = vpop.permute.xlu0 %1107
    %1125 = vrot.lane.b32.xlu0 %v978, 64
    %v1126 = vpop.permute.xlu0 %1125
    %1127 = vrot.lane.b32.xlu0 %v979, 64
    %v1128 = vpop.permute.xlu0 %1127
    %1129 = vrot.lane.b32.xlu0 %v980, 64
    %v1130 = vpop.permute.xlu0 %1129
    %1131 = vrot.lane.b32.xlu0 %v981, 64
    %v1132 = vpop.permute.xlu0 %1131
    %1133 = vrot.lane.b32.xlu0 %v982, 64
    %v1134 = vpop.permute.xlu0 %1133
    %1135 = vrot.lane.b32.xlu0 %v983, 64
    %v1136 = vpop.permute.xlu0 %1135
    %1137 = vrot.lane.b32.xlu0 %v984, 64
    %v1138 = vpop.permute.xlu0 %1137
    %1139 = vrot.lane.b32.xlu0 %v985, 64
    %v1140 = vpop.permute.xlu0 %1139
    %1157 = vrot.lane.b32.xlu0 %v1011, 96
    %v1158 = vpop.permute.xlu0 %1157
    %1159 = vrot.lane.b32.xlu0 %v1012, 96
    %v1160 = vpop.permute.xlu0 %1159
    %1161 = vrot.lane.b32.xlu0 %v1013, 96
    %v1162 = vpop.permute.xlu0 %1161
    %1163 = vrot.lane.b32.xlu0 %v1014, 96
    %v1164 = vpop.permute.xlu0 %1163
    %1165 = vrot.lane.b32.xlu0 %v1015, 96
    %v1166 = vpop.permute.xlu0 %1165
    %1167 = vrot.lane.b32.xlu0 %v1016, 96
    %v1168 = vpop.permute.xlu0 %1167
    %1169 = vrot.lane.b32.xlu0 %v1017, 96
    %v1170 = vpop.permute.xlu0 %1169
    %1171 = vrot.lane.b32.xlu0 %v1018, 96
    %v1172 = vpop.permute.xlu0 %1171
    %1189 = vrot.lane.b32.xlu0 %v1077, 32
    %v1190 = vpop.permute.xlu0 %1189
    %1191 = vrot.lane.b32.xlu0 %v1078, 32
    %v1192 = vpop.permute.xlu0 %1191
    %1193 = vrot.lane.b32.xlu0 %v1079, 32
    %v1194 = vpop.permute.xlu0 %1193
    %1195 = vrot.lane.b32.xlu0 %v1080, 32
    %v1196 = vpop.permute.xlu0 %1195
    %1197 = vrot.lane.b32.xlu0 %v1081, 32
    %v1198 = vpop.permute.xlu0 %1197
    %1199 = vrot.lane.b32.xlu0 %v1082, 32
    %v1200 = vpop.permute.xlu0 %1199
    %1201 = vrot.lane.b32.xlu0 %v1083, 32
    %v1202 = vpop.permute.xlu0 %1201
    %1203 = vrot.lane.b32.xlu0 %v1084, 32
    %v1204 = vpop.permute.xlu0 %1203
    %1213 = vrot.lane.b32.xlu0 %v870, 64
    %v1214 = vpop.permute.xlu0 %1213
    %1215 = vrot.lane.b32.xlu0 %v871, 64
    %v1216 = vpop.permute.xlu0 %1215
    %1217 = vrot.lane.b32.xlu0 %v872, 64
    %v1218 = vpop.permute.xlu0 %1217
    %1219 = vrot.lane.b32.xlu0 %v873, 64
    %v1220 = vpop.permute.xlu0 %1219
    %1221 = vrot.lane.b32.xlu0 %v874, 64
    %v1222 = vpop.permute.xlu0 %1221
    %1223 = vrot.lane.b32.xlu0 %v875, 64
    %v1224 = vpop.permute.xlu0 %1223
    %1225 = vrot.lane.b32.xlu0 %v876, 64
    %v1226 = vpop.permute.xlu0 %1225
    %1227 = vrot.lane.b32.xlu0 %v877, 64
    %v1228 = vpop.permute.xlu0 %1227
    %v1237 = vsel %vm708, %v912, %v1094
    %v1238 = vsel %vm708, %v913, %v1096
    %v1239 = vsel %vm708, %v914, %v1098
    %v1240 = vsel %vm708, %v915, %v1100
    %v1241 = vsel %vm708, %v916, %v1102
    %v1242 = vsel %vm708, %v917, %v1104
    %v1243 = vsel %vm708, %v918, %v1106
    %v1244 = vsel %vm708, %v919, %v1108
    %v1245 = vsel %vm717, %v1237, %v1126
    %v1246 = vsel %vm717, %v1238, %v1128
    %v1247 = vsel %vm717, %v1239, %v1130
    %v1248 = vsel %vm717, %v1240, %v1132
    %v1249 = vsel %vm717, %v1241, %v1134
    %v1250 = vsel %vm717, %v1242, %v1136
    %v1251 = vsel %vm717, %v1243, %v1138
    %v1252 = vsel %vm717, %v1244, %v1140
    %v1253 = vsel %vm726, %v1245, %v1158
    %v1254 = vsel %vm726, %v1246, %v1160
    %v1255 = vsel %vm726, %v1247, %v1162
    %v1256 = vsel %vm726, %v1248, %v1164
    %v1257 = vsel %vm726, %v1249, %v1166
    %v1258 = vsel %vm726, %v1250, %v1168
    %v1259 = vsel %vm726, %v1251, %v1170
    %v1260 = vsel %vm726, %v1252, %v1172
    %v1261 = vsel %vm708, %v1044, %v1190
    %v1262 = vsel %vm708, %v1045, %v1192
    %v1263 = vsel %vm708, %v1046, %v1194
    %v1264 = vsel %vm708, %v1047, %v1196
    %v1265 = vsel %vm708, %v1048, %v1198
    %v1266 = vsel %vm708, %v1049, %v1200
    %v1267 = vsel %vm708, %v1050, %v1202
    %v1268 = vsel %vm708, %v1051, %v1204
    %v1269 = vsel %vm717, %v1261, %v1214
    %v1270 = vsel %vm717, %v1262, %v1216
    %v1271 = vsel %vm717, %v1263, %v1218
    %v1272 = vsel %vm717, %v1264, %v1220
    %v1273 = vsel %vm717, %v1265, %v1222
    %v1274 = vsel %vm717, %v1266, %v1224
    %v1275 = vsel %vm717, %v1267, %v1226
    %v1276 = vsel %vm717, %v1268, %v1228
    %v1277 = vpack.c.bf16 %v1254, %v1253
    %v1278 = vpack.c.bf16 %v1270, %v1269
    %v1279 = vpack.c.bf16 %v1256, %v1255
    %v1280 = vpack.c.bf16 %v1272, %v1271
    %v1281 = vpack.c.bf16 %v1258, %v1257
    %v1282 = vpack.c.bf16 %v1274, %v1273
    %v1283 = vpack.c.bf16 %v1260, %v1259
    %v1284 = vpack.c.bf16 %v1276, %v1275
    %v1285 = vld [vmem:[#allocation7] sm:$0xff]
    %v1286 = vld [vmem:[#allocation7 + $0x8] sm:$0xff]
    %v1287 = vld [vmem:[#allocation7 + $0x10] sm:$0xff]
    %v1288 = vld [vmem:[#allocation7 + $0x18] sm:$0xff]
    %v1290 = vlaneseq
    %v1291 = vshrl.u32 %v1290, 7
    %v1292 = vsub.s32 0, %v1291
    %v1293 = vrot.slane %v878, %v1292
    %v1299 = vunpack.c.l.b16 %v1285
    %v1300 = vunpack.c.h.b16 %v1285
    %v1301 = vunpack.c.l.b16 %v1286
    %v1302 = vunpack.c.h.b16 %v1286
    %v1303 = vunpack.c.l.b16 %v1287
    %v1304 = vunpack.c.h.b16 %v1287
    %v1305 = vunpack.c.l.b16 %v1288
    %v1306 = vunpack.c.h.b16 %v1288
    %v1307 = vpack.c.b16 %v1301, %v1299
    %v1308 = vpack.c.b16 %v1302, %v1300
    %v1309 = vpack.c.b16 %v1305, %v1303
    %v1310 = vpack.c.b16 %v1306, %v1304
    %v1314 = vsel %vm726, %v1278, 0
    %v1317 = vsel %vm726, %v1280, 0
    %v1320 = vsel %vm726, %v1282, 0
    %v1323 = vsel %vm726, %v1284, 0
    %v1326 = vsel %vm726, %v1308, 0
    %v1329 = vsel %vm726, %v1310, 0
    %1331 = vmatprep.subr.bf16.mxu0 %v1326
    %1332 = vmatpush1.bf16.xpose.msra.mxu0 %v1307
    %1333 = vmatprep.subr.bf16.mxu0 %v1329
    %1334 = vmatpush1.bf16.xpose.msra.mxu0 %v1309
    %1335 = vmatprep.subr.bf16.mxu0 0
    %1336 = vmatpush1.bf16.xpose.msra.mxu0 0
    %1337 = vmatprep.subr.bf16.mxu0 0
    %1338 = vmatpush1.bf16.xpose.msra.mxu0 0
    %1339 = vmatprep.subr.bf16.mxu0 0
    %1340 = vmatpush1.bf16.xpose.msra.mxu0 0
    %1341 = vmatprep.subr.bf16.mxu0 0
    %1342 = vmatpush1.bf16.xpose.msra.mxu0 0
    %1343 = vmatprep.subr.bf16.mxu0 0
    %1344 = vmatpush1.bf16.xpose.msra.mxu0 0
    %1345 = vmatprep.subr.bf16.mxu0 0
    %1346 = vmatpush1.bf16.xpose.msra.mxu0 0
    %1347 = vmatprep.subr.bf16.mxu0 0
    %1348 = vmatpush1.bf16.xpose.msra.mxu0 0
    %1349 = vmatprep.subr.bf16.mxu0 0
    %1350 = vmatpush1.bf16.xpose.msra.mxu0 0
    %1351 = vmatprep.subr.bf16.mxu0 0
    %1352 = vmatpush1.bf16.xpose.msra.mxu0 0
    %1353 = vmatprep.subr.bf16.mxu0 0
    %1354 = vmatpush1.bf16.xpose.msra.mxu0 0
    %1355 = vmatprep.subr.bf16.mxu0 0
    %1356 = vmatpush1.bf16.xpose.msra.mxu0 0
    %1357 = vmatprep.subr.bf16.mxu0 0
    %1358 = vmatpush1.bf16.xpose.msra.mxu0 0
    %1359 = vmatprep.subr.bf16.mxu0 0
    %1360 = vmatpush1.bf16.xpose.msra.mxu0 0
    %1361 = vmatprep.subr.bf16.mxu0 0
    %1362 = vmatpush1.bf16.xpose.msra.mxu0 0
    %1363 = vmatprep.mubr.bf16.mxu0 %v1314
    %1364 = vmatmul.mubr.bf16.gmra.mrb[0].mxu0 %v1277
    %v1365 = vpop.f32.mrb[0].mxu0
    %v1366 = vadd.f32 %v1293, %v1365
    %v1367 = vpop.f32.mrb[0].mxu0
    %v1368 = vpop.f32.mrb[0].mxu0
    %v1369 = vadd.f32 %v1293, %v1368
    %v1370 = vpop.f32.mrb[0].mxu0
    %1371 = vmatprep.mubr.bf16.mxu0 %v1317
    %1372 = vmatmul.mubr.bf16.gmra.mrb[0].mxu0 %v1279
    %v1373 = vpop.f32.mrb[0].mxu0
    %v1374 = vadd.f32 %v1293, %v1373
    %v1375 = vpop.f32.mrb[0].mxu0
    %v1376 = vpop.f32.mrb[0].mxu0
    %v1377 = vadd.f32 %v1293, %v1376
    %v1378 = vpop.f32.mrb[0].mxu0
    %1379 = vmatprep.mubr.bf16.mxu0 %v1320
    %1380 = vmatmul.mubr.bf16.gmra.mrb[0].mxu0 %v1281
    %v1381 = vpop.f32.mrb[0].mxu0
    %v1382 = vadd.f32 %v1293, %v1381
    %v1383 = vpop.f32.mrb[0].mxu0
    %v1384 = vpop.f32.mrb[0].mxu0
    %v1385 = vadd.f32 %v1293, %v1384
    %v1386 = vpop.f32.mrb[0].mxu0
    %1387 = vmatprep.mubr.bf16.mxu0 %v1323
    %1388 = vmatmul.mubr.bf16.gmra.mrb[0].mxu0 %v1283
    %v1389 = vpop.f32.mrb[0].mxu0
    %v1390 = vadd.f32 %v1293, %v1389
    %v1391 = vpop.f32.mrb[0].mxu0
    %v1392 = vpop.f32.mrb[0].mxu0
    %v1393 = vadd.f32 %v1293, %v1392
    %v1394 = vpop.f32.mrb[0].mxu0
    %1395 = vdwg.mxu0
    %v1396 = vmax.f32 %v1366, 0.0
    %v1397 = vmax.f32 %v1369, 0.0
    %v1398 = vmax.f32 %v1374, 0.0
    %v1399 = vmax.f32 %v1377, 0.0
    %v1400 = vmax.f32 %v1382, 0.0
    %v1401 = vmax.f32 %v1385, 0.0
    %v1402 = vmax.f32 %v1390, 0.0
    %v1403 = vmax.f32 %v1393, 0.0
    %v1404 = vpack.c.bf16 %v307, %v306
    %v1405 = vpack.c.bf16 %v309, %v308
    %v1406 = vpack.c.bf16 %v311, %v310
    %v1407 = vpack.c.bf16 %v313, %v312
    %v1408 = vld [vmem:[%s19] sm:$0xf]
    %v1409 = vld [vmem:[%s19 + $0x4] sm:$0xf]
    %v1410 = vld [vmem:[%s19 + $0x8] sm:$0xf]
    %v1411 = vld [vmem:[%s19 + $0xc] sm:$0xf]
    %v1412 = vld [vmem:[%s20] sm:$0x1]
    %v1414 = vlaneseq
    %v1415 = vshrl.u32 %v1414, 7
    %v1416 = vsub.s32 0, %v1415
    %v1417 = vrot.slane %v1412, %v1416
    %v1423 = vunpack.c.l.b16 %v1408
    %v1424 = vunpack.c.l.b16 %v1409
    %v1425 = vunpack.c.l.b16 %v1410
    %v1426 = vunpack.c.l.b16 %v1411
    %v1427 = vpack.c.b16 %v1424, %v1423
    %v1428 = vpack.c.b16 %v1426, %v1425
    %v1432 = vsel %vm708, %v1404, 0
    %v1435 = vsel %vm708, %v1405, 0
    %v1438 = vsel %vm708, %v1406, 0
    %v1441 = vsel %vm708, %v1407, 0
    %1443 = vmatprep.subr.bf16.mxu0 0
    %1444 = vmatpush1.bf16.msra.mxu0 %v1427
    %1445 = vmatprep.subr.bf16.mxu0 0
    %1446 = vmatpush1.bf16.msra.mxu0 %v1428
    %1447 = vmatprep.subr.bf16.mxu0 0
    %1448 = vmatpush1.bf16.msra.mxu0 0
    %1449 = vmatprep.subr.bf16.mxu0 0
    %1450 = vmatpush1.bf16.msra.mxu0 0
    %1451 = vmatprep.subr.bf16.mxu0 0
    %1452 = vmatpush1.bf16.msra.mxu0 0
    %1453 = vmatprep.subr.bf16.mxu0 0
    %1454 = vmatpush1.bf16.msra.mxu0 0
    %1455 = vmatprep.subr.bf16.mxu0 0
    %1456 = vmatpush1.bf16.msra.mxu0 0
    %1457 = vmatprep.subr.bf16.mxu0 0
    %1458 = vmatpush1.bf16.msra.mxu0 0
    %1459 = vmatprep.subr.bf16.mxu0 0
    %1460 = vmatpush1.bf16.msra.mxu0 0
    %1461 = vmatprep.subr.bf16.mxu0 0
    %1462 = vmatpush1.bf16.msra.mxu0 0
    %1463 = vmatprep.subr.bf16.mxu0 0
    %1464 = vmatpush1.bf16.msra.mxu0 0
    %1465 = vmatprep.subr.bf16.mxu0 0
    %1466 = vmatpush1.bf16.msra.mxu0 0
    %1467 = vmatprep.subr.bf16.mxu0 0
    %1468 = vmatpush1.bf16.msra.mxu0 0
    %1469 = vmatprep.subr.bf16.mxu0 0
    %1470 = vmatpush1.bf16.msra.mxu0 0
    %1471 = vmatprep.subr.bf16.mxu0 0
    %1472 = vmatpush1.bf16.msra.mxu0 0
    %1473 = vmatprep.subr.bf16.mxu0 0
    %1474 = vmatpush1.bf16.msra.mxu0 0
    %1475 = vmatprep.mubr.bf16.mxu0 0
    %1476 = vmatmul.mubr.bf16.gmra.mrb[0].mxu0 %v1432
    %v1477 = vpop.f32.mrb[0].mxu0
    %v1478 = vadd.f32 %v1417, %v1477
    %v1479 = vpop.f32.mrb[0].mxu0
    %v1480 = vpop.f32.mrb[0].mxu0
    %v1481 = vadd.f32 %v1417, %v1480
    %v1482 = vpop.f32.mrb[0].mxu0
    %1483 = vmatprep.mubr.bf16.mxu0 0
    %1484 = vmatmul.mubr.bf16.gmra.mrb[0].mxu0 %v1435
    %v1485 = vpop.f32.mrb[0].mxu0
    %v1486 = vadd.f32 %v1417, %v1485
    %v1487 = vpop.f32.mrb[0].mxu0
    %v1488 = vpop.f32.mrb[0].mxu0
    %v1489 = vadd.f32 %v1417, %v1488
    %v1490 = vpop.f32.mrb[0].mxu0
    %1491 = vmatprep.mubr.bf16.mxu0 0
    %1492 = vmatmul.mubr.bf16.gmra.mrb[0].mxu0 %v1438
    %v1493 = vpop.f32.mrb[0].mxu0
    %v1494 = vadd.f32 %v1417, %v1493
    %v1495 = vpop.f32.mrb[0].mxu0
    %v1496 = vpop.f32.mrb[0].mxu0
    %v1497 = vadd.f32 %v1417, %v1496
    %v1498 = vpop.f32.mrb[0].mxu0
    %1499 = vmatprep.mubr.bf16.mxu0 0
    %1500 = vmatmul.mubr.bf16.gmra.mrb[0].mxu0 %v1441
    %v1501 = vpop.f32.mrb[0].mxu0
    %v1502 = vadd.f32 %v1417, %v1501
    %v1503 = vpop.f32.mrb[0].mxu0
    %v1504 = vpop.f32.mrb[0].mxu0
    %v1505 = vadd.f32 %v1417, %v1504
    %v1506 = vpop.f32.mrb[0].mxu0
    %1507 = vdwg.mxu0
    %v1508 = vadd.f32 %v1396, %v1478
    %v1509 = vadd.f32 %v1397, %v1481
    %v1510 = vadd.f32 %v1398, %v1486
    %v1511 = vadd.f32 %v1399, %v1489
    %v1512 = vadd.f32 %v1400, %v1494
    %v1513 = vadd.f32 %v1401, %v1497
    %v1514 = vadd.f32 %v1402, %v1502
    %v1515 = vadd.f32 %v1403, %v1505
    %v1516 = vmax.f32 %v1508, 0.0
    %v1517 = vmax.f32 %v1509, 0.0
    %v1518 = vmax.f32 %v1510, 0.0
    %v1519 = vmax.f32 %v1511, 0.0
    %v1520 = vmax.f32 %v1512, 0.0
    %v1521 = vmax.f32 %v1513, 0.0
    %v1522 = vmax.f32 %v1514, 0.0
    %v1523 = vmax.f32 %v1515, 0.0
    %s1524 = scalar_lea.vmem [#allocation25], 1
    %v1525 = vld [vmem:[%s1524] sm:$0x1]
    %v1528 = vrot.slane %v1522, 4
    %v1529 = vrot.slane %v1523, 4
    %v1530 = vsel %vm406, %v1528, %v1529
    %v1539 = vrot.slane %v1516, 4
    %v1540 = vrot.slane %v1517, 4
    %v1541 = vsel %vm406, %v1539, %v1540
    %v1542 = vrot.slane %v1518, 4
    %v1543 = vsel %vm406, %v1540, %v1542
    %v1544 = vrot.slane %v1519, 4
    %v1545 = vsel %vm406, %v1542, %v1544
    %v1546 = vrot.slane %v1520, 4
    %v1547 = vsel %vm406, %v1544, %v1546
    %v1548 = vrot.slane %v1521, 4
    %v1549 = vsel %vm406, %v1546, %v1548
    %v1550 = vsel %vm406, %v1548, %v1528
    %v1558 = vsel %vm406, %v1529, %v1539
    %vm1559 = vcmp.ge.s32.totalorder %v315, 12
    %vm1560 = vcmp.ge.s32.totalorder %v316, 12
    %vm1561 = vcmp.ge.s32.totalorder %v317, 12
    %vm1562 = vcmp.ge.s32.totalorder %v318, 12
    %v1563 = vsel %vm1559, %v1530, 0.0
    %v1564 = vsel %vm1560, %v1558, 0.0
    %v1565 = vsel %vm1561, %v1541, 0.0
    %v1566 = vsel %vm1562, %v1543, 0.0
    %v1567 = vsel %vm1559, %v1545, 0.0
    %v1568 = vsel %vm1560, %v1547, 0.0
    %v1569 = vsel %vm1561, %v1549, 0.0
    %v1570 = vsel %vm1562, %v1550, 0.0
    %v1571 = vrot.slane %v1522, 6
    %v1572 = vrot.slane %v1523, 6
    %v1573 = vsel %vm482, %v1571, %v1572
    %v1576 = vrot.slane %v1516, 6
    %v1577 = vrot.slane %v1517, 6
    %v1578 = vsel %vm482, %v1576, %v1577
    %v1579 = vrot.slane %v1518, 6
    %v1580 = vsel %vm482, %v1577, %v1579
    %v1581 = vrot.slane %v1519, 6
    %v1582 = vsel %vm482, %v1579, %v1581
    %v1583 = vrot.slane %v1520, 6
    %v1584 = vsel %vm482, %v1581, %v1583
    %v1585 = vrot.slane %v1521, 6
    %v1586 = vsel %vm482, %v1583, %v1585
    %v1587 = vsel %vm482, %v1585, %v1571
    %v1595 = vsel %vm482, %v1572, %v1576
    %vm1596 = vcmp.ge.s32.totalorder %v315, 10
    %vm1597 = vcmp.ge.s32.totalorder %v316, 10
    %vm1598 = vcmp.ge.s32.totalorder %v317, 10
    %vm1599 = vcmp.ge.s32.totalorder %v318, 10
    %v1600 = vsel %vm1596, %v1573, 0.0
    %v1601 = vsel %vm1597, %v1595, 0.0
    %v1602 = vsel %vm1598, %v1578, 0.0
    %v1603 = vsel %vm1599, %v1580, 0.0
    %v1604 = vsel %vm1596, %v1582, 0.0
    %v1605 = vsel %vm1597, %v1584, 0.0
    %v1606 = vsel %vm1598, %v1586, 0.0
    %v1607 = vsel %vm1599, %v1587, 0.0
    %vm1608 = vcmp.ge.s32.totalorder %v315, 8
    %vm1609 = vcmp.ge.s32.totalorder %v316, 8
    %vm1610 = vcmp.ge.s32.totalorder %v317, 8
    %vm1611 = vcmp.ge.s32.totalorder %v318, 8
    %v1612 = vsel %vm1608, %v1523, 0.0
    %v1613 = vsel %vm1609, %v1516, 0.0
    %v1614 = vsel %vm1610, %v1517, 0.0
    %v1615 = vsel %vm1611, %v1518, 0.0
    %v1616 = vsel %vm1608, %v1519, 0.0
    %v1617 = vsel %vm1609, %v1520, 0.0
    %v1618 = vsel %vm1610, %v1521, 0.0
    %v1619 = vsel %vm1611, %v1522, 0.0
    %v1620 = vrot.slane %v1523, 2
    %v1622 = vrot.slane %v1516, 2
    %v1623 = vrot.slane %v1517, 2
    %v1624 = vsel %vm330, %v1622, %v1623
    %v1625 = vrot.slane %v1518, 2
    %v1626 = vsel %vm330, %v1623, %v1625
    %v1627 = vrot.slane %v1519, 2
    %v1628 = vsel %vm330, %v1625, %v1627
    %v1629 = vrot.slane %v1520, 2
    %v1630 = vsel %vm330, %v1627, %v1629
    %v1631 = vrot.slane %v1521, 2
    %v1632 = vsel %vm330, %v1629, %v1631
    %v1633 = vrot.slane %v1522, 2
    %v1634 = vsel %vm330, %v1631, %v1633
    %v1635 = vsel %vm330, %v1633, %v1620
    %v1644 = vsel %vm330, %v1620, %v1622
    %v1645 = vsel %vm354, %v1644, 0.0
    %v1646 = vsel %vm355, %v1624, 0.0
    %v1647 = vsel %vm356, %v1626, 0.0
    %v1648 = vsel %vm357, %v1628, 0.0
    %v1649 = vsel %vm354, %v1630, 0.0
    %v1650 = vsel %vm355, %v1632, 0.0
    %v1651 = vsel %vm356, %v1634, 0.0
    %v1652 = vsel %vm357, %v1635, 0.0
    %v1653 = vsel %vm430, %v1558, 0.0
    %v1654 = vsel %vm431, %v1541, 0.0
    %v1655 = vsel %vm432, %v1543, 0.0
    %v1656 = vsel %vm433, %v1545, 0.0
    %v1657 = vsel %vm430, %v1547, 0.0
    %v1658 = vsel %vm431, %v1549, 0.0
    %v1659 = vsel %vm432, %v1550, 0.0
    %v1660 = vsel %vm433, %v1530, 0.0
    %v1661 = vsel %vm506, %v1595, 0.0
    %v1662 = vsel %vm507, %v1578, 0.0
    %v1663 = vsel %vm508, %v1580, 0.0
    %v1664 = vsel %vm509, %v1582, 0.0
    %v1665 = vsel %vm506, %v1584, 0.0
    %v1666 = vsel %vm507, %v1586, 0.0
    %v1667 = vsel %vm508, %v1587, 0.0
    %v1668 = vsel %vm509, %v1573, 0.0
    %1677 = vrot.lane.b32.xlu0 %v1600, 32
    %v1678 = vpop.permute.xlu0 %1677
    %1679 = vrot.lane.b32.xlu0 %v1601, 32
    %v1680 = vpop.permute.xlu0 %1679
    %1681 = vrot.lane.b32.xlu0 %v1602, 32
    %v1682 = vpop.permute.xlu0 %1681
    %1683 = vrot.lane.b32.xlu0 %v1603, 32
    %v1684 = vpop.permute.xlu0 %1683
    %1685 = vrot.lane.b32.xlu0 %v1604, 32
    %v1686 = vpop.permute.xlu0 %1685
    %1687 = vrot.lane.b32.xlu0 %v1605, 32
    %v1688 = vpop.permute.xlu0 %1687
    %1689 = vrot.lane.b32.xlu0 %v1606, 32
    %v1690 = vpop.permute.xlu0 %1689
    %1691 = vrot.lane.b32.xlu0 %v1607, 32
    %v1692 = vpop.permute.xlu0 %1691
    %1709 = vrot.lane.b32.xlu0 %v1612, 64
    %v1710 = vpop.permute.xlu0 %1709
    %1711 = vrot.lane.b32.xlu0 %v1613, 64
    %v1712 = vpop.permute.xlu0 %1711
    %1713 = vrot.lane.b32.xlu0 %v1614, 64
    %v1714 = vpop.permute.xlu0 %1713
    %1715 = vrot.lane.b32.xlu0 %v1615, 64
    %v1716 = vpop.permute.xlu0 %1715
    %1717 = vrot.lane.b32.xlu0 %v1616, 64
    %v1718 = vpop.permute.xlu0 %1717
    %1719 = vrot.lane.b32.xlu0 %v1617, 64
    %v1720 = vpop.permute.xlu0 %1719
    %1721 = vrot.lane.b32.xlu0 %v1618, 64
    %v1722 = vpop.permute.xlu0 %1721
    %1723 = vrot.lane.b32.xlu0 %v1619, 64
    %v1724 = vpop.permute.xlu0 %1723
    %1741 = vrot.lane.b32.xlu0 %v1645, 96
    %v1742 = vpop.permute.xlu0 %1741
    %1743 = vrot.lane.b32.xlu0 %v1646, 96
    %v1744 = vpop.permute.xlu0 %1743
    %1745 = vrot.lane.b32.xlu0 %v1647, 96
    %v1746 = vpop.permute.xlu0 %1745
    %1747 = vrot.lane.b32.xlu0 %v1648, 96
    %v1748 = vpop.permute.xlu0 %1747
    %1749 = vrot.lane.b32.xlu0 %v1649, 96
    %v1750 = vpop.permute.xlu0 %1749
    %1751 = vrot.lane.b32.xlu0 %v1650, 96
    %v1752 = vpop.permute.xlu0 %1751
    %1753 = vrot.lane.b32.xlu0 %v1651, 96
    %v1754 = vpop.permute.xlu0 %1753
    %1755 = vrot.lane.b32.xlu0 %v1652, 96
    %v1756 = vpop.permute.xlu0 %1755
    %1773 = vrot.lane.b32.xlu0 %v1661, 32
    %v1774 = vpop.permute.xlu0 %1773
    %1775 = vrot.lane.b32.xlu0 %v1662, 32
    %v1776 = vpop.permute.xlu0 %1775
    %1777 = vrot.lane.b32.xlu0 %v1663, 32
    %v1778 = vpop.permute.xlu0 %1777
    %1779 = vrot.lane.b32.xlu0 %v1664, 32
    %v1780 = vpop.permute.xlu0 %1779
    %1781 = vrot.lane.b32.xlu0 %v1665, 32
    %v1782 = vpop.permute.xlu0 %1781
    %1783 = vrot.lane.b32.xlu0 %v1666, 32
    %v1784 = vpop.permute.xlu0 %1783
    %1785 = vrot.lane.b32.xlu0 %v1667, 32
    %v1786 = vpop.permute.xlu0 %1785
    %1787 = vrot.lane.b32.xlu0 %v1668, 32
    %v1788 = vpop.permute.xlu0 %1787
    %1797 = vrot.lane.b32.xlu0 %v1516, 64
    %v1798 = vpop.permute.xlu0 %1797
    %1799 = vrot.lane.b32.xlu0 %v1517, 64
    %v1800 = vpop.permute.xlu0 %1799
    %1801 = vrot.lane.b32.xlu0 %v1518, 64
    %v1802 = vpop.permute.xlu0 %1801
    %1803 = vrot.lane.b32.xlu0 %v1519, 64
    %v1804 = vpop.permute.xlu0 %1803
    %1805 = vrot.lane.b32.xlu0 %v1520, 64
    %v1806 = vpop.permute.xlu0 %1805
    %1807 = vrot.lane.b32.xlu0 %v1521, 64
    %v1808 = vpop.permute.xlu0 %1807
    %1809 = vrot.lane.b32.xlu0 %v1522, 64
    %v1810 = vpop.permute.xlu0 %1809
    %1811 = vrot.lane.b32.xlu0 %v1523, 64
    %v1812 = vpop.permute.xlu0 %1811
    %v1821 = vsel %vm708, %v1563, %v1678
    %v1822 = vsel %vm708, %v1564, %v1680
    %v1823 = vsel %vm708, %v1565, %v1682
    %v1824 = vsel %vm708, %v1566, %v1684
    %v1825 = vsel %vm708, %v1567, %v1686
    %v1826 = vsel %vm708, %v1568, %v1688
    %v1827 = vsel %vm708, %v1569, %v1690
    %v1828 = vsel %vm708, %v1570, %v1692
    %v1829 = vsel %vm717, %v1821, %v1710
    %v1830 = vsel %vm717, %v1822, %v1712
    %v1831 = vsel %vm717, %v1823, %v1714
    %v1832 = vsel %vm717, %v1824, %v1716
    %v1833 = vsel %vm717, %v1825, %v1718
    %v1834 = vsel %vm717, %v1826, %v1720
    %v1835 = vsel %vm717, %v1827, %v1722
    %v1836 = vsel %vm717, %v1828, %v1724
    %v1837 = vsel %vm726, %v1829, %v1742
    %v1838 = vsel %vm726, %v1830, %v1744
    %v1839 = vsel %vm726, %v1831, %v1746
    %v1840 = vsel %vm726, %v1832, %v1748
    %v1841 = vsel %vm726, %v1833, %v1750
    %v1842 = vsel %vm726, %v1834, %v1752
    %v1843 = vsel %vm726, %v1835, %v1754
    %v1844 = vsel %vm726, %v1836, %v1756
    %v1845 = vsel %vm708, %v1653, %v1774
    %v1846 = vsel %vm708, %v1654, %v1776
    %v1847 = vsel %vm708, %v1655, %v1778
    %v1848 = vsel %vm708, %v1656, %v1780
    %v1849 = vsel %vm708, %v1657, %v1782
    %v1850 = vsel %vm708, %v1658, %v1784
    %v1851 = vsel %vm708, %v1659, %v1786
    %v1852 = vsel %vm708, %v1660, %v1788
    %v1853 = vsel %vm717, %v1845, %v1798
    %v1854 = vsel %vm717, %v1846, %v1800
    %v1855 = vsel %vm717, %v1847, %v1802
    %v1856 = vsel %vm717, %v1848, %v1804
    %v1857 = vsel %vm717, %v1849, %v1806
    %v1858 = vsel %vm717, %v1850, %v1808
    %v1859 = vsel %vm717, %v1851, %v1810
    %v1860 = vsel %vm717, %v1852, %v1812
    %v1861 = vpack.c.bf16 %v1838, %v1837
    %v1862 = vpack.c.bf16 %v1854, %v1853
    %v1863 = vpack.c.bf16 %v1840, %v1839
    %v1864 = vpack.c.bf16 %v1856, %v1855
    %v1865 = vpack.c.bf16 %v1842, %v1841
    %v1866 = vpack.c.bf16 %v1858, %v1857
    %v1867 = vpack.c.bf16 %v1844, %v1843
    %v1868 = vpack.c.bf16 %v1860, %v1859
    %v1869 = vld [vmem:[#allocation8] sm:$0xff]
    %v1870 = vld [vmem:[#allocation8 + $0x8] sm:$0xff]
    %v1871 = vld [vmem:[#allocation8 + $0x10] sm:$0xff]
    %v1872 = vld [vmem:[#allocation8 + $0x18] sm:$0xff]
    %v1874 = vlaneseq
    %v1875 = vshrl.u32 %v1874, 7
    %v1876 = vsub.s32 0, %v1875
    %v1877 = vrot.slane %v1525, %v1876
    %v1883 = vunpack.c.l.b16 %v1869
    %v1884 = vunpack.c.h.b16 %v1869
    %v1885 = vunpack.c.l.b16 %v1870
    %v1886 = vunpack.c.h.b16 %v1870
    %v1887 = vunpack.c.l.b16 %v1871
    %v1888 = vunpack.c.h.b16 %v1871
    %v1889 = vunpack.c.l.b16 %v1872
    %v1890 = vunpack.c.h.b16 %v1872
    %v1891 = vpack.c.b16 %v1885, %v1883
    %v1892 = vpack.c.b16 %v1886, %v1884
    %v1893 = vpack.c.b16 %v1889, %v1887
    %v1894 = vpack.c.b16 %v1890, %v1888
    %v1898 = vsel %vm726, %v1862, 0
    %v1901 = vsel %vm726, %v1864, 0
    %v1904 = vsel %vm726, %v1866, 0
    %v1907 = vsel %vm726, %v1868, 0
    %v1910 = vsel %vm726, %v1892, 0
    %v1913 = vsel %vm726, %v1894, 0
    %1915 = vmatprep.subr.bf16.mxu0 %v1910
    %1916 = vmatpush1.bf16.xpose.msra.mxu0 %v1891
    %1917 = vmatprep.subr.bf16.mxu0 %v1913
    %1918 = vmatpush1.bf16.xpose.msra.mxu0 %v1893
    %1919 = vmatprep.subr.bf16.mxu0 0
    %1920 = vmatpush1.bf16.xpose.msra.mxu0 0
    %1921 = vmatprep.subr.bf16.mxu0 0
    %1922 = vmatpush1.bf16.xpose.msra.mxu0 0
    %1923 = vmatprep.subr.bf16.mxu0 0
    %1924 = vmatpush1.bf16.xpose.msra.mxu0 0
    %1925 = vmatprep.subr.bf16.mxu0 0
    %1926 = vmatpush1.bf16.xpose.msra.mxu0 0
    %1927 = vmatprep.subr.bf16.mxu0 0
    %1928 = vmatpush1.bf16.xpose.msra.mxu0 0
    %1929 = vmatprep.subr.bf16.mxu0 0
    %1930 = vmatpush1.bf16.xpose.msra.mxu0 0
    %1931 = vmatprep.subr.bf16.mxu0 0
    %1932 = vmatpush1.bf16.xpose.msra.mxu0 0
    %1933 = vmatprep.subr.bf16.mxu0 0
    %1934 = vmatpush1.bf16.xpose.msra.mxu0 0
    %1935 = vmatprep.subr.bf16.mxu0 0
    %1936 = vmatpush1.bf16.xpose.msra.mxu0 0
    %1937 = vmatprep.subr.bf16.mxu0 0
    %1938 = vmatpush1.bf16.xpose.msra.mxu0 0
    %1939 = vmatprep.subr.bf16.mxu0 0
    %1940 = vmatpush1.bf16.xpose.msra.mxu0 0
    %1941 = vmatprep.subr.bf16.mxu0 0
    %1942 = vmatpush1.bf16.xpose.msra.mxu0 0
    %1943 = vmatprep.subr.bf16.mxu0 0
    %1944 = vmatpush1.bf16.xpose.msra.mxu0 0
    %1945 = vmatprep.subr.bf16.mxu0 0
    %1946 = vmatpush1.bf16.xpose.msra.mxu0 0
    %1947 = vmatprep.mubr.bf16.mxu0 %v1898
    %1948 = vmatmul.mubr.bf16.gmra.mrb[0].mxu0 %v1861
    %v1949 = vpop.f32.mrb[0].mxu0
    %v1950 = vadd.f32 %v1877, %v1949
    %v1951 = vpop.f32.mrb[0].mxu0
    %v1952 = vpop.f32.mrb[0].mxu0
    %v1953 = vadd.f32 %v1877, %v1952
    %v1954 = vpop.f32.mrb[0].mxu0
    %1955 = vmatprep.mubr.bf16.mxu0 %v1901
    %1956 = vmatmul.mubr.bf16.gmra.mrb[0].mxu0 %v1863
    %v1957 = vpop.f32.mrb[0].mxu0
    %v1958 = vadd.f32 %v1877, %v1957
    %v1959 = vpop.f32.mrb[0].mxu0
    %v1960 = vpop.f32.mrb[0].mxu0
    %v1961 = vadd.f32 %v1877, %v1960
    %v1962 = vpop.f32.mrb[0].mxu0
    %1963 = vmatprep.mubr.bf16.mxu0 %v1904
    %1964 = vmatmul.mubr.bf16.gmra.mrb[0].mxu0 %v1865
    %v1965 = vpop.f32.mrb[0].mxu0
    %v1966 = vadd.f32 %v1877, %v1965
    %v1967 = vpop.f32.mrb[0].mxu0
    %v1968 = vpop.f32.mrb[0].mxu0
    %v1969 = vadd.f32 %v1877, %v1968
    %v1970 = vpop.f32.mrb[0].mxu0
    %1971 = vmatprep.mubr.bf16.mxu0 %v1907
    %1972 = vmatmul.mubr.bf16.gmra.mrb[0].mxu0 %v1867
    %v1973 = vpop.f32.mrb[0].mxu0
    %v1974 = vadd.f32 %v1877, %v1973
    %v1975 = vpop.f32.mrb[0].mxu0
    %v1976 = vpop.f32.mrb[0].mxu0
    %v1977 = vadd.f32 %v1877, %v1976
    %v1978 = vpop.f32.mrb[0].mxu0
    %1979 = vdwg.mxu0
    %v1980 = vmax.f32 %v1950, 0.0
    %v1981 = vmax.f32 %v1953, 0.0
    %v1982 = vmax.f32 %v1958, 0.0
    %v1983 = vmax.f32 %v1961, 0.0
    %v1984 = vmax.f32 %v1966, 0.0
    %v1985 = vmax.f32 %v1969, 0.0
    %v1986 = vmax.f32 %v1974, 0.0
    %v1987 = vmax.f32 %v1977, 0.0
    %s1988 = scalar_lea.vmem [#allocation26], 1
    %v1989 = vld [vmem:[%s1988] sm:$0x1]
    %v1992 = vrot.slane %v1986, 4
    %v1993 = vrot.slane %v1987, 4
    %v1994 = vsel %vm406, %v1992, %v1993
    %v2003 = vrot.slane %v1980, 4
    %v2004 = vrot.slane %v1981, 4
    %v2005 = vsel %vm406, %v2003, %v2004
    %v2006 = vrot.slane %v1982, 4
    %v2007 = vsel %vm406, %v2004, %v2006
    %v2008 = vrot.slane %v1983, 4
    %v2009 = vsel %vm406, %v2006, %v2008
    %v2010 = vrot.slane %v1984, 4
    %v2011 = vsel %vm406, %v2008, %v2010
    %v2012 = vrot.slane %v1985, 4
    %v2013 = vsel %vm406, %v2010, %v2012
    %v2014 = vsel %vm406, %v2012, %v1992
    %v2022 = vsel %vm406, %v1993, %v2003
    %v2023 = vsel %vm1559, %v1994, 0.0
    %v2024 = vsel %vm1560, %v2022, 0.0
    %v2025 = vsel %vm1561, %v2005, 0.0
    %v2026 = vsel %vm1562, %v2007, 0.0
    %v2027 = vsel %vm1559, %v2009, 0.0
    %v2028 = vsel %vm1560, %v2011, 0.0
    %v2029 = vsel %vm1561, %v2013, 0.0
    %v2030 = vsel %vm1562, %v2014, 0.0
    %v2031 = vrot.slane %v1986, 6
    %v2032 = vrot.slane %v1987, 6
    %v2033 = vsel %vm482, %v2031, %v2032
    %v2036 = vrot.slane %v1980, 6
    %v2037 = vrot.slane %v1981, 6
    %v2038 = vsel %vm482, %v2036, %v2037
    %v2039 = vrot.slane %v1982, 6
    %v2040 = vsel %vm482, %v2037, %v2039
    %v2041 = vrot.slane %v1983, 6
    %v2042 = vsel %vm482, %v2039, %v2041
    %v2043 = vrot.slane %v1984, 6
    %v2044 = vsel %vm482, %v2041, %v2043
    %v2045 = vrot.slane %v1985, 6
    %v2046 = vsel %vm482, %v2043, %v2045
    %v2047 = vsel %vm482, %v2045, %v2031
    %v2055 = vsel %vm482, %v2032, %v2036
    %v2056 = vsel %vm1596, %v2033, 0.0
    %v2057 = vsel %vm1597, %v2055, 0.0
    %v2058 = vsel %vm1598, %v2038, 0.0
    %v2059 = vsel %vm1599, %v2040, 0.0
    %v2060 = vsel %vm1596, %v2042, 0.0
    %v2061 = vsel %vm1597, %v2044, 0.0
    %v2062 = vsel %vm1598, %v2046, 0.0
    %v2063 = vsel %vm1599, %v2047, 0.0
    %v2064 = vsel %vm1608, %v1987, 0.0
    %v2065 = vsel %vm1609, %v1980, 0.0
    %v2066 = vsel %vm1610, %v1981, 0.0
    %v2067 = vsel %vm1611, %v1982, 0.0
    %v2068 = vsel %vm1608, %v1983, 0.0
    %v2069 = vsel %vm1609, %v1984, 0.0
    %v2070 = vsel %vm1610, %v1985, 0.0
    %v2071 = vsel %vm1611, %v1986, 0.0
    %v2072 = vrot.slane %v1987, 2
    %v2074 = vrot.slane %v1980, 2
    %v2075 = vrot.slane %v1981, 2
    %v2076 = vsel %vm330, %v2074, %v2075
    %v2077 = vrot.slane %v1982, 2
    %v2078 = vsel %vm330, %v2075, %v2077
    %v2079 = vrot.slane %v1983, 2
    %v2080 = vsel %vm330, %v2077, %v2079
    %v2081 = vrot.slane %v1984, 2
    %v2082 = vsel %vm330, %v2079, %v2081
    %v2083 = vrot.slane %v1985, 2
    %v2084 = vsel %vm330, %v2081, %v2083
    %v2085 = vrot.slane %v1986, 2
    %v2086 = vsel %vm330, %v2083, %v2085
    %v2087 = vsel %vm330, %v2085, %v2072
    %v2096 = vsel %vm330, %v2072, %v2074
    %v2097 = vsel %vm354, %v2096, 0.0
    %v2098 = vsel %vm355, %v2076, 0.0
    %v2099 = vsel %vm356, %v2078, 0.0
    %v2100 = vsel %vm357, %v2080, 0.0
    %v2101 = vsel %vm354, %v2082, 0.0
    %v2102 = vsel %vm355, %v2084, 0.0
    %v2103 = vsel %vm356, %v2086, 0.0
    %v2104 = vsel %vm357, %v2087, 0.0
    %v2105 = vsel %vm430, %v2022, 0.0
    %v2106 = vsel %vm431, %v2005, 0.0
    %v2107 = vsel %vm432, %v2007, 0.0
    %v2108 = vsel %vm433, %v2009, 0.0
    %v2109 = vsel %vm430, %v2011, 0.0
    %v2110 = vsel %vm431, %v2013, 0.0
    %v2111 = vsel %vm432, %v2014, 0.0
    %v2112 = vsel %vm433, %v1994, 0.0
    %v2113 = vsel %vm506, %v2055, 0.0
    %v2114 = vsel %vm507, %v2038, 0.0
    %v2115 = vsel %vm508, %v2040, 0.0
    %v2116 = vsel %vm509, %v2042, 0.0
    %v2117 = vsel %vm506, %v2044, 0.0
    %v2118 = vsel %vm507, %v2046, 0.0
    %v2119 = vsel %vm508, %v2047, 0.0
    %v2120 = vsel %vm509, %v2033, 0.0
    %2129 = vrot.lane.b32.xlu0 %v2056, 32
    %v2130 = vpop.permute.xlu0 %2129
    %2131 = vrot.lane.b32.xlu0 %v2057, 32
    %v2132 = vpop.permute.xlu0 %2131
    %2133 = vrot.lane.b32.xlu0 %v2058, 32
    %v2134 = vpop.permute.xlu0 %2133
    %2135 = vrot.lane.b32.xlu0 %v2059, 32
    %v2136 = vpop.permute.xlu0 %2135
    %2137 = vrot.lane.b32.xlu0 %v2060, 32
    %v2138 = vpop.permute.xlu0 %2137
    %2139 = vrot.lane.b32.xlu0 %v2061, 32
    %v2140 = vpop.permute.xlu0 %2139
    %2141 = vrot.lane.b32.xlu0 %v2062, 32
    %v2142 = vpop.permute.xlu0 %2141
    %2143 = vrot.lane.b32.xlu0 %v2063, 32
    %v2144 = vpop.permute.xlu0 %2143
    %2161 = vrot.lane.b32.xlu0 %v2064, 64
    %v2162 = vpop.permute.xlu0 %2161
    %2163 = vrot.lane.b32.xlu0 %v2065, 64
    %v2164 = vpop.permute.xlu0 %2163
    %2165 = vrot.lane.b32.xlu0 %v2066, 64
    %v2166 = vpop.permute.xlu0 %2165
    %2167 = vrot.lane.b32.xlu0 %v2067, 64
    %v2168 = vpop.permute.xlu0 %2167
    %2169 = vrot.lane.b32.xlu0 %v2068, 64
    %v2170 = vpop.permute.xlu0 %2169
    %2171 = vrot.lane.b32.xlu0 %v2069, 64
    %v2172 = vpop.permute.xlu0 %2171
    %2173 = vrot.lane.b32.xlu0 %v2070, 64
    %v2174 = vpop.permute.xlu0 %2173
    %2175 = vrot.lane.b32.xlu0 %v2071, 64
    %v2176 = vpop.permute.xlu0 %2175
    %2193 = vrot.lane.b32.xlu0 %v2097, 96
    %v2194 = vpop.permute.xlu0 %2193
    %2195 = vrot.lane.b32.xlu0 %v2098, 96
    %v2196 = vpop.permute.xlu0 %2195
    %2197 = vrot.lane.b32.xlu0 %v2099, 96
    %v2198 = vpop.permute.xlu0 %2197
    %2199 = vrot.lane.b32.xlu0 %v2100, 96
    %v2200 = vpop.permute.xlu0 %2199
    %2201 = vrot.lane.b32.xlu0 %v2101, 96
    %v2202 = vpop.permute.xlu0 %2201
    %2203 = vrot.lane.b32.xlu0 %v2102, 96
    %v2204 = vpop.permute.xlu0 %2203
    %2205 = vrot.lane.b32.xlu0 %v2103, 96
    %v2206 = vpop.permute.xlu0 %2205
    %2207 = vrot.lane.b32.xlu0 %v2104, 96
    %v2208 = vpop.permute.xlu0 %2207
    %2225 = vrot.lane.b32.xlu0 %v2113, 32
    %v2226 = vpop.permute.xlu0 %2225
    %2227 = vrot.lane.b32.xlu0 %v2114, 32
    %v2228 = vpop.permute.xlu0 %2227
    %2229 = vrot.lane.b32.xlu0 %v2115, 32
    %v2230 = vpop.permute.xlu0 %2229
    %2231 = vrot.lane.b32.xlu0 %v2116, 32
    %v2232 = vpop.permute.xlu0 %2231
    %2233 = vrot.lane.b32.xlu0 %v2117, 32
    %v2234 = vpop.permute.xlu0 %2233
    %2235 = vrot.lane.b32.xlu0 %v2118, 32
    %v2236 = vpop.permute.xlu0 %2235
    %2237 = vrot.lane.b32.xlu0 %v2119, 32
    %v2238 = vpop.permute.xlu0 %2237
    %2239 = vrot.lane.b32.xlu0 %v2120, 32
    %v2240 = vpop.permute.xlu0 %2239
    %2249 = vrot.lane.b32.xlu0 %v1980, 64
    %v2250 = vpop.permute.xlu0 %2249
    %2251 = vrot.lane.b32.xlu0 %v1981, 64
    %v2252 = vpop.permute.xlu0 %2251
    %2253 = vrot.lane.b32.xlu0 %v1982, 64
    %v2254 = vpop.permute.xlu0 %2253
    %2255 = vrot.lane.b32.xlu0 %v1983, 64
    %v2256 = vpop.permute.xlu0 %2255
    %2257 = vrot.lane.b32.xlu0 %v1984, 64
    %v2258 = vpop.permute.xlu0 %2257
    %2259 = vrot.lane.b32.xlu0 %v1985, 64
    %v2260 = vpop.permute.xlu0 %2259
    %2261 = vrot.lane.b32.xlu0 %v1986, 64
    %v2262 = vpop.permute.xlu0 %2261
    %2263 = vrot.lane.b32.xlu0 %v1987, 64
    %v2264 = vpop.permute.xlu0 %2263
    %v2273 = vsel %vm708, %v2023, %v2130
    %v2274 = vsel %vm708, %v2024, %v2132
    %v2275 = vsel %vm708, %v2025, %v2134
    %v2276 = vsel %vm708, %v2026, %v2136
    %v2277 = vsel %vm708, %v2027, %v2138
    %v2278 = vsel %vm708, %v2028, %v2140
    %v2279 = vsel %vm708, %v2029, %v2142
    %v2280 = vsel %vm708, %v2030, %v2144
    %v2281 = vsel %vm717, %v2273, %v2162
    %v2282 = vsel %vm717, %v2274, %v2164
    %v2283 = vsel %vm717, %v2275, %v2166
    %v2284 = vsel %vm717, %v2276, %v2168
    %v2285 = vsel %vm717, %v2277, %v2170
    %v2286 = vsel %vm717, %v2278, %v2172
    %v2287 = vsel %vm717, %v2279, %v2174
    %v2288 = vsel %vm717, %v2280, %v2176
    %v2289 = vsel %vm726, %v2281, %v2194
    %v2290 = vsel %vm726, %v2282, %v2196
    %v2291 = vsel %vm726, %v2283, %v2198
    %v2292 = vsel %vm726, %v2284, %v2200
    %v2293 = vsel %vm726, %v2285, %v2202
    %v2294 = vsel %vm726, %v2286, %v2204
    %v2295 = vsel %vm726, %v2287, %v2206
    %v2296 = vsel %vm726, %v2288, %v2208
    %v2297 = vsel %vm708, %v2105, %v2226
    %v2298 = vsel %vm708, %v2106, %v2228
    %v2299 = vsel %vm708, %v2107, %v2230
    %v2300 = vsel %vm708, %v2108, %v2232
    %v2301 = vsel %vm708, %v2109, %v2234
    %v2302 = vsel %vm708, %v2110, %v2236
    %v2303 = vsel %vm708, %v2111, %v2238
    %v2304 = vsel %vm708, %v2112, %v2240
    %v2305 = vsel %vm717, %v2297, %v2250
    %v2306 = vsel %vm717, %v2298, %v2252
    %v2307 = vsel %vm717, %v2299, %v2254
    %v2308 = vsel %vm717, %v2300, %v2256
    %v2309 = vsel %vm717, %v2301, %v2258
    %v2310 = vsel %vm717, %v2302, %v2260
    %v2311 = vsel %vm717, %v2303, %v2262
    %v2312 = vsel %vm717, %v2304, %v2264
    %v2313 = vpack.c.bf16 %v2290, %v2289
    %v2314 = vpack.c.bf16 %v2306, %v2305
    %v2315 = vpack.c.bf16 %v2292, %v2291
    %v2316 = vpack.c.bf16 %v2308, %v2307
    %v2317 = vpack.c.bf16 %v2294, %v2293
    %v2318 = vpack.c.bf16 %v2310, %v2309
    %v2319 = vpack.c.bf16 %v2296, %v2295
    %v2320 = vpack.c.bf16 %v2312, %v2311
    %v2321 = vld [vmem:[#allocation10] sm:$0xff]
    %v2322 = vld [vmem:[#allocation10 + $0x8] sm:$0xff]
    %v2323 = vld [vmem:[#allocation10 + $0x10] sm:$0xff]
    %v2324 = vld [vmem:[#allocation10 + $0x18] sm:$0xff]
    %v2326 = vlaneseq
    %v2327 = vshrl.u32 %v2326, 7
    %v2328 = vsub.s32 0, %v2327
    %v2329 = vrot.slane %v1989, %v2328
    %v2335 = vunpack.c.l.b16 %v2321
    %v2336 = vunpack.c.h.b16 %v2321
    %v2337 = vunpack.c.l.b16 %v2322
    %v2338 = vunpack.c.h.b16 %v2322
    %v2339 = vunpack.c.l.b16 %v2323
    %v2340 = vunpack.c.h.b16 %v2323
    %v2341 = vunpack.c.l.b16 %v2324
    %v2342 = vunpack.c.h.b16 %v2324
    %v2343 = vpack.c.b16 %v2337, %v2335
    %v2344 = vpack.c.b16 %v2338, %v2336
    %v2345 = vpack.c.b16 %v2341, %v2339
    %v2346 = vpack.c.b16 %v2342, %v2340
    %v2350 = vsel %vm726, %v2314, 0
    %v2353 = vsel %vm726, %v2316, 0
    %v2356 = vsel %vm726, %v2318, 0
    %v2359 = vsel %vm726, %v2320, 0
    %v2362 = vsel %vm726, %v2344, 0
    %v2365 = vsel %vm726, %v2346, 0
    %2367 = vmatprep.subr.bf16.mxu0 %v2362
    %2368 = vmatpush1.bf16.xpose.msra.mxu0 %v2343
    %2369 = vmatprep.subr.bf16.mxu0 %v2365
    %2370 = vmatpush1.bf16.xpose.msra.mxu0 %v2345
    %2371 = vmatprep.subr.bf16.mxu0 0
    %2372 = vmatpush1.bf16.xpose.msra.mxu0 0
    %2373 = vmatprep.subr.bf16.mxu0 0
    %2374 = vmatpush1.bf16.xpose.msra.mxu0 0
    %2375 = vmatprep.subr.bf16.mxu0 0
    %2376 = vmatpush1.bf16.xpose.msra.mxu0 0
    %2377 = vmatprep.subr.bf16.mxu0 0
    %2378 = vmatpush1.bf16.xpose.msra.mxu0 0
    %2379 = vmatprep.subr.bf16.mxu0 0
    %2380 = vmatpush1.bf16.xpose.msra.mxu0 0
    %2381 = vmatprep.subr.bf16.mxu0 0
    %2382 = vmatpush1.bf16.xpose.msra.mxu0 0
    %2383 = vmatprep.subr.bf16.mxu0 0
    %2384 = vmatpush1.bf16.xpose.msra.mxu0 0
    %2385 = vmatprep.subr.bf16.mxu0 0
    %2386 = vmatpush1.bf16.xpose.msra.mxu0 0
    %2387 = vmatprep.subr.bf16.mxu0 0
    %2388 = vmatpush1.bf16.xpose.msra.mxu0 0
    %2389 = vmatprep.subr.bf16.mxu0 0
    %2390 = vmatpush1.bf16.xpose.msra.mxu0 0
    %2391 = vmatprep.subr.bf16.mxu0 0
    %2392 = vmatpush1.bf16.xpose.msra.mxu0 0
    %2393 = vmatprep.subr.bf16.mxu0 0
    %2394 = vmatpush1.bf16.xpose.msra.mxu0 0
    %2395 = vmatprep.subr.bf16.mxu0 0
    %2396 = vmatpush1.bf16.xpose.msra.mxu0 0
    %2397 = vmatprep.subr.bf16.mxu0 0
    %2398 = vmatpush1.bf16.xpose.msra.mxu0 0
    %2399 = vmatprep.mubr.bf16.mxu0 %v2350
    %2400 = vmatmul.mubr.bf16.gmra.mrb[0].mxu0 %v2313
    %v2401 = vpop.f32.mrb[0].mxu0
    %v2402 = vadd.f32 %v2329, %v2401
    %v2403 = vpop.f32.mrb[0].mxu0
    %v2404 = vpop.f32.mrb[0].mxu0
    %v2405 = vadd.f32 %v2329, %v2404
    %v2406 = vpop.f32.mrb[0].mxu0
    %2407 = vmatprep.mubr.bf16.mxu0 %v2353
    %2408 = vmatmul.mubr.bf16.gmra.mrb[0].mxu0 %v2315
    %v2409 = vpop.f32.mrb[0].mxu0
    %v2410 = vadd.f32 %v2329, %v2409
    %v2411 = vpop.f32.mrb[0].mxu0
    %v2412 = vpop.f32.mrb[0].mxu0
    %v2413 = vadd.f32 %v2329, %v2412
    %v2414 = vpop.f32.mrb[0].mxu0
    %2415 = vmatprep.mubr.bf16.mxu0 %v2356
    %2416 = vmatmul.mubr.bf16.gmra.mrb[0].mxu0 %v2317
    %v2417 = vpop.f32.mrb[0].mxu0
    %v2418 = vadd.f32 %v2329, %v2417
    %v2419 = vpop.f32.mrb[0].mxu0
    %v2420 = vpop.f32.mrb[0].mxu0
    %v2421 = vadd.f32 %v2329, %v2420
    %v2422 = vpop.f32.mrb[0].mxu0
    %2423 = vmatprep.mubr.bf16.mxu0 %v2359
    %2424 = vmatmul.mubr.bf16.gmra.mrb[0].mxu0 %v2319
    %v2425 = vpop.f32.mrb[0].mxu0
    %v2426 = vadd.f32 %v2329, %v2425
    %v2427 = vpop.f32.mrb[0].mxu0
    %v2428 = vpop.f32.mrb[0].mxu0
    %v2429 = vadd.f32 %v2329, %v2428
    %v2430 = vpop.f32.mrb[0].mxu0
    %2431 = vdwg.mxu0
    %v2432 = vmax.f32 %v2402, 0.0
    %v2433 = vmax.f32 %v2405, 0.0
    %v2434 = vmax.f32 %v2410, 0.0
    %v2435 = vmax.f32 %v2413, 0.0
    %v2436 = vmax.f32 %v2418, 0.0
    %v2437 = vmax.f32 %v2421, 0.0
    %v2438 = vmax.f32 %v2426, 0.0
    %v2439 = vmax.f32 %v2429, 0.0
    %v2440 = vadd.f32 %v2432, %v1516
    %v2441 = vadd.f32 %v2433, %v1517
    %v2442 = vadd.f32 %v2434, %v1518
    %v2443 = vadd.f32 %v2435, %v1519
    %v2444 = vadd.f32 %v2436, %v1520
    %v2445 = vadd.f32 %v2437, %v1521
    %v2446 = vadd.f32 %v2438, %v1522
    %v2447 = vadd.f32 %v2439, %v1523
    %v2448 = vmax.f32 %v2440, 0.0
    %v2449 = vmax.f32 %v2441, 0.0
    %v2450 = vmax.f32 %v2442, 0.0
    %v2451 = vmax.f32 %v2443, 0.0
    %v2452 = vmax.f32 %v2444, 0.0
    %v2453 = vmax.f32 %v2445, 0.0
    %v2454 = vmax.f32 %v2446, 0.0
    %v2455 = vmax.f32 %v2447, 0.0
    %s2456 = scalar_lea.vmem [#allocation25], 2
    %v2457 = vld [vmem:[%s2456] sm:$0x1]
    %vm2458 = vcmp.ge.s32.totalorder %v315, 24
    %vm2459 = vcmp.ge.s32.totalorder %v316, 24
    %vm2460 = vcmp.ge.s32.totalorder %v317, 24
    %vm2461 = vcmp.ge.s32.totalorder %v318, 24
    %v2462 = vsel %vm2458, %v2453, 0.0
    %v2463 = vsel %vm2459, %v2454, 0.0
    %v2464 = vsel %vm2460, %v2455, 0.0
    %v2465 = vsel %vm2461, %v2448, 0.0
    %v2466 = vsel %vm2458, %v2449, 0.0
    %v2467 = vsel %vm2459, %v2450, 0.0
    %v2468 = vsel %vm2460, %v2451, 0.0
    %v2469 = vsel %vm2461, %v2452, 0.0
    %v2473 = vrot.slane %v2453, 4
    %v2474 = vrot.slane %v2454, 4
    %v2475 = vsel %vm406, %v2473, %v2474
    %v2476 = vrot.slane %v2455, 4
    %v2477 = vsel %vm406, %v2474, %v2476
    %v2486 = vrot.slane %v2448, 4
    %v2487 = vrot.slane %v2449, 4
    %v2488 = vsel %vm406, %v2486, %v2487
    %v2489 = vrot.slane %v2450, 4
    %v2490 = vsel %vm406, %v2487, %v2489
    %v2491 = vrot.slane %v2451, 4
    %v2492 = vsel %vm406, %v2489, %v2491
    %v2493 = vrot.slane %v2452, 4
    %v2494 = vsel %vm406, %v2491, %v2493
    %v2495 = vsel %vm406, %v2493, %v2473
    %v2502 = vsel %vm406, %v2476, %v2486
    %vm2503 = vcmp.ge.s32.totalorder %v315, 20
    %vm2504 = vcmp.ge.s32.totalorder %v316, 20
    %vm2505 = vcmp.ge.s32.totalorder %v317, 20
    %vm2506 = vcmp.ge.s32.totalorder %v318, 20
    %v2507 = vsel %vm2503, %v2475, 0.0
    %v2508 = vsel %vm2504, %v2477, 0.0
    %v2509 = vsel %vm2505, %v2502, 0.0
    %v2510 = vsel %vm2506, %v2488, 0.0
    %v2511 = vsel %vm2503, %v2490, 0.0
    %v2512 = vsel %vm2504, %v2492, 0.0
    %v2513 = vsel %vm2505, %v2494, 0.0
    %v2514 = vsel %vm2506, %v2495, 0.0
    %vm2515 = vcmp.ge.s32.totalorder %v315, 16
    %vm2516 = vcmp.ge.s32.totalorder %v316, 16
    %vm2517 = vcmp.ge.s32.totalorder %v317, 16
    %vm2518 = vcmp.ge.s32.totalorder %v318, 16
    %v2519 = vsel %vm2515, %v2454, 0.0
    %v2520 = vsel %vm2516, %v2455, 0.0
    %v2521 = vsel %vm2517, %v2448, 0.0
    %v2522 = vsel %vm2518, %v2449, 0.0
    %v2523 = vsel %vm2515, %v2450, 0.0
    %v2524 = vsel %vm2516, %v2451, 0.0
    %v2525 = vsel %vm2517, %v2452, 0.0
    %v2526 = vsel %vm2518, %v2453, 0.0
    %v2527 = vsel %vm1559, %v2477, 0.0
    %v2528 = vsel %vm1560, %v2502, 0.0
    %v2529 = vsel %vm1561, %v2488, 0.0
    %v2530 = vsel %vm1562, %v2490, 0.0
    %v2531 = vsel %vm1559, %v2492, 0.0
    %v2532 = vsel %vm1560, %v2494, 0.0
    %v2533 = vsel %vm1561, %v2495, 0.0
    %v2534 = vsel %vm1562, %v2475, 0.0
    %v2535 = vsel %vm1608, %v2455, 0.0
    %v2536 = vsel %vm1609, %v2448, 0.0
    %v2537 = vsel %vm1610, %v2449, 0.0
    %v2538 = vsel %vm1611, %v2450, 0.0
    %v2539 = vsel %vm1608, %v2451, 0.0
    %v2540 = vsel %vm1609, %v2452, 0.0
    %v2541 = vsel %vm1610, %v2453, 0.0
    %v2542 = vsel %vm1611, %v2454, 0.0
    %v2543 = vsel %vm430, %v2502, 0.0
    %v2544 = vsel %vm431, %v2488, 0.0
    %v2545 = vsel %vm432, %v2490, 0.0
    %v2546 = vsel %vm433, %v2492, 0.0
    %v2547 = vsel %vm430, %v2494, 0.0
    %v2548 = vsel %vm431, %v2495, 0.0
    %v2549 = vsel %vm432, %v2475, 0.0
    %v2550 = vsel %vm433, %v2477, 0.0
    %2559 = vrot.lane.b32.xlu0 %v2507, 32
    %v2560 = vpop.permute.xlu0 %2559
    %2561 = vrot.lane.b32.xlu0 %v2508, 32
    %v2562 = vpop.permute.xlu0 %2561
    %2563 = vrot.lane.b32.xlu0 %v2509, 32
    %v2564 = vpop.permute.xlu0 %2563
    %2565 = vrot.lane.b32.xlu0 %v2510, 32
    %v2566 = vpop.permute.xlu0 %2565
    %2567 = vrot.lane.b32.xlu0 %v2511, 32
    %v2568 = vpop.permute.xlu0 %2567
    %2569 = vrot.lane.b32.xlu0 %v2512, 32
    %v2570 = vpop.permute.xlu0 %2569
    %2571 = vrot.lane.b32.xlu0 %v2513, 32
    %v2572 = vpop.permute.xlu0 %2571
    %2573 = vrot.lane.b32.xlu0 %v2514, 32
    %v2574 = vpop.permute.xlu0 %2573
    %2591 = vrot.lane.b32.xlu0 %v2519, 64
    %v2592 = vpop.permute.xlu0 %2591
    %2593 = vrot.lane.b32.xlu0 %v2520, 64
    %v2594 = vpop.permute.xlu0 %2593
    %2595 = vrot.lane.b32.xlu0 %v2521, 64
    %v2596 = vpop.permute.xlu0 %2595
    %2597 = vrot.lane.b32.xlu0 %v2522, 64
    %v2598 = vpop.permute.xlu0 %2597
    %2599 = vrot.lane.b32.xlu0 %v2523, 64
    %v2600 = vpop.permute.xlu0 %2599
    %2601 = vrot.lane.b32.xlu0 %v2524, 64
    %v2602 = vpop.permute.xlu0 %2601
    %2603 = vrot.lane.b32.xlu0 %v2525, 64
    %v2604 = vpop.permute.xlu0 %2603
    %2605 = vrot.lane.b32.xlu0 %v2526, 64
    %v2606 = vpop.permute.xlu0 %2605
    %2623 = vrot.lane.b32.xlu0 %v2527, 96
    %v2624 = vpop.permute.xlu0 %2623
    %2625 = vrot.lane.b32.xlu0 %v2528, 96
    %v2626 = vpop.permute.xlu0 %2625
    %2627 = vrot.lane.b32.xlu0 %v2529, 96
    %v2628 = vpop.permute.xlu0 %2627
    %2629 = vrot.lane.b32.xlu0 %v2530, 96
    %v2630 = vpop.permute.xlu0 %2629
    %2631 = vrot.lane.b32.xlu0 %v2531, 96
    %v2632 = vpop.permute.xlu0 %2631
    %2633 = vrot.lane.b32.xlu0 %v2532, 96
    %v2634 = vpop.permute.xlu0 %2633
    %2635 = vrot.lane.b32.xlu0 %v2533, 96
    %v2636 = vpop.permute.xlu0 %2635
    %2637 = vrot.lane.b32.xlu0 %v2534, 96
    %v2638 = vpop.permute.xlu0 %2637
    %2655 = vrot.lane.b32.xlu0 %v2543, 32
    %v2656 = vpop.permute.xlu0 %2655
    %2657 = vrot.lane.b32.xlu0 %v2544, 32
    %v2658 = vpop.permute.xlu0 %2657
    %2659 = vrot.lane.b32.xlu0 %v2545, 32
    %v2660 = vpop.permute.xlu0 %2659
    %2661 = vrot.lane.b32.xlu0 %v2546, 32
    %v2662 = vpop.permute.xlu0 %2661
    %2663 = vrot.lane.b32.xlu0 %v2547, 32
    %v2664 = vpop.permute.xlu0 %2663
    %2665 = vrot.lane.b32.xlu0 %v2548, 32
    %v2666 = vpop.permute.xlu0 %2665
    %2667 = vrot.lane.b32.xlu0 %v2549, 32
    %v2668 = vpop.permute.xlu0 %2667
    %2669 = vrot.lane.b32.xlu0 %v2550, 32
    %v2670 = vpop.permute.xlu0 %2669
    %2679 = vrot.lane.b32.xlu0 %v2448, 64
    %v2680 = vpop.permute.xlu0 %2679
    %2681 = vrot.lane.b32.xlu0 %v2449, 64
    %v2682 = vpop.permute.xlu0 %2681
    %2683 = vrot.lane.b32.xlu0 %v2450, 64
    %v2684 = vpop.permute.xlu0 %2683
    %2685 = vrot.lane.b32.xlu0 %v2451, 64
    %v2686 = vpop.permute.xlu0 %2685
    %2687 = vrot.lane.b32.xlu0 %v2452, 64
    %v2688 = vpop.permute.xlu0 %2687
    %2689 = vrot.lane.b32.xlu0 %v2453, 64
    %v2690 = vpop.permute.xlu0 %2689
    %2691 = vrot.lane.b32.xlu0 %v2454, 64
    %v2692 = vpop.permute.xlu0 %2691
    %2693 = vrot.lane.b32.xlu0 %v2455, 64
    %v2694 = vpop.permute.xlu0 %2693
    %v2703 = vsel %vm708, %v2462, %v2560
    %v2704 = vsel %vm708, %v2463, %v2562
    %v2705 = vsel %vm708, %v2464, %v2564
    %v2706 = vsel %vm708, %v2465, %v2566
    %v2707 = vsel %vm708, %v2466, %v2568
    %v2708 = vsel %vm708, %v2467, %v2570
    %v2709 = vsel %vm708, %v2468, %v2572
    %v2710 = vsel %vm708, %v2469, %v2574
    %v2711 = vsel %vm717, %v2703, %v2592
    %v2712 = vsel %vm717, %v2704, %v2594
    %v2713 = vsel %vm717, %v2705, %v2596
    %v2714 = vsel %vm717, %v2706, %v2598
    %v2715 = vsel %vm717, %v2707, %v2600
    %v2716 = vsel %vm717, %v2708, %v2602
    %v2717 = vsel %vm717, %v2709, %v2604
    %v2718 = vsel %vm717, %v2710, %v2606
    %v2719 = vsel %vm726, %v2711, %v2624
    %v2720 = vsel %vm726, %v2712, %v2626
    %v2721 = vsel %vm726, %v2713, %v2628
    %v2722 = vsel %vm726, %v2714, %v2630
    %v2723 = vsel %vm726, %v2715, %v2632
    %v2724 = vsel %vm726, %v2716, %v2634
    %v2725 = vsel %vm726, %v2717, %v2636
    %v2726 = vsel %vm726, %v2718, %v2638
    %v2727 = vsel %vm708, %v2535, %v2656
    %v2728 = vsel %vm708, %v2536, %v2658
    %v2729 = vsel %vm708, %v2537, %v2660
    %v2730 = vsel %vm708, %v2538, %v2662
    %v2731 = vsel %vm708, %v2539, %v2664
    %v2732 = vsel %vm708, %v2540, %v2666
    %v2733 = vsel %vm708, %v2541, %v2668
    %v2734 = vsel %vm708, %v2542, %v2670
    %v2735 = vsel %vm717, %v2727, %v2680
    %v2736 = vsel %vm717, %v2728, %v2682
    %v2737 = vsel %vm717, %v2729, %v2684
    %v2738 = vsel %vm717, %v2730, %v2686
    %v2739 = vsel %vm717, %v2731, %v2688
    %v2740 = vsel %vm717, %v2732, %v2690
    %v2741 = vsel %vm717, %v2733, %v2692
    %v2742 = vsel %vm717, %v2734, %v2694
    %v2743 = vpack.c.bf16 %v2720, %v2719
    %v2744 = vpack.c.bf16 %v2736, %v2735
    %v2745 = vpack.c.bf16 %v2722, %v2721
    %v2746 = vpack.c.bf16 %v2738, %v2737
    %v2747 = vpack.c.bf16 %v2724, %v2723
    %v2748 = vpack.c.bf16 %v2740, %v2739
    %v2749 = vpack.c.bf16 %v2726, %v2725
    %v2750 = vpack.c.bf16 %v2742, %v2741
    %v2751 = vld [vmem:[#allocation11] sm:$0xff]
    %v2752 = vld [vmem:[#allocation11 + $0x8] sm:$0xff]
    %v2753 = vld [vmem:[#allocation11 + $0x10] sm:$0xff]
    %v2754 = vld [vmem:[#allocation11 + $0x18] sm:$0xff]
    %v2756 = vlaneseq
    %v2757 = vshrl.u32 %v2756, 7
    %v2758 = vsub.s32 0, %v2757
    %v2759 = vrot.slane %v2457, %v2758
    %v2765 = vunpack.c.l.b16 %v2751
    %v2766 = vunpack.c.h.b16 %v2751
    %v2767 = vunpack.c.l.b16 %v2752
    %v2768 = vunpack.c.h.b16 %v2752
    %v2769 = vunpack.c.l.b16 %v2753
    %v2770 = vunpack.c.h.b16 %v2753
    %v2771 = vunpack.c.l.b16 %v2754
    %v2772 = vunpack.c.h.b16 %v2754
    %v2773 = vpack.c.b16 %v2767, %v2765
    %v2774 = vpack.c.b16 %v2768, %v2766
    %v2775 = vpack.c.b16 %v2771, %v2769
    %v2776 = vpack.c.b16 %v2772, %v2770
    %v2780 = vsel %vm726, %v2744, 0
    %v2783 = vsel %vm726, %v2746, 0
    %v2786 = vsel %vm726, %v2748, 0
    %v2789 = vsel %vm726, %v2750, 0
    %v2792 = vsel %vm726, %v2774, 0
    %v2795 = vsel %vm726, %v2776, 0
    %2797 = vmatprep.subr.bf16.mxu0 %v2792
    %2798 = vmatpush1.bf16.xpose.msra.mxu0 %v2773
    %2799 = vmatprep.subr.bf16.mxu0 %v2795
    %2800 = vmatpush1.bf16.xpose.msra.mxu0 %v2775
    %2801 = vmatprep.subr.bf16.mxu0 0
    %2802 = vmatpush1.bf16.xpose.msra.mxu0 0
    %2803 = vmatprep.subr.bf16.mxu0 0
    %2804 = vmatpush1.bf16.xpose.msra.mxu0 0
    %2805 = vmatprep.subr.bf16.mxu0 0
    %2806 = vmatpush1.bf16.xpose.msra.mxu0 0
    %2807 = vmatprep.subr.bf16.mxu0 0
    %2808 = vmatpush1.bf16.xpose.msra.mxu0 0
    %2809 = vmatprep.subr.bf16.mxu0 0
    %2810 = vmatpush1.bf16.xpose.msra.mxu0 0
    %2811 = vmatprep.subr.bf16.mxu0 0
    %2812 = vmatpush1.bf16.xpose.msra.mxu0 0
    %2813 = vmatprep.subr.bf16.mxu0 0
    %2814 = vmatpush1.bf16.xpose.msra.mxu0 0
    %2815 = vmatprep.subr.bf16.mxu0 0
    %2816 = vmatpush1.bf16.xpose.msra.mxu0 0
    %2817 = vmatprep.subr.bf16.mxu0 0
    %2818 = vmatpush1.bf16.xpose.msra.mxu0 0
    %2819 = vmatprep.subr.bf16.mxu0 0
    %2820 = vmatpush1.bf16.xpose.msra.mxu0 0
    %2821 = vmatprep.subr.bf16.mxu0 0
    %2822 = vmatpush1.bf16.xpose.msra.mxu0 0
    %2823 = vmatprep.subr.bf16.mxu0 0
    %2824 = vmatpush1.bf16.xpose.msra.mxu0 0
    %2825 = vmatprep.subr.bf16.mxu0 0
    %2826 = vmatpush1.bf16.xpose.msra.mxu0 0
    %2827 = vmatprep.subr.bf16.mxu0 0
    %2828 = vmatpush1.bf16.xpose.msra.mxu0 0
    %2829 = vmatprep.mubr.bf16.mxu0 %v2780
    %2830 = vmatmul.mubr.bf16.gmra.mrb[0].mxu0 %v2743
    %v2831 = vpop.f32.mrb[0].mxu0
    %v2832 = vadd.f32 %v2759, %v2831
    %v2833 = vpop.f32.mrb[0].mxu0
    %v2834 = vpop.f32.mrb[0].mxu0
    %v2835 = vadd.f32 %v2759, %v2834
    %v2836 = vpop.f32.mrb[0].mxu0
    %2837 = vmatprep.mubr.bf16.mxu0 %v2783
    %2838 = vmatmul.mubr.bf16.gmra.mrb[0].mxu0 %v2745
    %v2839 = vpop.f32.mrb[0].mxu0
    %v2840 = vadd.f32 %v2759, %v2839
    %v2841 = vpop.f32.mrb[0].mxu0
    %v2842 = vpop.f32.mrb[0].mxu0
    %v2843 = vadd.f32 %v2759, %v2842
    %v2844 = vpop.f32.mrb[0].mxu0
    %2845 = vmatprep.mubr.bf16.mxu0 %v2786
    %2846 = vmatmul.mubr.bf16.gmra.mrb[0].mxu0 %v2747
    %v2847 = vpop.f32.mrb[0].mxu0
    %v2848 = vadd.f32 %v2759, %v2847
    %v2849 = vpop.f32.mrb[0].mxu0
    %v2850 = vpop.f32.mrb[0].mxu0
    %v2851 = vadd.f32 %v2759, %v2850
    %v2852 = vpop.f32.mrb[0].mxu0
    %2853 = vmatprep.mubr.bf16.mxu0 %v2789
    %2854 = vmatmul.mubr.bf16.gmra.mrb[0].mxu0 %v2749
    %v2855 = vpop.f32.mrb[0].mxu0
    %v2856 = vadd.f32 %v2759, %v2855
    %v2857 = vpop.f32.mrb[0].mxu0
    %v2858 = vpop.f32.mrb[0].mxu0
    %v2859 = vadd.f32 %v2759, %v2858
    %v2860 = vpop.f32.mrb[0].mxu0
    %2861 = vdwg.mxu0
    %v2862 = vmax.f32 %v2832, 0.0
    %v2863 = vmax.f32 %v2835, 0.0
    %v2864 = vmax.f32 %v2840, 0.0
    %v2865 = vmax.f32 %v2843, 0.0
    %v2866 = vmax.f32 %v2848, 0.0
    %v2867 = vmax.f32 %v2851, 0.0
    %v2868 = vmax.f32 %v2856, 0.0
    %v2869 = vmax.f32 %v2859, 0.0
    %s2870 = scalar_lea.vmem [#allocation26], 2
    %v2871 = vld [vmem:[%s2870] sm:$0x1]
    %v2872 = vsel %vm2458, %v2867, 0.0
    %v2873 = vsel %vm2459, %v2868, 0.0
    %v2874 = vsel %vm2460, %v2869, 0.0
    %v2875 = vsel %vm2461, %v2862, 0.0
    %v2876 = vsel %vm2458, %v2863, 0.0
    %v2877 = vsel %vm2459, %v2864, 0.0
    %v2878 = vsel %vm2460, %v2865, 0.0
    %v2879 = vsel %vm2461, %v2866, 0.0
    %v2883 = vrot.slane %v2867, 4
    %v2884 = vrot.slane %v2868, 4
    %v2885 = vsel %vm406, %v2883, %v2884
    %v2886 = vrot.slane %v2869, 4
    %v2887 = vsel %vm406, %v2884, %v2886
    %v2896 = vrot.slane %v2862, 4
    %v2897 = vrot.slane %v2863, 4
    %v2898 = vsel %vm406, %v2896, %v2897
    %v2899 = vrot.slane %v2864, 4
    %v2900 = vsel %vm406, %v2897, %v2899
    %v2901 = vrot.slane %v2865, 4
    %v2902 = vsel %vm406, %v2899, %v2901
    %v2903 = vrot.slane %v2866, 4
    %v2904 = vsel %vm406, %v2901, %v2903
    %v2905 = vsel %vm406, %v2903, %v2883
    %v2912 = vsel %vm406, %v2886, %v2896
    %v2913 = vsel %vm2503, %v2885, 0.0
    %v2914 = vsel %vm2504, %v2887, 0.0
    %v2915 = vsel %vm2505, %v2912, 0.0
    %v2916 = vsel %vm2506, %v2898, 0.0
    %v2917 = vsel %vm2503, %v2900, 0.0
    %v2918 = vsel %vm2504, %v2902, 0.0
    %v2919 = vsel %vm2505, %v2904, 0.0
    %v2920 = vsel %vm2506, %v2905, 0.0
    %v2921 = vsel %vm2515, %v2868, 0.0
    %v2922 = vsel %vm2516, %v2869, 0.0
    %v2923 = vsel %vm2517, %v2862, 0.0
    %v2924 = vsel %vm2518, %v2863, 0.0
    %v2925 = vsel %vm2515, %v2864, 0.0
    %v2926 = vsel %vm2516, %v2865, 0.0
    %v2927 = vsel %vm2517, %v2866, 0.0
    %v2928 = vsel %vm2518, %v2867, 0.0
    %v2929 = vsel %vm1559, %v2887, 0.0
    %v2930 = vsel %vm1560, %v2912, 0.0
    %v2931 = vsel %vm1561, %v2898, 0.0
    %v2932 = vsel %vm1562, %v2900, 0.0
    %v2933 = vsel %vm1559, %v2902, 0.0
    %v2934 = vsel %vm1560, %v2904, 0.0
    %v2935 = vsel %vm1561, %v2905, 0.0
    %v2936 = vsel %vm1562, %v2885, 0.0
    %v2937 = vsel %vm1608, %v2869, 0.0
    %v2938 = vsel %vm1609, %v2862, 0.0
    %v2939 = vsel %vm1610, %v2863, 0.0
    %v2940 = vsel %vm1611, %v2864, 0.0
    %v2941 = vsel %vm1608, %v2865, 0.0
    %v2942 = vsel %vm1609, %v2866, 0.0
    %v2943 = vsel %vm1610, %v2867, 0.0
    %v2944 = vsel %vm1611, %v2868, 0.0
    %v2945 = vsel %vm430, %v2912, 0.0
    %v2946 = vsel %vm431, %v2898, 0.0
    %v2947 = vsel %vm432, %v2900, 0.0
    %v2948 = vsel %vm433, %v2902, 0.0
    %v2949 = vsel %vm430, %v2904, 0.0
    %v2950 = vsel %vm431, %v2905, 0.0
    %v2951 = vsel %vm432, %v2885, 0.0
    %v2952 = vsel %vm433, %v2887, 0.0
    %2961 = vrot.lane.b32.xlu0 %v2913, 32
    %v2962 = vpop.permute.xlu0 %2961
    %2963 = vrot.lane.b32.xlu0 %v2914, 32
    %v2964 = vpop.permute.xlu0 %2963
    %2965 = vrot.lane.b32.xlu0 %v2915, 32
    %v2966 = vpop.permute.xlu0 %2965
    %2967 = vrot.lane.b32.xlu0 %v2916, 32
    %v2968 = vpop.permute.xlu0 %2967
    %2969 = vrot.lane.b32.xlu0 %v2917, 32
    %v2970 = vpop.permute.xlu0 %2969
    %2971 = vrot.lane.b32.xlu0 %v2918, 32
    %v2972 = vpop.permute.xlu0 %2971
    %2973 = vrot.lane.b32.xlu0 %v2919, 32
    %v2974 = vpop.permute.xlu0 %2973
    %2975 = vrot.lane.b32.xlu0 %v2920, 32
    %v2976 = vpop.permute.xlu0 %2975
    %2993 = vrot.lane.b32.xlu0 %v2921, 64
    %v2994 = vpop.permute.xlu0 %2993
    %2995 = vrot.lane.b32.xlu0 %v2922, 64
    %v2996 = vpop.permute.xlu0 %2995
    %2997 = vrot.lane.b32.xlu0 %v2923, 64
    %v2998 = vpop.permute.xlu0 %2997
    %2999 = vrot.lane.b32.xlu0 %v2924, 64
    %v3000 = vpop.permute.xlu0 %2999
    %3001 = vrot.lane.b32.xlu0 %v2925, 64
    %v3002 = vpop.permute.xlu0 %3001
    %3003 = vrot.lane.b32.xlu0 %v2926, 64
    %v3004 = vpop.permute.xlu0 %3003
    %3005 = vrot.lane.b32.xlu0 %v2927, 64
    %v3006 = vpop.permute.xlu0 %3005
    %3007 = vrot.lane.b32.xlu0 %v2928, 64
    %v3008 = vpop.permute.xlu0 %3007
    %3025 = vrot.lane.b32.xlu0 %v2929, 96
    %v3026 = vpop.permute.xlu0 %3025
    %3027 = vrot.lane.b32.xlu0 %v2930, 96
    %v3028 = vpop.permute.xlu0 %3027
    %3029 = vrot.lane.b32.xlu0 %v2931, 96
    %v3030 = vpop.permute.xlu0 %3029
    %3031 = vrot.lane.b32.xlu0 %v2932, 96
    %v3032 = vpop.permute.xlu0 %3031
    %3033 = vrot.lane.b32.xlu0 %v2933, 96
    %v3034 = vpop.permute.xlu0 %3033
    %3035 = vrot.lane.b32.xlu0 %v2934, 96
    %v3036 = vpop.permute.xlu0 %3035
    %3037 = vrot.lane.b32.xlu0 %v2935, 96
    %v3038 = vpop.permute.xlu0 %3037
    %3039 = vrot.lane.b32.xlu0 %v2936, 96
    %v3040 = vpop.permute.xlu0 %3039
    %3057 = vrot.lane.b32.xlu0 %v2945, 32
    %v3058 = vpop.permute.xlu0 %3057
    %3059 = vrot.lane.b32.xlu0 %v2946, 32
    %v3060 = vpop.permute.xlu0 %3059
    %3061 = vrot.lane.b32.xlu0 %v2947, 32
    %v3062 = vpop.permute.xlu0 %3061
    %3063 = vrot.lane.b32.xlu0 %v2948, 32
    %v3064 = vpop.permute.xlu0 %3063
    %3065 = vrot.lane.b32.xlu0 %v2949, 32
    %v3066 = vpop.permute.xlu0 %3065
    %3067 = vrot.lane.b32.xlu0 %v2950, 32
    %v3068 = vpop.permute.xlu0 %3067
    %3069 = vrot.lane.b32.xlu0 %v2951, 32
    %v3070 = vpop.permute.xlu0 %3069
    %3071 = vrot.lane.b32.xlu0 %v2952, 32
    %v3072 = vpop.permute.xlu0 %3071
    %3081 = vrot.lane.b32.xlu0 %v2862, 64
    %v3082 = vpop.permute.xlu0 %3081
    %3083 = vrot.lane.b32.xlu0 %v2863, 64
    %v3084 = vpop.permute.xlu0 %3083
    %3085 = vrot.lane.b32.xlu0 %v2864, 64
    %v3086 = vpop.permute.xlu0 %3085
    %3087 = vrot.lane.b32.xlu0 %v2865, 64
    %v3088 = vpop.permute.xlu0 %3087
    %3089 = vrot.lane.b32.xlu0 %v2866, 64
    %v3090 = vpop.permute.xlu0 %3089
    %3091 = vrot.lane.b32.xlu0 %v2867, 64
    %v3092 = vpop.permute.xlu0 %3091
    %3093 = vrot.lane.b32.xlu0 %v2868, 64
    %v3094 = vpop.permute.xlu0 %3093
    %3095 = vrot.lane.b32.xlu0 %v2869, 64
    %v3096 = vpop.permute.xlu0 %3095
    %v3105 = vsel %vm708, %v2872, %v2962
    %v3106 = vsel %vm708, %v2873, %v2964
    %v3107 = vsel %vm708, %v2874, %v2966
    %v3108 = vsel %vm708, %v2875, %v2968
    %v3109 = vsel %vm708, %v2876, %v2970
    %v3110 = vsel %vm708, %v2877, %v2972
    %v3111 = vsel %vm708, %v2878, %v2974
    %v3112 = vsel %vm708, %v2879, %v2976
    %v3113 = vsel %vm717, %v3105, %v2994
    %v3114 = vsel %vm717, %v3106, %v2996
    %v3115 = vsel %vm717, %v3107, %v2998
    %v3116 = vsel %vm717, %v3108, %v3000
    %v3117 = vsel %vm717, %v3109, %v3002
    %v3118 = vsel %vm717, %v3110, %v3004
    %v3119 = vsel %vm717, %v3111, %v3006
    %v3120 = vsel %vm717, %v3112, %v3008
    %v3121 = vsel %vm726, %v3113, %v3026
    %v3122 = vsel %vm726, %v3114, %v3028
    %v3123 = vsel %vm726, %v3115, %v3030
    %v3124 = vsel %vm726, %v3116, %v3032
    %v3125 = vsel %vm726, %v3117, %v3034
    %v3126 = vsel %vm726, %v3118, %v3036
    %v3127 = vsel %vm726, %v3119, %v3038
    %v3128 = vsel %vm726, %v3120, %v3040
    %v3129 = vsel %vm708, %v2937, %v3058
    %v3130 = vsel %vm708, %v2938, %v3060
    %v3131 = vsel %vm708, %v2939, %v3062
    %v3132 = vsel %vm708, %v2940, %v3064
    %v3133 = vsel %vm708, %v2941, %v3066
    %v3134 = vsel %vm708, %v2942, %v3068
    %v3135 = vsel %vm708, %v2943, %v3070
    %v3136 = vsel %vm708, %v2944, %v3072
    %v3137 = vsel %vm717, %v3129, %v3082
    %v3138 = vsel %vm717, %v3130, %v3084
    %v3139 = vsel %vm717, %v3131, %v3086
    %v3140 = vsel %vm717, %v3132, %v3088
    %v3141 = vsel %vm717, %v3133, %v3090
    %v3142 = vsel %vm717, %v3134, %v3092
    %v3143 = vsel %vm717, %v3135, %v3094
    %v3144 = vsel %vm717, %v3136, %v3096
    %v3145 = vpack.c.bf16 %v3122, %v3121
    %v3146 = vpack.c.bf16 %v3138, %v3137
    %v3147 = vpack.c.bf16 %v3124, %v3123
    %v3148 = vpack.c.bf16 %v3140, %v3139
    %v3149 = vpack.c.bf16 %v3126, %v3125
    %v3150 = vpack.c.bf16 %v3142, %v3141
    %v3151 = vpack.c.bf16 %v3128, %v3127
    %v3152 = vpack.c.bf16 %v3144, %v3143
    %v3153 = vld [vmem:[#allocation13] sm:$0xff]
    %v3154 = vld [vmem:[#allocation13 + $0x8] sm:$0xff]
    %v3155 = vld [vmem:[#allocation13 + $0x10] sm:$0xff]
    %v3156 = vld [vmem:[#allocation13 + $0x18] sm:$0xff]
    %v3158 = vlaneseq
    %v3159 = vshrl.u32 %v3158, 7
    %v3160 = vsub.s32 0, %v3159
    %v3161 = vrot.slane %v2871, %v3160
    %v3167 = vunpack.c.l.b16 %v3153
    %v3168 = vunpack.c.h.b16 %v3153
    %v3169 = vunpack.c.l.b16 %v3154
    %v3170 = vunpack.c.h.b16 %v3154
    %v3171 = vunpack.c.l.b16 %v3155
    %v3172 = vunpack.c.h.b16 %v3155
    %v3173 = vunpack.c.l.b16 %v3156
    %v3174 = vunpack.c.h.b16 %v3156
    %v3175 = vpack.c.b16 %v3169, %v3167
    %v3176 = vpack.c.b16 %v3170, %v3168
    %v3177 = vpack.c.b16 %v3173, %v3171
    %v3178 = vpack.c.b16 %v3174, %v3172
    %v3182 = vsel %vm726, %v3146, 0
    %v3185 = vsel %vm726, %v3148, 0
    %v3188 = vsel %vm726, %v3150, 0
    %v3191 = vsel %vm726, %v3152, 0
    %v3194 = vsel %vm726, %v3176, 0
    %v3197 = vsel %vm726, %v3178, 0
    %3199 = vmatprep.subr.bf16.mxu0 %v3194
    %3200 = vmatpush1.bf16.xpose.msra.mxu0 %v3175
    %3201 = vmatprep.subr.bf16.mxu0 %v3197
    %3202 = vmatpush1.bf16.xpose.msra.mxu0 %v3177
    %3203 = vmatprep.subr.bf16.mxu0 0
    %3204 = vmatpush1.bf16.xpose.msra.mxu0 0
    %3205 = vmatprep.subr.bf16.mxu0 0
    %3206 = vmatpush1.bf16.xpose.msra.mxu0 0
    %3207 = vmatprep.subr.bf16.mxu0 0
    %3208 = vmatpush1.bf16.xpose.msra.mxu0 0
    %3209 = vmatprep.subr.bf16.mxu0 0
    %3210 = vmatpush1.bf16.xpose.msra.mxu0 0
    %3211 = vmatprep.subr.bf16.mxu0 0
    %3212 = vmatpush1.bf16.xpose.msra.mxu0 0
    %3213 = vmatprep.subr.bf16.mxu0 0
    %3214 = vmatpush1.bf16.xpose.msra.mxu0 0
    %3215 = vmatprep.subr.bf16.mxu0 0
    %3216 = vmatpush1.bf16.xpose.msra.mxu0 0
    %3217 = vmatprep.subr.bf16.mxu0 0
    %3218 = vmatpush1.bf16.xpose.msra.mxu0 0
    %3219 = vmatprep.subr.bf16.mxu0 0
    %3220 = vmatpush1.bf16.xpose.msra.mxu0 0
    %3221 = vmatprep.subr.bf16.mxu0 0
    %3222 = vmatpush1.bf16.xpose.msra.mxu0 0
    %3223 = vmatprep.subr.bf16.mxu0 0
    %3224 = vmatpush1.bf16.xpose.msra.mxu0 0
    %3225 = vmatprep.subr.bf16.mxu0 0
    %3226 = vmatpush1.bf16.xpose.msra.mxu0 0
    %3227 = vmatprep.subr.bf16.mxu0 0
    %3228 = vmatpush1.bf16.xpose.msra.mxu0 0
    %3229 = vmatprep.subr.bf16.mxu0 0
    %3230 = vmatpush1.bf16.xpose.msra.mxu0 0
    %3231 = vmatprep.mubr.bf16.mxu0 %v3182
    %3232 = vmatmul.mubr.bf16.gmra.mrb[0].mxu0 %v3145
    %v3233 = vpop.f32.mrb[0].mxu0
    %v3234 = vadd.f32 %v3161, %v3233
    %v3235 = vpop.f32.mrb[0].mxu0
    %v3236 = vpop.f32.mrb[0].mxu0
    %v3237 = vadd.f32 %v3161, %v3236
    %v3238 = vpop.f32.mrb[0].mxu0
    %3239 = vmatprep.mubr.bf16.mxu0 %v3185
    %3240 = vmatmul.mubr.bf16.gmra.mrb[0].mxu0 %v3147
    %v3241 = vpop.f32.mrb[0].mxu0
    %v3242 = vadd.f32 %v3161, %v3241
    %v3243 = vpop.f32.mrb[0].mxu0
    %v3244 = vpop.f32.mrb[0].mxu0
    %v3245 = vadd.f32 %v3161, %v3244
    %v3246 = vpop.f32.mrb[0].mxu0
    %3247 = vmatprep.mubr.bf16.mxu0 %v3188
    %3248 = vmatmul.mubr.bf16.gmra.mrb[0].mxu0 %v3149
    %v3249 = vpop.f32.mrb[0].mxu0
    %v3250 = vadd.f32 %v3161, %v3249
    %v3251 = vpop.f32.mrb[0].mxu0
    %v3252 = vpop.f32.mrb[0].mxu0
    %v3253 = vadd.f32 %v3161, %v3252
    %v3254 = vpop.f32.mrb[0].mxu0
    %3255 = vmatprep.mubr.bf16.mxu0 %v3191
    %3256 = vmatmul.mubr.bf16.gmra.mrb[0].mxu0 %v3151
    %v3257 = vpop.f32.mrb[0].mxu0
    %v3258 = vadd.f32 %v3161, %v3257
    %v3259 = vpop.f32.mrb[0].mxu0
    %v3260 = vpop.f32.mrb[0].mxu0
    %v3261 = vadd.f32 %v3161, %v3260
    %v3262 = vpop.f32.mrb[0].mxu0
    %3263 = vdwg.mxu0
    %v3264 = vmax.f32 %v3234, 0.0
    %v3265 = vmax.f32 %v3237, 0.0
    %v3266 = vmax.f32 %v3242, 0.0
    %v3267 = vmax.f32 %v3245, 0.0
    %v3268 = vmax.f32 %v3250, 0.0
    %v3269 = vmax.f32 %v3253, 0.0
    %v3270 = vmax.f32 %v3258, 0.0
    %v3271 = vmax.f32 %v3261, 0.0
    %v3272 = vadd.f32 %v3264, %v2448
    %v3273 = vadd.f32 %v3265, %v2449
    %v3274 = vadd.f32 %v3266, %v2450
    %v3275 = vadd.f32 %v3267, %v2451
    %v3276 = vadd.f32 %v3268, %v2452
    %v3277 = vadd.f32 %v3269, %v2453
    %v3278 = vadd.f32 %v3270, %v2454
    %v3279 = vadd.f32 %v3271, %v2455
    %v3280 = vmax.f32 %v3272, 0.0
    %v3281 = vmax.f32 %v3273, 0.0
    %v3282 = vmax.f32 %v3274, 0.0
    %v3283 = vmax.f32 %v3275, 0.0
    %v3284 = vmax.f32 %v3276, 0.0
    %v3285 = vmax.f32 %v3277, 0.0
    %v3286 = vmax.f32 %v3278, 0.0
    %v3287 = vmax.f32 %v3279, 0.0
    %s3288 = scalar_lea.vmem [#allocation25], 3
    %v3289 = vld [vmem:[%s3288] sm:$0x1]
    %v3290 = vsel %vm2458, %v3285, 0.0
    %v3291 = vsel %vm2459, %v3286, 0.0
    %v3292 = vsel %vm2460, %v3287, 0.0
    %v3293 = vsel %vm2461, %v3280, 0.0
    %v3294 = vsel %vm2458, %v3281, 0.0
    %v3295 = vsel %vm2459, %v3282, 0.0
    %v3296 = vsel %vm2460, %v3283, 0.0
    %v3297 = vsel %vm2461, %v3284, 0.0
    %v3298 = vsel %vm2515, %v3286, 0.0
    %v3299 = vsel %vm2516, %v3287, 0.0
    %v3300 = vsel %vm2517, %v3280, 0.0
    %v3301 = vsel %vm2518, %v3281, 0.0
    %v3302 = vsel %vm2515, %v3282, 0.0
    %v3303 = vsel %vm2516, %v3283, 0.0
    %v3304 = vsel %vm2517, %v3284, 0.0
    %v3305 = vsel %vm2518, %v3285, 0.0
    %v3306 = vsel %vm1608, %v3287, 0.0
    %v3307 = vsel %vm1609, %v3280, 0.0
    %v3308 = vsel %vm1610, %v3281, 0.0
    %v3309 = vsel %vm1611, %v3282, 0.0
    %v3310 = vsel %vm1608, %v3283, 0.0
    %v3311 = vsel %vm1609, %v3284, 0.0
    %v3312 = vsel %vm1610, %v3285, 0.0
    %v3313 = vsel %vm1611, %v3286, 0.0
    %3322 = vrot.lane.b32.xlu0 %v3298, 32
    %v3323 = vpop.permute.xlu0 %3322
    %3324 = vrot.lane.b32.xlu0 %v3299, 32
    %v3325 = vpop.permute.xlu0 %3324
    %3326 = vrot.lane.b32.xlu0 %v3300, 32
    %v3327 = vpop.permute.xlu0 %3326
    %3328 = vrot.lane.b32.xlu0 %v3301, 32
    %v3329 = vpop.permute.xlu0 %3328
    %3330 = vrot.lane.b32.xlu0 %v3302, 32
    %v3331 = vpop.permute.xlu0 %3330
    %3332 = vrot.lane.b32.xlu0 %v3303, 32
    %v3333 = vpop.permute.xlu0 %3332
    %3334 = vrot.lane.b32.xlu0 %v3304, 32
    %v3335 = vpop.permute.xlu0 %3334
    %3336 = vrot.lane.b32.xlu0 %v3305, 32
    %v3337 = vpop.permute.xlu0 %3336
    %3354 = vrot.lane.b32.xlu0 %v3306, 64
    %v3355 = vpop.permute.xlu0 %3354
    %3356 = vrot.lane.b32.xlu0 %v3307, 64
    %v3357 = vpop.permute.xlu0 %3356
    %3358 = vrot.lane.b32.xlu0 %v3308, 64
    %v3359 = vpop.permute.xlu0 %3358
    %3360 = vrot.lane.b32.xlu0 %v3309, 64
    %v3361 = vpop.permute.xlu0 %3360
    %3362 = vrot.lane.b32.xlu0 %v3310, 64
    %v3363 = vpop.permute.xlu0 %3362
    %3364 = vrot.lane.b32.xlu0 %v3311, 64
    %v3365 = vpop.permute.xlu0 %3364
    %3366 = vrot.lane.b32.xlu0 %v3312, 64
    %v3367 = vpop.permute.xlu0 %3366
    %3368 = vrot.lane.b32.xlu0 %v3313, 64
    %v3369 = vpop.permute.xlu0 %3368
    %3386 = vrot.lane.b32.xlu0 %v3280, 96
    %v3387 = vpop.permute.xlu0 %3386
    %3388 = vrot.lane.b32.xlu0 %v3281, 96
    %v3389 = vpop.permute.xlu0 %3388
    %3390 = vrot.lane.b32.xlu0 %v3282, 96
    %v3391 = vpop.permute.xlu0 %3390
    %3392 = vrot.lane.b32.xlu0 %v3283, 96
    %v3393 = vpop.permute.xlu0 %3392
    %3394 = vrot.lane.b32.xlu0 %v3284, 96
    %v3395 = vpop.permute.xlu0 %3394
    %3396 = vrot.lane.b32.xlu0 %v3285, 96
    %v3397 = vpop.permute.xlu0 %3396
    %3398 = vrot.lane.b32.xlu0 %v3286, 96
    %v3399 = vpop.permute.xlu0 %3398
    %3400 = vrot.lane.b32.xlu0 %v3287, 96
    %v3401 = vpop.permute.xlu0 %3400
    %v3410 = vsel %vm708, %v3290, %v3323
    %v3411 = vsel %vm708, %v3291, %v3325
    %v3412 = vsel %vm708, %v3292, %v3327
    %v3413 = vsel %vm708, %v3293, %v3329
    %v3414 = vsel %vm708, %v3294, %v3331
    %v3415 = vsel %vm708, %v3295, %v3333
    %v3416 = vsel %vm708, %v3296, %v3335
    %v3417 = vsel %vm708, %v3297, %v3337
    %v3418 = vsel %vm717, %v3410, %v3355
    %v3419 = vsel %vm717, %v3411, %v3357
    %v3420 = vsel %vm717, %v3412, %v3359
    %v3421 = vsel %vm717, %v3413, %v3361
    %v3422 = vsel %vm717, %v3414, %v3363
    %v3423 = vsel %vm717, %v3415, %v3365
    %v3424 = vsel %vm717, %v3416, %v3367
    %v3425 = vsel %vm717, %v3417, %v3369
    %v3426 = vsel %vm726, %v3418, %v3387
    %v3427 = vsel %vm726, %v3419, %v3389
    %v3428 = vsel %vm726, %v3420, %v3391
    %v3429 = vsel %vm726, %v3421, %v3393
    %v3430 = vsel %vm726, %v3422, %v3395
    %v3431 = vsel %vm726, %v3423, %v3397
    %v3432 = vsel %vm726, %v3424, %v3399
    %v3433 = vsel %vm726, %v3425, %v3401
    %v3434 = vpack.c.bf16 %v3427, %v3426
    %v3435 = vpack.c.bf16 %v3429, %v3428
    %v3436 = vpack.c.bf16 %v3431, %v3430
    %v3437 = vpack.c.bf16 %v3433, %v3432
    %v3438 = vld [vmem:[%s7] sm:$0xf]
    %v3439 = vld [vmem:[%s7 + $0x4] sm:$0xf]
    %v3440 = vld [vmem:[%s7 + $0x8] sm:$0xf]
    %v3441 = vld [vmem:[%s7 + $0xc] sm:$0xf]
    %v3443 = vlaneseq
    %v3444 = vshrl.u32 %v3443, 7
    %v3445 = vsub.s32 0, %v3444
    %v3446 = vrot.slane %v3289, %v3445
    %v3452 = vunpack.c.l.b16 %v3438
    %v3453 = vunpack.c.l.b16 %v3439
    %v3454 = vunpack.c.l.b16 %v3440
    %v3455 = vunpack.c.l.b16 %v3441
    %v3456 = vpack.c.b16 %v3453, %v3452
    %v3457 = vpack.c.b16 %v3455, %v3454
    %3460 = vmatprep.subr.bf16.mxu0 0
    %3461 = vmatpush1.bf16.xpose.msra.mxu0 %v3456
    %3462 = vmatprep.subr.bf16.mxu0 0
    %3463 = vmatpush1.bf16.xpose.msra.mxu0 %v3457
    %3464 = vmatprep.subr.bf16.mxu0 0
    %3465 = vmatpush1.bf16.xpose.msra.mxu0 0
    %3466 = vmatprep.subr.bf16.mxu0 0
    %3467 = vmatpush1.bf16.xpose.msra.mxu0 0
    %3468 = vmatprep.subr.bf16.mxu0 0
    %3469 = vmatpush1.bf16.xpose.msra.mxu0 0
    %3470 = vmatprep.subr.bf16.mxu0 0
    %3471 = vmatpush1.bf16.xpose.msra.mxu0 0
    %3472 = vmatprep.subr.bf16.mxu0 0
    %3473 = vmatpush1.bf16.xpose.msra.mxu0 0
    %3474 = vmatprep.subr.bf16.mxu0 0
    %3475 = vmatpush1.bf16.xpose.msra.mxu0 0
    %3476 = vmatprep.subr.bf16.mxu0 0
    %3477 = vmatpush1.bf16.xpose.msra.mxu0 0
    %3478 = vmatprep.subr.bf16.mxu0 0
    %3479 = vmatpush1.bf16.xpose.msra.mxu0 0
    %3480 = vmatprep.subr.bf16.mxu0 0
    %3481 = vmatpush1.bf16.xpose.msra.mxu0 0
    %3482 = vmatprep.subr.bf16.mxu0 0
    %3483 = vmatpush1.bf16.xpose.msra.mxu0 0
    %3484 = vmatprep.subr.bf16.mxu0 0
    %3485 = vmatpush1.bf16.xpose.msra.mxu0 0
    %3486 = vmatprep.subr.bf16.mxu0 0
    %3487 = vmatpush1.bf16.xpose.msra.mxu0 0
    %3488 = vmatprep.subr.bf16.mxu0 0
    %3489 = vmatpush1.bf16.xpose.msra.mxu0 0
    %3490 = vmatprep.subr.bf16.mxu0 0
    %3491 = vmatpush1.bf16.xpose.msra.mxu0 0
    %3492 = vmatprep.mubr.bf16.mxu0 0
    %3493 = vmatmul.mubr.bf16.gmra.mrb[0].mxu0 %v3434
    %v3494 = vpop.f32.mrb[0].mxu0
    %v3495 = vadd.f32 %v3446, %v3494
    %v3496 = vpop.f32.mrb[0].mxu0
    %v3497 = vpop.f32.mrb[0].mxu0
    %v3498 = vadd.f32 %v3446, %v3497
    %v3499 = vpop.f32.mrb[0].mxu0
    %3500 = vmatprep.mubr.bf16.mxu0 0
    %3501 = vmatmul.mubr.bf16.gmra.mrb[0].mxu0 %v3435
    %v3502 = vpop.f32.mrb[0].mxu0
    %v3503 = vadd.f32 %v3446, %v3502
    %v3504 = vpop.f32.mrb[0].mxu0
    %v3505 = vpop.f32.mrb[0].mxu0
    %v3506 = vadd.f32 %v3446, %v3505
    %v3507 = vpop.f32.mrb[0].mxu0
    %3508 = vmatprep.mubr.bf16.mxu0 0
    %3509 = vmatmul.mubr.bf16.gmra.mrb[0].mxu0 %v3436
    %v3510 = vpop.f32.mrb[0].mxu0
    %v3511 = vadd.f32 %v3446, %v3510
    %v3512 = vpop.f32.mrb[0].mxu0
    %v3513 = vpop.f32.mrb[0].mxu0
    %v3514 = vadd.f32 %v3446, %v3513
    %v3515 = vpop.f32.mrb[0].mxu0
    %3516 = vmatprep.mubr.bf16.mxu0 0
    %3517 = vmatmul.mubr.bf16.gmra.mrb[0].mxu0 %v3437
    %v3518 = vpop.f32.mrb[0].mxu0
    %v3519 = vadd.f32 %v3446, %v3518
    %v3520 = vpop.f32.mrb[0].mxu0
    %v3521 = vpop.f32.mrb[0].mxu0
    %v3522 = vadd.f32 %v3446, %v3521
    %v3523 = vpop.f32.mrb[0].mxu0
    %3524 = vdwg.mxu0
    %v3525 = vmax.f32 %v3495, 0.0
    %v3526 = vmax.f32 %v3498, 0.0
    %v3527 = vmax.f32 %v3503, 0.0
    %v3528 = vmax.f32 %v3506, 0.0
    %v3529 = vmax.f32 %v3511, 0.0
    %v3530 = vmax.f32 %v3514, 0.0
    %v3531 = vmax.f32 %v3519, 0.0
    %v3532 = vmax.f32 %v3522, 0.0
    %s3533 = scalar_lea.vmem [#allocation26], 3
    %v3534 = vld [vmem:[%s3533] sm:$0x1]
    %v3535 = vsel %vm2458, %v3530, 0.0
    %v3536 = vsel %vm2459, %v3531, 0.0
    %v3537 = vsel %vm2460, %v3532, 0.0
    %v3538 = vsel %vm2461, %v3525, 0.0
    %v3539 = vsel %vm2458, %v3526, 0.0
    %v3540 = vsel %vm2459, %v3527, 0.0
    %v3541 = vsel %vm2460, %v3528, 0.0
    %v3542 = vsel %vm2461, %v3529, 0.0
    %v3543 = vsel %vm2515, %v3531, 0.0
    %v3544 = vsel %vm2516, %v3532, 0.0
    %v3545 = vsel %vm2517, %v3525, 0.0
    %v3546 = vsel %vm2518, %v3526, 0.0
    %v3547 = vsel %vm2515, %v3527, 0.0
    %v3548 = vsel %vm2516, %v3528, 0.0
    %v3549 = vsel %vm2517, %v3529, 0.0
    %v3550 = vsel %vm2518, %v3530, 0.0
    %v3551 = vsel %vm1608, %v3532, 0.0
    %v3552 = vsel %vm1609, %v3525, 0.0
    %v3553 = vsel %vm1610, %v3526, 0.0
    %v3554 = vsel %vm1611, %v3527, 0.0
    %v3555 = vsel %vm1608, %v3528, 0.0
    %v3556 = vsel %vm1609, %v3529, 0.0
    %v3557 = vsel %vm1610, %v3530, 0.0
    %v3558 = vsel %vm1611, %v3531, 0.0
    %3567 = vrot.lane.b32.xlu0 %v3543, 32
    %v3568 = vpop.permute.xlu0 %3567
    %3569 = vrot.lane.b32.xlu0 %v3544, 32
    %v3570 = vpop.permute.xlu0 %3569
    %3571 = vrot.lane.b32.xlu0 %v3545, 32
    %v3572 = vpop.permute.xlu0 %3571
    %3573 = vrot.lane.b32.xlu0 %v3546, 32
    %v3574 = vpop.permute.xlu0 %3573
    %3575 = vrot.lane.b32.xlu0 %v3547, 32
    %v3576 = vpop.permute.xlu0 %3575
    %3577 = vrot.lane.b32.xlu0 %v3548, 32
    %v3578 = vpop.permute.xlu0 %3577
    %3579 = vrot.lane.b32.xlu0 %v3549, 32
    %v3580 = vpop.permute.xlu0 %3579
    %3581 = vrot.lane.b32.xlu0 %v3550, 32
    %v3582 = vpop.permute.xlu0 %3581
    %3599 = vrot.lane.b32.xlu0 %v3551, 64
    %v3600 = vpop.permute.xlu0 %3599
    %3601 = vrot.lane.b32.xlu0 %v3552, 64
    %v3602 = vpop.permute.xlu0 %3601
    %3603 = vrot.lane.b32.xlu0 %v3553, 64
    %v3604 = vpop.permute.xlu0 %3603
    %3605 = vrot.lane.b32.xlu0 %v3554, 64
    %v3606 = vpop.permute.xlu0 %3605
    %3607 = vrot.lane.b32.xlu0 %v3555, 64
    %v3608 = vpop.permute.xlu0 %3607
    %3609 = vrot.lane.b32.xlu0 %v3556, 64
    %v3610 = vpop.permute.xlu0 %3609
    %3611 = vrot.lane.b32.xlu0 %v3557, 64
    %v3612 = vpop.permute.xlu0 %3611
    %3613 = vrot.lane.b32.xlu0 %v3558, 64
    %v3614 = vpop.permute.xlu0 %3613
    %3631 = vrot.lane.b32.xlu0 %v3525, 96
    %v3632 = vpop.permute.xlu0 %3631
    %3633 = vrot.lane.b32.xlu0 %v3526, 96
    %v3634 = vpop.permute.xlu0 %3633
    %3635 = vrot.lane.b32.xlu0 %v3527, 96
    %v3636 = vpop.permute.xlu0 %3635
    %3637 = vrot.lane.b32.xlu0 %v3528, 96
    %v3638 = vpop.permute.xlu0 %3637
    %3639 = vrot.lane.b32.xlu0 %v3529, 96
    %v3640 = vpop.permute.xlu0 %3639
    %3641 = vrot.lane.b32.xlu0 %v3530, 96
    %v3642 = vpop.permute.xlu0 %3641
    %3643 = vrot.lane.b32.xlu0 %v3531, 96
    %v3644 = vpop.permute.xlu0 %3643
    %3645 = vrot.lane.b32.xlu0 %v3532, 96
    %v3646 = vpop.permute.xlu0 %3645
    %v3655 = vsel %vm708, %v3535, %v3568
    %v3656 = vsel %vm708, %v3536, %v3570
    %v3657 = vsel %vm708, %v3537, %v3572
    %v3658 = vsel %vm708, %v3538, %v3574
    %v3659 = vsel %vm708, %v3539, %v3576
    %v3660 = vsel %vm708, %v3540, %v3578
    %v3661 = vsel %vm708, %v3541, %v3580
    %v3662 = vsel %vm708, %v3542, %v3582
    %v3663 = vsel %vm717, %v3655, %v3600
    %v3664 = vsel %vm717, %v3656, %v3602
    %v3665 = vsel %vm717, %v3657, %v3604
    %v3666 = vsel %vm717, %v3658, %v3606
    %v3667 = vsel %vm717, %v3659, %v3608
    %v3668 = vsel %vm717, %v3660, %v3610
    %v3669 = vsel %vm717, %v3661, %v3612
    %v3670 = vsel %vm717, %v3662, %v3614
    %v3671 = vsel %vm726, %v3663, %v3632
    %v3672 = vsel %vm726, %v3664, %v3634
    %v3673 = vsel %vm726, %v3665, %v3636
    %v3674 = vsel %vm726, %v3666, %v3638
    %v3675 = vsel %vm726, %v3667, %v3640
    %v3676 = vsel %vm726, %v3668, %v3642
    %v3677 = vsel %vm726, %v3669, %v3644
    %v3678 = vsel %vm726, %v3670, %v3646
    %v3679 = vpack.c.bf16 %v3672, %v3671
    %v3680 = vpack.c.bf16 %v3674, %v3673
    %v3681 = vpack.c.bf16 %v3676, %v3675
    %v3682 = vpack.c.bf16 %v3678, %v3677
    %v3683 = vld [vmem:[#allocation14] sm:$0xf]
    %v3684 = vld [vmem:[#allocation14 + $0x4] sm:$0xf]
    %v3685 = vld [vmem:[#allocation14 + $0x8] sm:$0xf]
    %v3686 = vld [vmem:[#allocation14 + $0xc] sm:$0xf]
    %v3688 = vlaneseq
    %v3689 = vshrl.u32 %v3688, 7
    %v3690 = vsub.s32 0, %v3689
    %v3691 = vrot.slane %v3534, %v3690
    %v3697 = vunpack.c.l.b16 %v3683
    %v3698 = vunpack.c.l.b16 %v3684
    %v3699 = vunpack.c.l.b16 %v3685
    %v3700 = vunpack.c.l.b16 %v3686
    %v3701 = vpack.c.b16 %v3698, %v3697
    %v3702 = vpack.c.b16 %v3700, %v3699
    %3705 = vmatprep.subr.bf16.mxu0 0
    %3706 = vmatpush1.bf16.xpose.msra.mxu0 %v3701
    %3707 = vmatprep.subr.bf16.mxu0 0
    %3708 = vmatpush1.bf16.xpose.msra.mxu0 %v3702
    %3709 = vmatprep.subr.bf16.mxu0 0
    %3710 = vmatpush1.bf16.xpose.msra.mxu0 0
    %3711 = vmatprep.subr.bf16.mxu0 0
    %3712 = vmatpush1.bf16.xpose.msra.mxu0 0
    %3713 = vmatprep.subr.bf16.mxu0 0
    %3714 = vmatpush1.bf16.xpose.msra.mxu0 0
    %3715 = vmatprep.subr.bf16.mxu0 0
    %3716 = vmatpush1.bf16.xpose.msra.mxu0 0
    %3717 = vmatprep.subr.bf16.mxu0 0
    %3718 = vmatpush1.bf16.xpose.msra.mxu0 0
    %3719 = vmatprep.subr.bf16.mxu0 0
    %3720 = vmatpush1.bf16.xpose.msra.mxu0 0
    %3721 = vmatprep.subr.bf16.mxu0 0
    %3722 = vmatpush1.bf16.xpose.msra.mxu0 0
    %3723 = vmatprep.subr.bf16.mxu0 0
    %3724 = vmatpush1.bf16.xpose.msra.mxu0 0
    %3725 = vmatprep.subr.bf16.mxu0 0
    %3726 = vmatpush1.bf16.xpose.msra.mxu0 0
    %3727 = vmatprep.subr.bf16.mxu0 0
    %3728 = vmatpush1.bf16.xpose.msra.mxu0 0
    %3729 = vmatprep.subr.bf16.mxu0 0
    %3730 = vmatpush1.bf16.xpose.msra.mxu0 0
    %3731 = vmatprep.subr.bf16.mxu0 0
    %3732 = vmatpush1.bf16.xpose.msra.mxu0 0
    %3733 = vmatprep.subr.bf16.mxu0 0
    %3734 = vmatpush1.bf16.xpose.msra.mxu0 0
    %3735 = vmatprep.subr.bf16.mxu0 0
    %3736 = vmatpush1.bf16.xpose.msra.mxu0 0
    %3737 = vmatprep.mubr.bf16.mxu0 0
    %3738 = vmatmul.mubr.bf16.gmra.mrb[0].mxu0 %v3679
    %v3739 = vpop.f32.mrb[0].mxu0
    %v3740 = vadd.f32 %v3691, %v3739
    %v3741 = vpop.f32.mrb[0].mxu0
    %v3742 = vpop.f32.mrb[0].mxu0
    %v3743 = vadd.f32 %v3691, %v3742
    %v3744 = vpop.f32.mrb[0].mxu0
    %3745 = vmatprep.mubr.bf16.mxu0 0
    %3746 = vmatmul.mubr.bf16.gmra.mrb[0].mxu0 %v3680
    %v3747 = vpop.f32.mrb[0].mxu0
    %v3748 = vadd.f32 %v3691, %v3747
    %v3749 = vpop.f32.mrb[0].mxu0
    %v3750 = vpop.f32.mrb[0].mxu0
    %v3751 = vadd.f32 %v3691, %v3750
    %v3752 = vpop.f32.mrb[0].mxu0
    %3753 = vmatprep.mubr.bf16.mxu0 0
    %3754 = vmatmul.mubr.bf16.gmra.mrb[0].mxu0 %v3681
    %v3755 = vpop.f32.mrb[0].mxu0
    %v3756 = vadd.f32 %v3691, %v3755
    %v3757 = vpop.f32.mrb[0].mxu0
    %v3758 = vpop.f32.mrb[0].mxu0
    %v3759 = vadd.f32 %v3691, %v3758
    %v3760 = vpop.f32.mrb[0].mxu0
    %3761 = vmatprep.mubr.bf16.mxu0 0
    %3762 = vmatmul.mubr.bf16.gmra.mrb[0].mxu0 %v3682
    %v3763 = vpop.f32.mrb[0].mxu0
    %v3764 = vadd.f32 %v3691, %v3763
    %v3765 = vpop.f32.mrb[0].mxu0
    %v3766 = vpop.f32.mrb[0].mxu0
    %v3767 = vadd.f32 %v3691, %v3766
    %v3768 = vpop.f32.mrb[0].mxu0
    %3769 = vdwg.mxu0
    %v3770 = vmax.f32 %v3740, 0.0
    %v3771 = vmax.f32 %v3743, 0.0
    %v3772 = vmax.f32 %v3748, 0.0
    %v3773 = vmax.f32 %v3751, 0.0
    %v3774 = vmax.f32 %v3756, 0.0
    %v3775 = vmax.f32 %v3759, 0.0
    %v3776 = vmax.f32 %v3764, 0.0
    %v3777 = vmax.f32 %v3767, 0.0
    %v3778 = vadd.f32 %v3770, %v3280
    %v3779 = vadd.f32 %v3771, %v3281
    %v3780 = vadd.f32 %v3772, %v3282
    %v3781 = vadd.f32 %v3773, %v3283
    %v3782 = vadd.f32 %v3774, %v3284
    %v3783 = vadd.f32 %v3775, %v3285
    %v3784 = vadd.f32 %v3776, %v3286
    %v3785 = vadd.f32 %v3777, %v3287
    %v3786 = vmax.f32 %v3778, 0.0
    %v3787 = vmax.f32 %v3779, 0.0
    %v3788 = vmax.f32 %v3780, 0.0
    %v3789 = vmax.f32 %v3781, 0.0
    %v3790 = vmax.f32 %v3782, 0.0
    %v3791 = vmax.f32 %v3783, 0.0
    %v3792 = vmax.f32 %v3784, 0.0
    %v3793 = vmax.f32 %v3785, 0.0
    %s3794 = scalar_lea.vmem [#allocation25], 4
    %v3795 = vld [vmem:[%s3794] sm:$0x1]
    %v3796 = vsel %vm2515, %v3792, 0.0
    %v3797 = vsel %vm2516, %v3793, 0.0
    %v3798 = vsel %vm2517, %v3786, 0.0
    %v3799 = vsel %vm2518, %v3787, 0.0
    %v3800 = vsel %vm2515, %v3788, 0.0
    %v3801 = vsel %vm2516, %v3789, 0.0
    %v3802 = vsel %vm2517, %v3790, 0.0
    %v3803 = vsel %vm2518, %v3791, 0.0
    %3812 = vrot.lane.b32.xlu0 %v3786, 32
    %v3813 = vpop.permute.xlu0 %3812
    %3814 = vrot.lane.b32.xlu0 %v3787, 32
    %v3815 = vpop.permute.xlu0 %3814
    %3816 = vrot.lane.b32.xlu0 %v3788, 32
    %v3817 = vpop.permute.xlu0 %3816
    %3818 = vrot.lane.b32.xlu0 %v3789, 32
    %v3819 = vpop.permute.xlu0 %3818
    %3820 = vrot.lane.b32.xlu0 %v3790, 32
    %v3821 = vpop.permute.xlu0 %3820
    %3822 = vrot.lane.b32.xlu0 %v3791, 32
    %v3823 = vpop.permute.xlu0 %3822
    %3824 = vrot.lane.b32.xlu0 %v3792, 32
    %v3825 = vpop.permute.xlu0 %3824
    %3826 = vrot.lane.b32.xlu0 %v3793, 32
    %v3827 = vpop.permute.xlu0 %3826
    %v3836 = vsel %vm708, %v3796, %v3813
    %v3837 = vsel %vm708, %v3797, %v3815
    %v3838 = vsel %vm708, %v3798, %v3817
    %v3839 = vsel %vm708, %v3799, %v3819
    %v3840 = vsel %vm708, %v3800, %v3821
    %v3841 = vsel %vm708, %v3801, %v3823
    %v3842 = vsel %vm708, %v3802, %v3825
    %v3843 = vsel %vm708, %v3803, %v3827
    %v3844 = vpack.c.bf16 %v3837, %v3836
    %v3845 = vpack.c.bf16 %v3839, %v3838
    %v3846 = vpack.c.bf16 %v3841, %v3840
    %v3847 = vpack.c.bf16 %v3843, %v3842
    %v3848 = vld [vmem:[%s9] sm:$0xf]
    %v3849 = vld [vmem:[%s9 + $0x4] sm:$0xf]
    %v3850 = vld [vmem:[%s9 + $0x8] sm:$0xf]
    %v3851 = vld [vmem:[%s9 + $0xc] sm:$0xf]
    %v3853 = vlaneseq
    %v3854 = vshrl.u32 %v3853, 7
    %v3855 = vsub.s32 0, %v3854
    %v3856 = vrot.slane %v3795, %v3855
    %v3862 = vunpack.c.l.b16 %v3848
    %v3863 = vunpack.c.l.b16 %v3849
    %v3864 = vunpack.c.l.b16 %v3850
    %v3865 = vunpack.c.l.b16 %v3851
    %v3866 = vpack.c.b16 %v3863, %v3862
    %v3867 = vpack.c.b16 %v3865, %v3864
    %v3869 = vsel %vm717, %v3844, 0
    %v3872 = vsel %vm717, %v3845, 0
    %v3875 = vsel %vm717, %v3846, 0
    %v3878 = vsel %vm717, %v3847, 0
    %v3881 = vsel %vm717, %v3866, 0
    %v3884 = vsel %vm717, %v3867, 0
    %3886 = vmatprep.subr.bf16.mxu0 0
    %3887 = vmatpush1.bf16.xpose.msra.mxu0 %v3881
    %3888 = vmatprep.subr.bf16.mxu0 0
    %3889 = vmatpush1.bf16.xpose.msra.mxu0 %v3884
    %3890 = vmatprep.subr.bf16.mxu0 0
    %3891 = vmatpush1.bf16.xpose.msra.mxu0 0
    %3892 = vmatprep.subr.bf16.mxu0 0
    %3893 = vmatpush1.bf16.xpose.msra.mxu0 0
    %3894 = vmatprep.subr.bf16.mxu0 0
    %3895 = vmatpush1.bf16.xpose.msra.mxu0 0
    %3896 = vmatprep.subr.bf16.mxu0 0
    %3897 = vmatpush1.bf16.xpose.msra.mxu0 0
    %3898 = vmatprep.subr.bf16.mxu0 0
    %3899 = vmatpush1.bf16.xpose.msra.mxu0 0
    %3900 = vmatprep.subr.bf16.mxu0 0
    %3901 = vmatpush1.bf16.xpose.msra.mxu0 0
    %3902 = vmatprep.subr.bf16.mxu0 0
    %3903 = vmatpush1.bf16.xpose.msra.mxu0 0
    %3904 = vmatprep.subr.bf16.mxu0 0
    %3905 = vmatpush1.bf16.xpose.msra.mxu0 0
    %3906 = vmatprep.subr.bf16.mxu0 0
    %3907 = vmatpush1.bf16.xpose.msra.mxu0 0
    %3908 = vmatprep.subr.bf16.mxu0 0
    %3909 = vmatpush1.bf16.xpose.msra.mxu0 0
    %3910 = vmatprep.subr.bf16.mxu0 0
    %3911 = vmatpush1.bf16.xpose.msra.mxu0 0
    %3912 = vmatprep.subr.bf16.mxu0 0
    %3913 = vmatpush1.bf16.xpose.msra.mxu0 0
    %3914 = vmatprep.subr.bf16.mxu0 0
    %3915 = vmatpush1.bf16.xpose.msra.mxu0 0
    %3916 = vmatprep.subr.bf16.mxu0 0
    %3917 = vmatpush1.bf16.xpose.msra.mxu0 0
    %3918 = vmatprep.mubr.bf16.mxu0 0
    %3919 = vmatmul.mubr.bf16.gmra.mrb[0].mxu0 %v3869
    %v3920 = vpop.f32.mrb[0].mxu0
    %v3921 = vadd.f32 %v3856, %v3920
    %v3922 = vpop.f32.mrb[0].mxu0
    %v3923 = vpop.f32.mrb[0].mxu0
    %v3924 = vadd.f32 %v3856, %v3923
    %v3925 = vpop.f32.mrb[0].mxu0
    %3926 = vmatprep.mubr.bf16.mxu0 0
    %3927 = vmatmul.mubr.bf16.gmra.mrb[0].mxu0 %v3872
    %v3928 = vpop.f32.mrb[0].mxu0
    %v3929 = vadd.f32 %v3856, %v3928
    %v3930 = vpop.f32.mrb[0].mxu0
    %v3931 = vpop.f32.mrb[0].mxu0
    %v3932 = vadd.f32 %v3856, %v3931
    %v3933 = vpop.f32.mrb[0].mxu0
    %3934 = vmatprep.mubr.bf16.mxu0 0
    %3935 = vmatmul.mubr.bf16.gmra.mrb[0].mxu0 %v3875
    %v3936 = vpop.f32.mrb[0].mxu0
    %v3937 = vadd.f32 %v3856, %v3936
    %v3938 = vpop.f32.mrb[0].mxu0
    %v3939 = vpop.f32.mrb[0].mxu0
    %v3940 = vadd.f32 %v3856, %v3939
    %v3941 = vpop.f32.mrb[0].mxu0
    %3942 = vmatprep.mubr.bf16.mxu0 0
    %3943 = vmatmul.mubr.bf16.gmra.mrb[0].mxu0 %v3878
    %v3944 = vpop.f32.mrb[0].mxu0
    %v3945 = vadd.f32 %v3856, %v3944
    %v3946 = vpop.f32.mrb[0].mxu0
    %v3947 = vpop.f32.mrb[0].mxu0
    %v3948 = vadd.f32 %v3856, %v3947
    %v3949 = vpop.f32.mrb[0].mxu0
    %3950 = vdwg.mxu0
    %v3951 = vmax.f32 %v3921, 0.0
    %v3952 = vmax.f32 %v3924, 0.0
    %v3953 = vmax.f32 %v3929, 0.0
    %v3954 = vmax.f32 %v3932, 0.0
    %v3955 = vmax.f32 %v3937, 0.0
    %v3956 = vmax.f32 %v3940, 0.0
    %v3957 = vmax.f32 %v3945, 0.0
    %v3958 = vmax.f32 %v3948, 0.0
    %s3959 = scalar_lea.vmem [#allocation26], 4
    %v3960 = vld [vmem:[%s3959] sm:$0x1]
    %v3961 = vsel %vm2515, %v3957, 0.0
    %v3962 = vsel %vm2516, %v3958, 0.0
    %v3963 = vsel %vm2517, %v3951, 0.0
    %v3964 = vsel %vm2518, %v3952, 0.0
    %v3965 = vsel %vm2515, %v3953, 0.0
    %v3966 = vsel %vm2516, %v3954, 0.0
    %v3967 = vsel %vm2517, %v3955, 0.0
    %v3968 = vsel %vm2518, %v3956, 0.0
    %3977 = vrot.lane.b32.xlu0 %v3951, 32
    %v3978 = vpop.permute.xlu0 %3977
    %3979 = vrot.lane.b32.xlu0 %v3952, 32
    %v3980 = vpop.permute.xlu0 %3979
    %3981 = vrot.lane.b32.xlu0 %v3953, 32
    %v3982 = vpop.permute.xlu0 %3981
    %3983 = vrot.lane.b32.xlu0 %v3954, 32
    %v3984 = vpop.permute.xlu0 %3983
    %3985 = vrot.lane.b32.xlu0 %v3955, 32
    %v3986 = vpop.permute.xlu0 %3985
    %3987 = vrot.lane.b32.xlu0 %v3956, 32
    %v3988 = vpop.permute.xlu0 %3987
    %3989 = vrot.lane.b32.xlu0 %v3957, 32
    %v3990 = vpop.permute.xlu0 %3989
    %3991 = vrot.lane.b32.xlu0 %v3958, 32
    %v3992 = vpop.permute.xlu0 %3991
    %v4001 = vsel %vm708, %v3961, %v3978
    %v4002 = vsel %vm708, %v3962, %v3980
    %v4003 = vsel %vm708, %v3963, %v3982
    %v4004 = vsel %vm708, %v3964, %v3984
    %v4005 = vsel %vm708, %v3965, %v3986
    %v4006 = vsel %vm708, %v3966, %v3988
    %v4007 = vsel %vm708, %v3967, %v3990
    %v4008 = vsel %vm708, %v3968, %v3992
    %v4009 = vpack.c.bf16 %v4002, %v4001
    %v4010 = vpack.c.bf16 %v4004, %v4003
    %v4011 = vpack.c.bf16 %v4006, %v4005
    %v4012 = vpack.c.bf16 %v4008, %v4007
    %v4013 = vld [vmem:[#allocation16] sm:$0xf]
    %v4014 = vld [vmem:[#allocation16 + $0x4] sm:$0xf]
    %v4015 = vld [vmem:[#allocation16 + $0x8] sm:$0xf]
    %v4016 = vld [vmem:[#allocation16 + $0xc] sm:$0xf]
    %v4018 = vlaneseq
    %v4019 = vshrl.u32 %v4018, 7
    %v4020 = vsub.s32 0, %v4019
    %v4021 = vrot.slane %v3960, %v4020
    %v4027 = vunpack.c.l.b16 %v4013
    %v4028 = vunpack.c.l.b16 %v4014
    %v4029 = vunpack.c.l.b16 %v4015
    %v4030 = vunpack.c.l.b16 %v4016
    %v4031 = vpack.c.b16 %v4028, %v4027
    %v4032 = vpack.c.b16 %v4030, %v4029
    %v4034 = vsel %vm717, %v4009, 0
    %v4037 = vsel %vm717, %v4010, 0
    %v4040 = vsel %vm717, %v4011, 0
    %v4043 = vsel %vm717, %v4012, 0
    %v4046 = vsel %vm717, %v4031, 0
    %v4049 = vsel %vm717, %v4032, 0
    %4051 = vmatprep.subr.bf16.mxu0 0
    %4052 = vmatpush1.bf16.xpose.msra.mxu0 %v4046
    %4053 = vmatprep.subr.bf16.mxu0 0
    %4054 = vmatpush1.bf16.xpose.msra.mxu0 %v4049
    %4055 = vmatprep.subr.bf16.mxu0 0
    %4056 = vmatpush1.bf16.xpose.msra.mxu0 0
    %4057 = vmatprep.subr.bf16.mxu0 0
    %4058 = vmatpush1.bf16.xpose.msra.mxu0 0
    %4059 = vmatprep.subr.bf16.mxu0 0
    %4060 = vmatpush1.bf16.xpose.msra.mxu0 0
    %4061 = vmatprep.subr.bf16.mxu0 0
    %4062 = vmatpush1.bf16.xpose.msra.mxu0 0
    %4063 = vmatprep.subr.bf16.mxu0 0
    %4064 = vmatpush1.bf16.xpose.msra.mxu0 0
    %4065 = vmatprep.subr.bf16.mxu0 0
    %4066 = vmatpush1.bf16.xpose.msra.mxu0 0
    %4067 = vmatprep.subr.bf16.mxu0 0
    %4068 = vmatpush1.bf16.xpose.msra.mxu0 0
    %4069 = vmatprep.subr.bf16.mxu0 0
    %4070 = vmatpush1.bf16.xpose.msra.mxu0 0
    %4071 = vmatprep.subr.bf16.mxu0 0
    %4072 = vmatpush1.bf16.xpose.msra.mxu0 0
    %4073 = vmatprep.subr.bf16.mxu0 0
    %4074 = vmatpush1.bf16.xpose.msra.mxu0 0
    %4075 = vmatprep.subr.bf16.mxu0 0
    %4076 = vmatpush1.bf16.xpose.msra.mxu0 0
    %4077 = vmatprep.subr.bf16.mxu0 0
    %4078 = vmatpush1.bf16.xpose.msra.mxu0 0
    %4079 = vmatprep.subr.bf16.mxu0 0
    %4080 = vmatpush1.bf16.xpose.msra.mxu0 0
    %4081 = vmatprep.subr.bf16.mxu0 0
    %4082 = vmatpush1.bf16.xpose.msra.mxu0 0
    %4083 = vmatprep.mubr.bf16.mxu0 0
    %4084 = vmatmul.mubr.bf16.gmra.mrb[0].mxu0 %v4034
    %v4085 = vpop.f32.mrb[0].mxu0
    %v4086 = vadd.f32 %v4021, %v4085
    %v4087 = vpop.f32.mrb[0].mxu0
    %v4088 = vpop.f32.mrb[0].mxu0
    %v4089 = vadd.f32 %v4021, %v4088
    %v4090 = vpop.f32.mrb[0].mxu0
    %4091 = vmatprep.mubr.bf16.mxu0 0
    %4092 = vmatmul.mubr.bf16.gmra.mrb[0].mxu0 %v4037
    %v4093 = vpop.f32.mrb[0].mxu0
    %v4094 = vadd.f32 %v4021, %v4093
    %v4095 = vpop.f32.mrb[0].mxu0
    %v4096 = vpop.f32.mrb[0].mxu0
    %v4097 = vadd.f32 %v4021, %v4096
    %v4098 = vpop.f32.mrb[0].mxu0
    %4099 = vmatprep.mubr.bf16.mxu0 0
    %4100 = vmatmul.mubr.bf16.gmra.mrb[0].mxu0 %v4040
    %v4101 = vpop.f32.mrb[0].mxu0
    %v4102 = vadd.f32 %v4021, %v4101
    %v4103 = vpop.f32.mrb[0].mxu0
    %v4104 = vpop.f32.mrb[0].mxu0
    %v4105 = vadd.f32 %v4021, %v4104
    %v4106 = vpop.f32.mrb[0].mxu0
    %4107 = vmatprep.mubr.bf16.mxu0 0
    %4108 = vmatmul.mubr.bf16.gmra.mrb[0].mxu0 %v4043
    %v4109 = vpop.f32.mrb[0].mxu0
    %v4110 = vadd.f32 %v4021, %v4109
    %v4111 = vpop.f32.mrb[0].mxu0
    %v4112 = vpop.f32.mrb[0].mxu0
    %v4113 = vadd.f32 %v4021, %v4112
    %v4114 = vpop.f32.mrb[0].mxu0
    %4115 = vdwg.mxu0
    %v4116 = vmax.f32 %v4086, 0.0
    %v4117 = vmax.f32 %v4089, 0.0
    %v4118 = vmax.f32 %v4094, 0.0
    %v4119 = vmax.f32 %v4097, 0.0
    %v4120 = vmax.f32 %v4102, 0.0
    %v4121 = vmax.f32 %v4105, 0.0
    %v4122 = vmax.f32 %v4110, 0.0
    %v4123 = vmax.f32 %v4113, 0.0
    %v4124 = vadd.f32 %v4116, %v3786
    %v4125 = vadd.f32 %v4117, %v3787
    %v4126 = vadd.f32 %v4118, %v3788
    %v4127 = vadd.f32 %v4119, %v3789
    %v4128 = vadd.f32 %v4120, %v3790
    %v4129 = vadd.f32 %v4121, %v3791
    %v4130 = vadd.f32 %v4122, %v3792
    %v4131 = vadd.f32 %v4123, %v3793
    %v4132 = vmax.f32 %v4124, 0.0
    %v4133 = vmax.f32 %v4125, 0.0
    %v4134 = vmax.f32 %v4126, 0.0
    %v4135 = vmax.f32 %v4127, 0.0
    %v4136 = vmax.f32 %v4128, 0.0
    %v4137 = vmax.f32 %v4129, 0.0
    %v4138 = vmax.f32 %v4130, 0.0
    %v4139 = vmax.f32 %v4131, 0.0
    %s4140 = scalar_lea.vmem [#allocation25], 5
    %v4141 = vld [vmem:[%s4140] sm:$0x1]
    %v4142 = vpack.c.bf16 %v4133, %v4132
    %v4143 = vpack.c.bf16 %v4135, %v4134
    %v4144 = vpack.c.bf16 %v4137, %v4136
    %v4145 = vpack.c.bf16 %v4139, %v4138
    %v4146 = vld [vmem:[#allocation17] sm:$0xf]
    %v4147 = vld [vmem:[#allocation17 + $0x4] sm:$0xf]
    %v4148 = vld [vmem:[#allocation17 + $0x8] sm:$0xf]
    %v4149 = vld [vmem:[#allocation17 + $0xc] sm:$0xf]
    %v4151 = vlaneseq
    %v4152 = vshrl.u32 %v4151, 7
    %v4153 = vsub.s32 0, %v4152
    %v4154 = vrot.slane %v4141, %v4153
    %v4160 = vunpack.c.l.b16 %v4146
    %v4161 = vunpack.c.l.b16 %v4147
    %v4162 = vunpack.c.l.b16 %v4148
    %v4163 = vunpack.c.l.b16 %v4149
    %v4164 = vpack.c.b16 %v4161, %v4160
    %v4165 = vpack.c.b16 %v4163, %v4162
    %v4167 = vsel %vm708, %v4142, 0
    %v4170 = vsel %vm708, %v4143, 0
    %v4173 = vsel %vm708, %v4144, 0
    %v4176 = vsel %vm708, %v4145, 0
    %v4179 = vsel %vm708, %v4164, 0
    %v4182 = vsel %vm708, %v4165, 0
    %4184 = vmatprep.subr.bf16.mxu0 0
    %4185 = vmatpush1.bf16.xpose.msra.mxu0 %v4179
    %4186 = vmatprep.subr.bf16.mxu0 0
    %4187 = vmatpush1.bf16.xpose.msra.mxu0 %v4182
    %4188 = vmatprep.subr.bf16.mxu0 0
    %4189 = vmatpush1.bf16.xpose.msra.mxu0 0
    %4190 = vmatprep.subr.bf16.mxu0 0
    %4191 = vmatpush1.bf16.xpose.msra.mxu0 0
    %4192 = vmatprep.subr.bf16.mxu0 0
    %4193 = vmatpush1.bf16.xpose.msra.mxu0 0
    %4194 = vmatprep.subr.bf16.mxu0 0
    %4195 = vmatpush1.bf16.xpose.msra.mxu0 0
    %4196 = vmatprep.subr.bf16.mxu0 0
    %4197 = vmatpush1.bf16.xpose.msra.mxu0 0
    %4198 = vmatprep.subr.bf16.mxu0 0
    %4199 = vmatpush1.bf16.xpose.msra.mxu0 0
    %4200 = vmatprep.subr.bf16.mxu0 0
    %4201 = vmatpush1.bf16.xpose.msra.mxu0 0
    %4202 = vmatprep.subr.bf16.mxu0 0
    %4203 = vmatpush1.bf16.xpose.msra.mxu0 0
    %4204 = vmatprep.subr.bf16.mxu0 0
    %4205 = vmatpush1.bf16.xpose.msra.mxu0 0
    %4206 = vmatprep.subr.bf16.mxu0 0
    %4207 = vmatpush1.bf16.xpose.msra.mxu0 0
    %4208 = vmatprep.subr.bf16.mxu0 0
    %4209 = vmatpush1.bf16.xpose.msra.mxu0 0
    %4210 = vmatprep.subr.bf16.mxu0 0
    %4211 = vmatpush1.bf16.xpose.msra.mxu0 0
    %4212 = vmatprep.subr.bf16.mxu0 0
    %4213 = vmatpush1.bf16.xpose.msra.mxu0 0
    %4214 = vmatprep.subr.bf16.mxu0 0
    %4215 = vmatpush1.bf16.xpose.msra.mxu0 0
    %4216 = vmatprep.mubr.bf16.mxu0 0
    %4217 = vmatmul.mubr.bf16.gmra.mrb[0].mxu0 %v4167
    %v4218 = vpop.f32.mrb[0].mxu0
    %v4219 = vadd.f32 %v4154, %v4218
    %v4220 = vpop.f32.mrb[0].mxu0
    %v4221 = vpop.f32.mrb[0].mxu0
    %v4222 = vadd.f32 %v4154, %v4221
    %v4223 = vpop.f32.mrb[0].mxu0
    %4224 = vmatprep.mubr.bf16.mxu0 0
    %4225 = vmatmul.mubr.bf16.gmra.mrb[0].mxu0 %v4170
    %v4226 = vpop.f32.mrb[0].mxu0
    %v4227 = vadd.f32 %v4154, %v4226
    %v4228 = vpop.f32.mrb[0].mxu0
    %v4229 = vpop.f32.mrb[0].mxu0
    %v4230 = vadd.f32 %v4154, %v4229
    %v4231 = vpop.f32.mrb[0].mxu0
    %4232 = vmatprep.mubr.bf16.mxu0 0
    %4233 = vmatmul.mubr.bf16.gmra.mrb[0].mxu0 %v4173
    %v4234 = vpop.f32.mrb[0].mxu0
    %v4235 = vadd.f32 %v4154, %v4234
    %v4236 = vpop.f32.mrb[0].mxu0
    %v4237 = vpop.f32.mrb[0].mxu0
    %v4238 = vadd.f32 %v4154, %v4237
    %v4239 = vpop.f32.mrb[0].mxu0
    %4240 = vmatprep.mubr.bf16.mxu0 0
    %4241 = vmatmul.mubr.bf16.gmra.mrb[0].mxu0 %v4176
    %v4242 = vpop.f32.mrb[0].mxu0
    %v4243 = vadd.f32 %v4154, %v4242
    %v4244 = vpop.f32.mrb[0].mxu0
    %v4245 = vpop.f32.mrb[0].mxu0
    %v4246 = vadd.f32 %v4154, %v4245
    %v4247 = vpop.f32.mrb[0].mxu0
    %4248 = vdwg.mxu0
    %v4249 = vmax.f32 %v4219, 0.0
    %v4250 = vmax.f32 %v4222, 0.0
    %v4251 = vmax.f32 %v4227, 0.0
    %v4252 = vmax.f32 %v4230, 0.0
    %v4253 = vmax.f32 %v4235, 0.0
    %v4254 = vmax.f32 %v4238, 0.0
    %v4255 = vmax.f32 %v4243, 0.0
    %v4256 = vmax.f32 %v4246, 0.0
    %s4257 = scalar_lea.vmem [#allocation26], 5
    %v4258 = vld [vmem:[%s4257] sm:$0x1]
    %v4259 = vpack.c.bf16 %v4250, %v4249
    %v4260 = vpack.c.bf16 %v4252, %v4251
    %v4261 = vpack.c.bf16 %v4254, %v4253
    %v4262 = vpack.c.bf16 %v4256, %v4255
    %v4263 = vld [vmem:[#allocation19] sm:$0xf]
    %v4264 = vld [vmem:[#allocation19 + $0x4] sm:$0xf]
    %v4265 = vld [vmem:[#allocation19 + $0x8] sm:$0xf]
    %v4266 = vld [vmem:[#allocation19 + $0xc] sm:$0xf]
    %v4268 = vlaneseq
    %v4269 = vshrl.u32 %v4268, 7
    %v4270 = vsub.s32 0, %v4269
    %v4271 = vrot.slane %v4258, %v4270
    %v4277 = vunpack.c.l.b16 %v4263
    %v4278 = vunpack.c.l.b16 %v4264
    %v4279 = vunpack.c.l.b16 %v4265
    %v4280 = vunpack.c.l.b16 %v4266
    %v4281 = vpack.c.b16 %v4278, %v4277
    %v4282 = vpack.c.b16 %v4280, %v4279
    %v4284 = vsel %vm708, %v4259, 0
    %v4287 = vsel %vm708, %v4260, 0
    %v4290 = vsel %vm708, %v4261, 0
    %v4293 = vsel %vm708, %v4262, 0
    %v4296 = vsel %vm708, %v4281, 0
    %v4299 = vsel %vm708, %v4282, 0
    %4301 = vmatprep.subr.bf16.mxu0 0
    %4302 = vmatpush1.bf16.xpose.msra.mxu0 %v4296
    %4303 = vmatprep.subr.bf16.mxu0 0
    %4304 = vmatpush1.bf16.xpose.msra.mxu0 %v4299
    %4305 = vmatprep.subr.bf16.mxu0 0
    %4306 = vmatpush1.bf16.xpose.msra.mxu0 0
    %4307 = vmatprep.subr.bf16.mxu0 0
    %4308 = vmatpush1.bf16.xpose.msra.mxu0 0
    %4309 = vmatprep.subr.bf16.mxu0 0
    %4310 = vmatpush1.bf16.xpose.msra.mxu0 0
    %4311 = vmatprep.subr.bf16.mxu0 0
    %4312 = vmatpush1.bf16.xpose.msra.mxu0 0
    %4313 = vmatprep.subr.bf16.mxu0 0
    %4314 = vmatpush1.bf16.xpose.msra.mxu0 0
    %4315 = vmatprep.subr.bf16.mxu0 0
    %4316 = vmatpush1.bf16.xpose.msra.mxu0 0
    %4317 = vmatprep.subr.bf16.mxu0 0
    %4318 = vmatpush1.bf16.xpose.msra.mxu0 0
    %4319 = vmatprep.subr.bf16.mxu0 0
    %4320 = vmatpush1.bf16.xpose.msra.mxu0 0
    %4321 = vmatprep.subr.bf16.mxu0 0
    %4322 = vmatpush1.bf16.xpose.msra.mxu0 0
    %4323 = vmatprep.subr.bf16.mxu0 0
    %4324 = vmatpush1.bf16.xpose.msra.mxu0 0
    %4325 = vmatprep.subr.bf16.mxu0 0
    %4326 = vmatpush1.bf16.xpose.msra.mxu0 0
    %4327 = vmatprep.subr.bf16.mxu0 0
    %4328 = vmatpush1.bf16.xpose.msra.mxu0 0
    %4329 = vmatprep.subr.bf16.mxu0 0
    %4330 = vmatpush1.bf16.xpose.msra.mxu0 0
    %4331 = vmatprep.subr.bf16.mxu0 0
    %4332 = vmatpush1.bf16.xpose.msra.mxu0 0
    %4333 = vmatprep.mubr.bf16.mxu0 0
    %4334 = vmatmul.mubr.bf16.gmra.mrb[0].mxu0 %v4284
    %v4335 = vpop.f32.mrb[0].mxu0
    %v4336 = vadd.f32 %v4271, %v4335
    %v4337 = vpop.f32.mrb[0].mxu0
    %v4338 = vpop.f32.mrb[0].mxu0
    %v4339 = vadd.f32 %v4271, %v4338
    %v4340 = vpop.f32.mrb[0].mxu0
    %4341 = vmatprep.mubr.bf16.mxu0 0
    %4342 = vmatmul.mubr.bf16.gmra.mrb[0].mxu0 %v4287
    %v4343 = vpop.f32.mrb[0].mxu0
    %v4344 = vadd.f32 %v4271, %v4343
    %v4345 = vpop.f32.mrb[0].mxu0
    %v4346 = vpop.f32.mrb[0].mxu0
    %v4347 = vadd.f32 %v4271, %v4346
    %v4348 = vpop.f32.mrb[0].mxu0
    %4349 = vmatprep.mubr.bf16.mxu0 0
    %4350 = vmatmul.mubr.bf16.gmra.mrb[0].mxu0 %v4290
    %v4351 = vpop.f32.mrb[0].mxu0
    %v4352 = vadd.f32 %v4271, %v4351
    %v4353 = vpop.f32.mrb[0].mxu0
    %v4354 = vpop.f32.mrb[0].mxu0
    %v4355 = vadd.f32 %v4271, %v4354
    %v4356 = vpop.f32.mrb[0].mxu0
    %4357 = vmatprep.mubr.bf16.mxu0 0
    %4358 = vmatmul.mubr.bf16.gmra.mrb[0].mxu0 %v4293
    %v4359 = vpop.f32.mrb[0].mxu0
    %v4360 = vadd.f32 %v4271, %v4359
    %v4361 = vpop.f32.mrb[0].mxu0
    %v4362 = vpop.f32.mrb[0].mxu0
    %v4363 = vadd.f32 %v4271, %v4362
    %v4364 = vpop.f32.mrb[0].mxu0
    %4365 = vdwg.mxu0
    %v4366 = vmax.f32 %v4336, 0.0
    %v4367 = vmax.f32 %v4339, 0.0
    %v4368 = vmax.f32 %v4344, 0.0
    %v4369 = vmax.f32 %v4347, 0.0
    %v4370 = vmax.f32 %v4352, 0.0
    %v4371 = vmax.f32 %v4355, 0.0
    %v4372 = vmax.f32 %v4360, 0.0
    %v4373 = vmax.f32 %v4363, 0.0
    %v4374 = vadd.f32 %v4366, %v4132
    %v4375 = vadd.f32 %v4367, %v4133
    %v4376 = vadd.f32 %v4368, %v4134
    %v4377 = vadd.f32 %v4369, %v4135
    %v4378 = vadd.f32 %v4370, %v4136
    %v4379 = vadd.f32 %v4371, %v4137
    %v4380 = vadd.f32 %v4372, %v4138
    %v4381 = vadd.f32 %v4373, %v4139
    %v4382 = vmax.f32 %v4374, 0.0
    %v4383 = vmax.f32 %v4375, 0.0
    %v4384 = vmax.f32 %v4376, 0.0
    %v4385 = vmax.f32 %v4377, 0.0
    %v4386 = vmax.f32 %v4378, 0.0
    %v4387 = vmax.f32 %v4379, 0.0
    %v4388 = vmax.f32 %v4380, 0.0
    %v4389 = vmax.f32 %v4381, 0.0
    %s4390 = scalar_lea.vmem [#allocation25], 6
    %v4391 = vld [vmem:[%s4390] sm:$0x1]
    %v4392 = vpack.c.bf16 %v4383, %v4382
    %v4393 = vpack.c.bf16 %v4385, %v4384
    %v4394 = vpack.c.bf16 %v4387, %v4386
    %v4395 = vpack.c.bf16 %v4389, %v4388
    %v4396 = vld [vmem:[%s13] sm:$0xf]
    %v4397 = vld [vmem:[%s13 + $0x4] sm:$0xf]
    %v4398 = vld [vmem:[%s13 + $0x8] sm:$0xf]
    %v4399 = vld [vmem:[%s13 + $0xc] sm:$0xf]
    %v4401 = vlaneseq
    %v4402 = vshrl.u32 %v4401, 7
    %v4403 = vsub.s32 0, %v4402
    %v4404 = vrot.slane %v4391, %v4403
    %v4410 = vunpack.c.l.b16 %v4396
    %v4411 = vunpack.c.l.b16 %v4397
    %v4412 = vunpack.c.l.b16 %v4398
    %v4413 = vunpack.c.l.b16 %v4399
    %v4414 = vpack.c.b16 %v4411, %v4410
    %v4415 = vpack.c.b16 %v4413, %v4412
    %v4417 = vsel %vm708, %v4392, 0
    %v4420 = vsel %vm708, %v4393, 0
    %v4423 = vsel %vm708, %v4394, 0
    %v4426 = vsel %vm708, %v4395, 0
    %v4429 = vsel %vm708, %v4414, 0
    %v4432 = vsel %vm708, %v4415, 0
    %4434 = vmatprep.subr.bf16.mxu0 0
    %4435 = vmatpush1.bf16.xpose.msra.mxu0 %v4429
    %4436 = vmatprep.subr.bf16.mxu0 0
    %4437 = vmatpush1.bf16.xpose.msra.mxu0 %v4432
    %4438 = vmatprep.subr.bf16.mxu0 0
    %4439 = vmatpush1.bf16.xpose.msra.mxu0 0
    %4440 = vmatprep.subr.bf16.mxu0 0
    %4441 = vmatpush1.bf16.xpose.msra.mxu0 0
    %4442 = vmatprep.subr.bf16.mxu0 0
    %4443 = vmatpush1.bf16.xpose.msra.mxu0 0
    %4444 = vmatprep.subr.bf16.mxu0 0
    %4445 = vmatpush1.bf16.xpose.msra.mxu0 0
    %4446 = vmatprep.subr.bf16.mxu0 0
    %4447 = vmatpush1.bf16.xpose.msra.mxu0 0
    %4448 = vmatprep.subr.bf16.mxu0 0
    %4449 = vmatpush1.bf16.xpose.msra.mxu0 0
    %4450 = vmatprep.subr.bf16.mxu0 0
    %4451 = vmatpush1.bf16.xpose.msra.mxu0 0
    %4452 = vmatprep.subr.bf16.mxu0 0
    %4453 = vmatpush1.bf16.xpose.msra.mxu0 0
    %4454 = vmatprep.subr.bf16.mxu0 0
    %4455 = vmatpush1.bf16.xpose.msra.mxu0 0
    %4456 = vmatprep.subr.bf16.mxu0 0
    %4457 = vmatpush1.bf16.xpose.msra.mxu0 0
    %4458 = vmatprep.subr.bf16.mxu0 0
    %4459 = vmatpush1.bf16.xpose.msra.mxu0 0
    %4460 = vmatprep.subr.bf16.mxu0 0
    %4461 = vmatpush1.bf16.xpose.msra.mxu0 0
    %4462 = vmatprep.subr.bf16.mxu0 0
    %4463 = vmatpush1.bf16.xpose.msra.mxu0 0
    %4464 = vmatprep.subr.bf16.mxu0 0
    %4465 = vmatpush1.bf16.xpose.msra.mxu0 0
    %4466 = vmatprep.mubr.bf16.mxu0 0
    %4467 = vmatmul.mubr.bf16.gmra.mrb[0].mxu0 %v4417
    %v4468 = vpop.f32.mrb[0].mxu0
    %v4469 = vadd.f32 %v4404, %v4468
    %v4470 = vpop.f32.mrb[0].mxu0
    %v4471 = vpop.f32.mrb[0].mxu0
    %v4472 = vadd.f32 %v4404, %v4471
    %v4473 = vpop.f32.mrb[0].mxu0
    %4474 = vmatprep.mubr.bf16.mxu0 0
    %4475 = vmatmul.mubr.bf16.gmra.mrb[0].mxu0 %v4420
    %v4476 = vpop.f32.mrb[0].mxu0
    %v4477 = vadd.f32 %v4404, %v4476
    %v4478 = vpop.f32.mrb[0].mxu0
    %v4479 = vpop.f32.mrb[0].mxu0
    %v4480 = vadd.f32 %v4404, %v4479
    %v4481 = vpop.f32.mrb[0].mxu0
    %4482 = vmatprep.mubr.bf16.mxu0 0
    %4483 = vmatmul.mubr.bf16.gmra.mrb[0].mxu0 %v4423
    %v4484 = vpop.f32.mrb[0].mxu0
    %v4485 = vadd.f32 %v4404, %v4484
    %v4486 = vpop.f32.mrb[0].mxu0
    %v4487 = vpop.f32.mrb[0].mxu0
    %v4488 = vadd.f32 %v4404, %v4487
    %v4489 = vpop.f32.mrb[0].mxu0
    %4490 = vmatprep.mubr.bf16.mxu0 0
    %4491 = vmatmul.mubr.bf16.gmra.mrb[0].mxu0 %v4426
    %v4492 = vpop.f32.mrb[0].mxu0
    %v4493 = vadd.f32 %v4404, %v4492
    %v4494 = vpop.f32.mrb[0].mxu0
    %v4495 = vpop.f32.mrb[0].mxu0
    %v4496 = vadd.f32 %v4404, %v4495
    %v4497 = vpop.f32.mrb[0].mxu0
    %4498 = vdwg.mxu0
    %v4499 = vmax.f32 %v4469, 0.0
    %v4500 = vmax.f32 %v4472, 0.0
    %v4501 = vmax.f32 %v4477, 0.0
    %v4502 = vmax.f32 %v4480, 0.0
    %v4503 = vmax.f32 %v4485, 0.0
    %v4504 = vmax.f32 %v4488, 0.0
    %v4505 = vmax.f32 %v4493, 0.0
    %v4506 = vmax.f32 %v4496, 0.0
    %s4507 = scalar_lea.vmem [#allocation26], 6
    %v4508 = vld [vmem:[%s4507] sm:$0x1]
    %v4509 = vpack.c.bf16 %v4500, %v4499
    %v4510 = vpack.c.bf16 %v4502, %v4501
    %v4511 = vpack.c.bf16 %v4504, %v4503
    %v4512 = vpack.c.bf16 %v4506, %v4505
    %v4513 = vld [vmem:[#allocation20] sm:$0xf]
    %v4514 = vld [vmem:[#allocation20 + $0x4] sm:$0xf]
    %v4515 = vld [vmem:[#allocation20 + $0x8] sm:$0xf]
    %v4516 = vld [vmem:[#allocation20 + $0xc] sm:$0xf]
    %v4518 = vlaneseq
    %v4519 = vshrl.u32 %v4518, 7
    %v4520 = vsub.s32 0, %v4519
    %v4521 = vrot.slane %v4508, %v4520
    %v4527 = vunpack.c.l.b16 %v4513
    %v4528 = vunpack.c.l.b16 %v4514
    %v4529 = vunpack.c.l.b16 %v4515
    %v4530 = vunpack.c.l.b16 %v4516
    %v4531 = vpack.c.b16 %v4528, %v4527
    %v4532 = vpack.c.b16 %v4530, %v4529
    %v4534 = vsel %vm708, %v4509, 0
    %v4537 = vsel %vm708, %v4510, 0
    %v4540 = vsel %vm708, %v4511, 0
    %v4543 = vsel %vm708, %v4512, 0
    %v4546 = vsel %vm708, %v4531, 0
    %v4549 = vsel %vm708, %v4532, 0
    %4551 = vmatprep.subr.bf16.mxu0 0
    %4552 = vmatpush1.bf16.xpose.msra.mxu0 %v4546
    %4553 = vmatprep.subr.bf16.mxu0 0
    %4554 = vmatpush1.bf16.xpose.msra.mxu0 %v4549
    %4555 = vmatprep.subr.bf16.mxu0 0
    %4556 = vmatpush1.bf16.xpose.msra.mxu0 0
    %4557 = vmatprep.subr.bf16.mxu0 0
    %4558 = vmatpush1.bf16.xpose.msra.mxu0 0
    %4559 = vmatprep.subr.bf16.mxu0 0
    %4560 = vmatpush1.bf16.xpose.msra.mxu0 0
    %4561 = vmatprep.subr.bf16.mxu0 0
    %4562 = vmatpush1.bf16.xpose.msra.mxu0 0
    %4563 = vmatprep.subr.bf16.mxu0 0
    %4564 = vmatpush1.bf16.xpose.msra.mxu0 0
    %4565 = vmatprep.subr.bf16.mxu0 0
    %4566 = vmatpush1.bf16.xpose.msra.mxu0 0
    %4567 = vmatprep.subr.bf16.mxu0 0
    %4568 = vmatpush1.bf16.xpose.msra.mxu0 0
    %4569 = vmatprep.subr.bf16.mxu0 0
    %4570 = vmatpush1.bf16.xpose.msra.mxu0 0
    %4571 = vmatprep.subr.bf16.mxu0 0
    %4572 = vmatpush1.bf16.xpose.msra.mxu0 0
    %4573 = vmatprep.subr.bf16.mxu0 0
    %4574 = vmatpush1.bf16.xpose.msra.mxu0 0
    %4575 = vmatprep.subr.bf16.mxu0 0
    %4576 = vmatpush1.bf16.xpose.msra.mxu0 0
    %4577 = vmatprep.subr.bf16.mxu0 0
    %4578 = vmatpush1.bf16.xpose.msra.mxu0 0
    %4579 = vmatprep.subr.bf16.mxu0 0
    %4580 = vmatpush1.bf16.xpose.msra.mxu0 0
    %4581 = vmatprep.subr.bf16.mxu0 0
    %4582 = vmatpush1.bf16.xpose.msra.mxu0 0
    %4583 = vmatprep.mubr.bf16.mxu0 0
    %4584 = vmatmul.mubr.bf16.gmra.mrb[0].mxu0 %v4534
    %v4585 = vpop.f32.mrb[0].mxu0
    %v4586 = vadd.f32 %v4521, %v4585
    %v4587 = vpop.f32.mrb[0].mxu0
    %v4588 = vpop.f32.mrb[0].mxu0
    %v4589 = vadd.f32 %v4521, %v4588
    %v4590 = vpop.f32.mrb[0].mxu0
    %4591 = vmatprep.mubr.bf16.mxu0 0
    %4592 = vmatmul.mubr.bf16.gmra.mrb[0].mxu0 %v4537
    %v4593 = vpop.f32.mrb[0].mxu0
    %v4594 = vadd.f32 %v4521, %v4593
    %v4595 = vpop.f32.mrb[0].mxu0
    %v4596 = vpop.f32.mrb[0].mxu0
    %v4597 = vadd.f32 %v4521, %v4596
    %v4598 = vpop.f32.mrb[0].mxu0
    %4599 = vmatprep.mubr.bf16.mxu0 0
    %4600 = vmatmul.mubr.bf16.gmra.mrb[0].mxu0 %v4540
    %v4601 = vpop.f32.mrb[0].mxu0
    %v4602 = vadd.f32 %v4521, %v4601
    %v4603 = vpop.f32.mrb[0].mxu0
    %v4604 = vpop.f32.mrb[0].mxu0
    %v4605 = vadd.f32 %v4521, %v4604
    %v4606 = vpop.f32.mrb[0].mxu0
    %4607 = vmatprep.mubr.bf16.mxu0 0
    %4608 = vmatmul.mubr.bf16.gmra.mrb[0].mxu0 %v4543
    %v4609 = vpop.f32.mrb[0].mxu0
    %v4610 = vadd.f32 %v4521, %v4609
    %v4611 = vpop.f32.mrb[0].mxu0
    %v4612 = vpop.f32.mrb[0].mxu0
    %v4613 = vadd.f32 %v4521, %v4612
    %v4614 = vpop.f32.mrb[0].mxu0
    %4615 = vdwg.mxu0
    %v4616 = vmax.f32 %v4586, 0.0
    %v4617 = vmax.f32 %v4589, 0.0
    %v4618 = vmax.f32 %v4594, 0.0
    %v4619 = vmax.f32 %v4597, 0.0
    %v4620 = vmax.f32 %v4602, 0.0
    %v4621 = vmax.f32 %v4605, 0.0
    %v4622 = vmax.f32 %v4610, 0.0
    %v4623 = vmax.f32 %v4613, 0.0
    %v4624 = vadd.f32 %v4616, %v4382
    %v4625 = vadd.f32 %v4617, %v4383
    %v4626 = vadd.f32 %v4618, %v4384
    %v4627 = vadd.f32 %v4619, %v4385
    %v4628 = vadd.f32 %v4620, %v4386
    %v4629 = vadd.f32 %v4621, %v4387
    %v4630 = vadd.f32 %v4622, %v4388
    %v4631 = vadd.f32 %v4623, %v4389
    %v4632 = vmax.f32 %v4624, 0.0
    %v4633 = vmax.f32 %v4625, 0.0
    %v4634 = vmax.f32 %v4626, 0.0
    %v4635 = vmax.f32 %v4627, 0.0
    %v4636 = vmax.f32 %v4628, 0.0
    %v4637 = vmax.f32 %v4629, 0.0
    %v4638 = vmax.f32 %v4630, 0.0
    %v4639 = vmax.f32 %v4631, 0.0
    %s4640 = scalar_lea.vmem [#allocation25], 7
    %v4641 = vld [vmem:[%s4640] sm:$0x1]
    %v4642 = vpack.c.bf16 %v4633, %v4632
    %v4643 = vpack.c.bf16 %v4635, %v4634
    %v4644 = vpack.c.bf16 %v4637, %v4636
    %v4645 = vpack.c.bf16 %v4639, %v4638
    %v4646 = vld [vmem:[#allocation22] sm:$0xf]
    %v4647 = vld [vmem:[#allocation22 + $0x4] sm:$0xf]
    %v4648 = vld [vmem:[#allocation22 + $0x8] sm:$0xf]
    %v4649 = vld [vmem:[#allocation22 + $0xc] sm:$0xf]
    %v4651 = vlaneseq
    %v4652 = vshrl.u32 %v4651, 7
    %v4653 = vsub.s32 0, %v4652
    %v4654 = vrot.slane %v4641, %v4653
    %v4660 = vunpack.c.l.b16 %v4646
    %v4661 = vunpack.c.l.b16 %v4647
    %v4662 = vunpack.c.l.b16 %v4648
    %v4663 = vunpack.c.l.b16 %v4649
    %v4664 = vpack.c.b16 %v4661, %v4660
    %v4665 = vpack.c.b16 %v4663, %v4662
    %v4667 = vsel %vm708, %v4642, 0
    %v4670 = vsel %vm708, %v4643, 0
    %v4673 = vsel %vm708, %v4644, 0
    %v4676 = vsel %vm708, %v4645, 0
    %v4679 = vsel %vm708, %v4664, 0
    %v4682 = vsel %vm708, %v4665, 0
    %4684 = vmatprep.subr.bf16.mxu0 0
    %4685 = vmatpush1.bf16.xpose.msra.mxu0 %v4679
    %4686 = vmatprep.subr.bf16.mxu0 0
    %4687 = vmatpush1.bf16.xpose.msra.mxu0 %v4682
    %4688 = vmatprep.subr.bf16.mxu0 0
    %4689 = vmatpush1.bf16.xpose.msra.mxu0 0
    %4690 = vmatprep.subr.bf16.mxu0 0
    %4691 = vmatpush1.bf16.xpose.msra.mxu0 0
    %4692 = vmatprep.subr.bf16.mxu0 0
    %4693 = vmatpush1.bf16.xpose.msra.mxu0 0
    %4694 = vmatprep.subr.bf16.mxu0 0
    %4695 = vmatpush1.bf16.xpose.msra.mxu0 0
    %4696 = vmatprep.subr.bf16.mxu0 0
    %4697 = vmatpush1.bf16.xpose.msra.mxu0 0
    %4698 = vmatprep.subr.bf16.mxu0 0
    %4699 = vmatpush1.bf16.xpose.msra.mxu0 0
    %4700 = vmatprep.subr.bf16.mxu0 0
    %4701 = vmatpush1.bf16.xpose.msra.mxu0 0
    %4702 = vmatprep.subr.bf16.mxu0 0
    %4703 = vmatpush1.bf16.xpose.msra.mxu0 0
    %4704 = vmatprep.subr.bf16.mxu0 0
    %4705 = vmatpush1.bf16.xpose.msra.mxu0 0
    %4706 = vmatprep.subr.bf16.mxu0 0
    %4707 = vmatpush1.bf16.xpose.msra.mxu0 0
    %4708 = vmatprep.subr.bf16.mxu0 0
    %4709 = vmatpush1.bf16.xpose.msra.mxu0 0
    %4710 = vmatprep.subr.bf16.mxu0 0
    %4711 = vmatpush1.bf16.xpose.msra.mxu0 0
    %4712 = vmatprep.subr.bf16.mxu0 0
    %4713 = vmatpush1.bf16.xpose.msra.mxu0 0
    %4714 = vmatprep.subr.bf16.mxu0 0
    %4715 = vmatpush1.bf16.xpose.msra.mxu0 0
    %4716 = vmatprep.mubr.bf16.mxu0 0
    %4717 = vmatmul.mubr.bf16.gmra.mrb[0].mxu0 %v4667
    %v4718 = vpop.f32.mrb[0].mxu0
    %v4719 = vadd.f32 %v4654, %v4718
    %v4720 = vpop.f32.mrb[0].mxu0
    %v4721 = vpop.f32.mrb[0].mxu0
    %v4722 = vadd.f32 %v4654, %v4721
    %v4723 = vpop.f32.mrb[0].mxu0
    %4724 = vmatprep.mubr.bf16.mxu0 0
    %4725 = vmatmul.mubr.bf16.gmra.mrb[0].mxu0 %v4670
    %v4726 = vpop.f32.mrb[0].mxu0
    %v4727 = vadd.f32 %v4654, %v4726
    %v4728 = vpop.f32.mrb[0].mxu0
    %v4729 = vpop.f32.mrb[0].mxu0
    %v4730 = vadd.f32 %v4654, %v4729
    %v4731 = vpop.f32.mrb[0].mxu0
    %4732 = vmatprep.mubr.bf16.mxu0 0
    %4733 = vmatmul.mubr.bf16.gmra.mrb[0].mxu0 %v4673
    %v4734 = vpop.f32.mrb[0].mxu0
    %v4735 = vadd.f32 %v4654, %v4734
    %v4736 = vpop.f32.mrb[0].mxu0
    %v4737 = vpop.f32.mrb[0].mxu0
    %v4738 = vadd.f32 %v4654, %v4737
    %v4739 = vpop.f32.mrb[0].mxu0
    %4740 = vmatprep.mubr.bf16.mxu0 0
    %4741 = vmatmul.mubr.bf16.gmra.mrb[0].mxu0 %v4676
    %v4742 = vpop.f32.mrb[0].mxu0
    %v4743 = vadd.f32 %v4654, %v4742
    %v4744 = vpop.f32.mrb[0].mxu0
    %v4745 = vpop.f32.mrb[0].mxu0
    %v4746 = vadd.f32 %v4654, %v4745
    %v4747 = vpop.f32.mrb[0].mxu0
    %4748 = vdwg.mxu0
    %v4749 = vmax.f32 %v4719, 0.0
    %v4750 = vmax.f32 %v4722, 0.0
    %v4751 = vmax.f32 %v4727, 0.0
    %v4752 = vmax.f32 %v4730, 0.0
    %v4753 = vmax.f32 %v4735, 0.0
    %v4754 = vmax.f32 %v4738, 0.0
    %v4755 = vmax.f32 %v4743, 0.0
    %v4756 = vmax.f32 %v4746, 0.0
    %s4757 = scalar_lea.vmem [#allocation26], 7
    %v4758 = vld [vmem:[%s4757] sm:$0x1]
    %v4759 = vpack.c.bf16 %v4750, %v4749
    %v4760 = vpack.c.bf16 %v4752, %v4751
    %v4761 = vpack.c.bf16 %v4754, %v4753
    %v4762 = vpack.c.bf16 %v4756, %v4755
    %v4763 = vld [vmem:[#allocation23] sm:$0xf]
    %v4764 = vld [vmem:[#allocation23 + $0x4] sm:$0xf]
    %v4765 = vld [vmem:[#allocation23 + $0x8] sm:$0xf]
    %v4766 = vld [vmem:[#allocation23 + $0xc] sm:$0xf]
    %v4768 = vlaneseq
    %v4769 = vshrl.u32 %v4768, 7
    %v4770 = vsub.s32 0, %v4769
    %v4771 = vrot.slane %v4758, %v4770
    %v4777 = vunpack.c.l.b16 %v4763
    %v4778 = vunpack.c.l.b16 %v4764
    %v4779 = vunpack.c.l.b16 %v4765
    %v4780 = vunpack.c.l.b16 %v4766
    %v4781 = vpack.c.b16 %v4778, %v4777
    %v4782 = vpack.c.b16 %v4780, %v4779
    %v4784 = vsel %vm708, %v4759, 0
    %v4787 = vsel %vm708, %v4760, 0
    %v4790 = vsel %vm708, %v4761, 0
    %v4793 = vsel %vm708, %v4762, 0
    %v4796 = vsel %vm708, %v4781, 0
    %v4799 = vsel %vm708, %v4782, 0
    %4801 = vmatprep.subr.bf16.mxu0 0
    %4802 = vmatpush1.bf16.xpose.msra.mxu0 %v4796
    %4803 = vmatprep.subr.bf16.mxu0 0
    %4804 = vmatpush1.bf16.xpose.msra.mxu0 %v4799
    %4805 = vmatprep.subr.bf16.mxu0 0
    %4806 = vmatpush1.bf16.xpose.msra.mxu0 0
    %4807 = vmatprep.subr.bf16.mxu0 0
    %4808 = vmatpush1.bf16.xpose.msra.mxu0 0
    %4809 = vmatprep.subr.bf16.mxu0 0
    %4810 = vmatpush1.bf16.xpose.msra.mxu0 0
    %4811 = vmatprep.subr.bf16.mxu0 0
    %4812 = vmatpush1.bf16.xpose.msra.mxu0 0
    %4813 = vmatprep.subr.bf16.mxu0 0
    %4814 = vmatpush1.bf16.xpose.msra.mxu0 0
    %4815 = vmatprep.subr.bf16.mxu0 0
    %4816 = vmatpush1.bf16.xpose.msra.mxu0 0
    %4817 = vmatprep.subr.bf16.mxu0 0
    %4818 = vmatpush1.bf16.xpose.msra.mxu0 0
    %4819 = vmatprep.subr.bf16.mxu0 0
    %4820 = vmatpush1.bf16.xpose.msra.mxu0 0
    %4821 = vmatprep.subr.bf16.mxu0 0
    %4822 = vmatpush1.bf16.xpose.msra.mxu0 0
    %4823 = vmatprep.subr.bf16.mxu0 0
    %4824 = vmatpush1.bf16.xpose.msra.mxu0 0
    %4825 = vmatprep.subr.bf16.mxu0 0
    %4826 = vmatpush1.bf16.xpose.msra.mxu0 0
    %4827 = vmatprep.subr.bf16.mxu0 0
    %4828 = vmatpush1.bf16.xpose.msra.mxu0 0
    %4829 = vmatprep.subr.bf16.mxu0 0
    %4830 = vmatpush1.bf16.xpose.msra.mxu0 0
    %4831 = vmatprep.subr.bf16.mxu0 0
    %4832 = vmatpush1.bf16.xpose.msra.mxu0 0
    %4833 = vmatprep.mubr.bf16.mxu0 0
    %4834 = vmatmul.mubr.bf16.gmra.mrb[0].mxu0 %v4784
    %v4835 = vpop.f32.mrb[0].mxu0
    %v4836 = vadd.f32 %v4771, %v4835
    %v4837 = vpop.f32.mrb[0].mxu0
    %v4838 = vpop.f32.mrb[0].mxu0
    %v4839 = vadd.f32 %v4771, %v4838
    %v4840 = vpop.f32.mrb[0].mxu0
    %4841 = vmatprep.mubr.bf16.mxu0 0
    %4842 = vmatmul.mubr.bf16.gmra.mrb[0].mxu0 %v4787
    %v4843 = vpop.f32.mrb[0].mxu0
    %v4844 = vadd.f32 %v4771, %v4843
    %v4845 = vpop.f32.mrb[0].mxu0
    %v4846 = vpop.f32.mrb[0].mxu0
    %v4847 = vadd.f32 %v4771, %v4846
    %v4848 = vpop.f32.mrb[0].mxu0
    %4849 = vmatprep.mubr.bf16.mxu0 0
    %4850 = vmatmul.mubr.bf16.gmra.mrb[0].mxu0 %v4790
    %v4851 = vpop.f32.mrb[0].mxu0
    %v4852 = vadd.f32 %v4771, %v4851
    %v4853 = vpop.f32.mrb[0].mxu0
    %v4854 = vpop.f32.mrb[0].mxu0
    %v4855 = vadd.f32 %v4771, %v4854
    %v4856 = vpop.f32.mrb[0].mxu0
    %4857 = vmatprep.mubr.bf16.mxu0 0
    %4858 = vmatmul.mubr.bf16.gmra.mrb[0].mxu0 %v4793
    %v4859 = vpop.f32.mrb[0].mxu0
    %v4860 = vadd.f32 %v4771, %v4859
    %v4861 = vpop.f32.mrb[0].mxu0
    %v4862 = vpop.f32.mrb[0].mxu0
    %v4863 = vadd.f32 %v4771, %v4862
    %v4864 = vpop.f32.mrb[0].mxu0
    %4865 = vdwg.mxu0
    %v4866 = vmax.f32 %v4836, 0.0
    %v4867 = vmax.f32 %v4839, 0.0
    %v4868 = vmax.f32 %v4844, 0.0
    %v4869 = vmax.f32 %v4847, 0.0
    %v4870 = vmax.f32 %v4852, 0.0
    %v4871 = vmax.f32 %v4855, 0.0
    %v4872 = vmax.f32 %v4860, 0.0
    %v4873 = vmax.f32 %v4863, 0.0
    %v4874 = vadd.f32 %v4866, %v4632
    %v4875 = vadd.f32 %v4867, %v4633
    %v4876 = vadd.f32 %v4868, %v4634
    %v4877 = vadd.f32 %v4869, %v4635
    %v4878 = vadd.f32 %v4870, %v4636
    %v4879 = vadd.f32 %v4871, %v4637
    %v4880 = vadd.f32 %v4872, %v4638
    %v4881 = vadd.f32 %v4873, %v4639
    %v4882 = vmax.f32 %v4874, 0.0
    %v4883 = vmax.f32 %v4875, 0.0
    %v4884 = vmax.f32 %v4876, 0.0
    %v4885 = vmax.f32 %v4877, 0.0
    %v4886 = vmax.f32 %v4878, 0.0
    %v4887 = vmax.f32 %v4879, 0.0
    %v4888 = vmax.f32 %v4880, 0.0
    %v4889 = vmax.f32 %v4881, 0.0
    %v4890 = vpack.c.bf16 %v4883, %v4882
    %v4891 = vpack.c.bf16 %v4885, %v4884
    %v4892 = vpack.c.bf16 %v4887, %v4886
    %v4893 = vpack.c.bf16 %v4889, %v4888
    %v4894 = vld [vmem:[#allocation28] sm:$0xf]
    %v4895 = vld [vmem:[#allocation28 + $0x4] sm:$0xf]
    %v4896 = vld [vmem:[#allocation28 + $0x8] sm:$0xf]
    %v4897 = vld [vmem:[#allocation28 + $0xc] sm:$0xf]
    %v4898 = vld [vmem:[%s22] sm:$0x1]
    %v4900 = vlaneseq
    %v4901 = vshrl.u32 %v4900, 7
    %v4902 = vsub.s32 0, %v4901
    %v4903 = vrot.slane %v4898, %v4902
    %v4909 = vunpack.c.l.b16 %v4894
    %v4910 = vunpack.c.l.b16 %v4895
    %v4911 = vunpack.c.l.b16 %v4896
    %v4912 = vunpack.c.l.b16 %v4897
    %v4913 = vpack.c.b16 %v4910, %v4909
    %v4914 = vpack.c.b16 %v4912, %v4911
    %v4918 = vsel %vm708, %v4890, 0
    %v4921 = vsel %vm708, %v4891, 0
    %v4924 = vsel %vm708, %v4892, 0
    %v4927 = vsel %vm708, %v4893, 0
    %4929 = vmatprep.subr.bf16.mxu0 0
    %4930 = vmatpush1.bf16.msra.mxu0 %v4913
    %4931 = vmatprep.subr.bf16.mxu0 0
    %4932 = vmatpush1.bf16.msra.mxu0 %v4914
    %4933 = vmatprep.subr.bf16.mxu0 0
    %4934 = vmatpush1.bf16.msra.mxu0 0
    %4935 = vmatprep.subr.bf16.mxu0 0
    %4936 = vmatpush1.bf16.msra.mxu0 0
    %4937 = vmatprep.subr.bf16.mxu0 0
    %4938 = vmatpush1.bf16.msra.mxu0 0
    %4939 = vmatprep.subr.bf16.mxu0 0
    %4940 = vmatpush1.bf16.msra.mxu0 0
    %4941 = vmatprep.subr.bf16.mxu0 0
    %4942 = vmatpush1.bf16.msra.mxu0 0
    %4943 = vmatprep.subr.bf16.mxu0 0
    %4944 = vmatpush1.bf16.msra.mxu0 0
    %4945 = vmatprep.subr.bf16.mxu0 0
    %4946 = vmatpush1.bf16.msra.mxu0 0
    %4947 = vmatprep.subr.bf16.mxu0 0
    %4948 = vmatpush1.bf16.msra.mxu0 0
    %4949 = vmatprep.subr.bf16.mxu0 0
    %4950 = vmatpush1.bf16.msra.mxu0 0
    %4951 = vmatprep.subr.bf16.mxu0 0
    %4952 = vmatpush1.bf16.msra.mxu0 0
    %4953 = vmatprep.subr.bf16.mxu0 0
    %4954 = vmatpush1.bf16.msra.mxu0 0
    %4955 = vmatprep.subr.bf16.mxu0 0
    %4956 = vmatpush1.bf16.msra.mxu0 0
    %4957 = vmatprep.subr.bf16.mxu0 0
    %4958 = vmatpush1.bf16.msra.mxu0 0
    %4959 = vmatprep.subr.bf16.mxu0 0
    %4960 = vmatpush1.bf16.msra.mxu0 0
    %4961 = vmatprep.mubr.bf16.mxu0 0
    %4962 = vmatmul.mubr.bf16.gmra.mrb[0].mxu0 %v4918
    %v4963 = vpop.f32.mrb[0].mxu0
    %v4964 = vadd.f32 %v4903, %v4963
    %v4965 = vpop.f32.mrb[0].mxu0
    %v4966 = vpop.f32.mrb[0].mxu0
    %v4967 = vadd.f32 %v4903, %v4966
    %v4968 = vpop.f32.mrb[0].mxu0
    %4969 = vmatprep.mubr.bf16.mxu0 0
    %4970 = vmatmul.mubr.bf16.gmra.mrb[0].mxu0 %v4921
    %v4971 = vpop.f32.mrb[0].mxu0
    %v4972 = vadd.f32 %v4903, %v4971
    %v4973 = vpop.f32.mrb[0].mxu0
    %v4974 = vpop.f32.mrb[0].mxu0
    %v4975 = vadd.f32 %v4903, %v4974
    %v4976 = vpop.f32.mrb[0].mxu0
    %4977 = vmatprep.mubr.bf16.mxu0 0
    %4978 = vmatmul.mubr.bf16.gmra.mrb[0].mxu0 %v4924
    %v4979 = vpop.f32.mrb[0].mxu0
    %v4980 = vadd.f32 %v4903, %v4979
    %v4981 = vpop.f32.mrb[0].mxu0
    %v4982 = vpop.f32.mrb[0].mxu0
    %v4983 = vadd.f32 %v4903, %v4982
    %v4984 = vpop.f32.mrb[0].mxu0
    %4985 = vmatprep.mubr.bf16.mxu0 0
    %4986 = vmatmul.mubr.bf16.gmra.mrb[0].mxu0 %v4927
    %v4987 = vpop.f32.mrb[0].mxu0
    %v4988 = vadd.f32 %v4903, %v4987
    %v4989 = vpop.f32.mrb[0].mxu0
    %v4990 = vpop.f32.mrb[0].mxu0
    %v4991 = vadd.f32 %v4903, %v4990
    %v4992 = vpop.f32.mrb[0].mxu0
    %4993 = vdwg.mxu0
    %4994 = vst [vmem:[#allocation29] sm:$0xff] %v4964
    %4995 = vst [vmem:[#allocation29 + $0x8] sm:$0xff] %v4967
    %4996 = vst [vmem:[#allocation29 + $0x10] sm:$0xff] %v4972
    %4997 = vst [vmem:[#allocation29 + $0x18] sm:$0xff] %v4975
    %4998 = vst [vmem:[#allocation29 + $0x20] sm:$0xff] %v4980
    %4999 = vst [vmem:[#allocation29 + $0x28] sm:$0xff] %v4983
    %5000 = vst [vmem:[#allocation29 + $0x30] sm:$0xff] %v4988
    %5001 = vst [vmem:[#allocation29 + $0x38] sm:$0xff] %v4991
    // Predicated region
    $region162: #{tpu_custom_call.1} parent=1 // pred_check
      _
    $region163: #{tpu_custom_call.1} parent=1 // pred_check_branch
      %5003 = sbr.rel (0) target = $region165
    $region164: #{tpu_custom_call.1} parent=1 // pred_region
      %s5005 = ssub.s32 1024, 1024
      %5006 = vsyncadd [#allocation4], %s5005
      %s5007 = sshll.u32 [#allocation29], 4
      %s5008 = int_to_ptr.vmem [resolvable:$true] %s5007
      %5013 = dma.vmem_to_hbm [thread:$0]  %s5008, 1024, %s23, [#allocation4], 128, 128, 8
    $region165: #{tpu_custom_call.1} parent=1 // pred_fallthru
      _
    // Predicated region
    $region166: #{tpu_custom_call.1} parent=1 // pred_check
      _
    $region167: #{tpu_custom_call.1} parent=1 // pred_check_branch
      %5015 = sbr.rel (0) target = $region169
    $region168: #{tpu_custom_call.1} parent=1 // pred_region
      %5016 = dma.done [#allocation4], 1024
    $region169: #{tpu_custom_call.1} parent=1 // pred_fallthru
      _
    %5017 = vsyncpa [#allocation3], 1
    %5018 = vsyncpa [#allocation6], 1
    %5019 = vsyncpa [#allocation9], 1
    %5020 = vsyncpa [#allocation12], 1
    %5021 = vsyncpa [#allocation15], 1
    %5022 = vsyncpa [#allocation18], 1
    %5023 = vsyncpa [#allocation21], 1
    %5024 = vsyncpa [#allocation24], 1
    %5025 = vsyncpa [#allocation27], 1
    %5026 = vsyncpa [#allocation4], 1

</llo_original>
